<compile_context>
chip_gen: v5e
topology: v5e:2x2
jax: 0.10.0
libtpu: 0.0.40
codegen_flags: <defaults>
</compile_context>

<pallas_src>
import jax
import jax.numpy as jnp
from jax import lax
from jax.experimental import pallas as pl
from jax.experimental.pallas import tpu as pltpu
import numpy as np


def _round_up(x, m):
    return (x + m - 1) // m * m


# ----------------------------- Pallas kernel ------------------------------ #
def _make_refiner_kernel(H, W, Cp, Co, Chid, B_T, Lp):
    Wp = W + 2                  # padded row width
    HWide = H * Wp              # per-image "wide" output length (H rows x Wp cols)
    LO = Wp + 1                 # interior offset inside a padded-flat slab
    NW = B_T * HWide            # merged matmul width (all images of the block)

    def kernel(x_ref, w1_ref, b1_ref, w2_ref, b2_ref, w3_ref, b3_ref,
               w4_ref, b4_ref, mask_ref, scale_ref,
               out_ref, hid_a, hid_b, xcol):
        # x_ref:   (B_T, Cp, Lp)   f32   padded-flat input slabs
        # wK_ref:  (cout, 9*cin)   bf16  im2col-flattened 3x3 weights
        # w4_ref:  (Co, Chid)      bf16  1x1 conv weights
        # bK_ref:  (cout, 1)       f32
        # mask_ref:(1, NW)         f32   1.0 valid column / 0.0 junk column
        # scale_ref:(1,)           f32   SMEM scalar
        # hid_a/b: (B_T, Chid, Lp) bf16  padded hidden slabs (ping-pong)
        # xcol:    (9*Chid, Lcol)  bf16  im2col staging buffer

        # Zero the thin slab borders the per-layer writes never touch.  The
        # interior [LO, LO+HWide) of every image slab is fully rewritten each
        # layer and the masked junk columns land exactly on the remaining
        # border positions, so this is the only zeroing ever needed.
        for hid in (hid_a, hid_b):
            for b in range(B_T):
                hid[b, :, 0:LO] = jnp.zeros((Chid, LO), hid.dtype)
                hid[b, :, LO + HWide:Lp] = jnp.zeros(
                    (Chid, Lp - LO - HWide), hid.dtype)

        maskf = mask_ref[...]                     # (1, NW)
        scale = scale_ref[0]

        def im2col(load_tap, cin):
            # 9 contiguous lane windows per image -> one K = 9*cin MXU matmul
            # over the whole block batch at once.
            for ky in range(3):
                for kx in range(3):
                    t = ky * 3 + kx
                    off = ky * Wp + kx
                    for b in range(B_T):
                        xcol[t * cin:(t + 1) * cin,
                             b * HWide:(b + 1) * HWide] = load_tap(b, off)
            return xcol[0:9 * cin, 0:NW]

        def conv3x3(load_tap, cin, w_ref, b_ref):
            cols = im2col(load_tap, cin)
            return jnp.dot(w_ref[...], cols,
                           preferred_element_type=jnp.float32) + b_ref[...]

        def writeback(hid, h):
            hbf = h.astype(hid.dtype)
            for b in range(B_T):
                hid[b, :, LO:LO + HWide] = hbf[:, b * HWide:(b + 1) * HWide]

        # layer 1: Cp -> Chid, 3x3 + ReLU, write into padded slab A
        h = conv3x3(lambda b, o: x_ref[b, :, o:o + HWide].astype(jnp.bfloat16),
                    Cp, w1_ref, b1_ref)
        writeback(hid_a, jnp.maximum(h, 0.0) * maskf)

        # layer 2: Chid -> Chid, 3x3 + ReLU, write into padded slab B
        h = conv3x3(lambda b, o: hid_a[b, :, o:o + HWide], Chid, w2_ref, b2_ref)
        writeback(hid_b, jnp.maximum(h, 0.0) * maskf)

        # layer 3: Chid -> Chid, 3x3 + ReLU (feeds the 1x1 conv directly; junk
        # lanes are finite and sliced away by the wrapper -> no mask/writeback)
        h = conv3x3(lambda b, o: hid_b[b, :, o:o + HWide], Chid, w3_ref, b3_ref)
        h = jnp.maximum(h, 0.0)

        # final 1x1 conv + residual scale-add (element-wise math in f32)
        res = jnp.dot(w4_ref[...], h.astype(jnp.bfloat16),
                      preferred_element_type=jnp.float32) + b4_ref[...]
        for b in range(B_T):
            x_int = x_ref[b, 0:Co, LO:LO + HWide]            # coarse input lanes
            out_ref[b] = (x_int + scale * res[:, b * HWide:(b + 1) * HWide]
                          ).astype(out_ref.dtype)

    return kernel


# ------------------------------- wrapper ----------------------------------- #
def residual_refiner(x_nchw, params):
    w1, b1, w2, b2, w3, b3, w4, b4, scale = params
    N, C, H, W = x_nchw.shape
    Chid = w1.shape[-1]
    Hp, Wp = H + 2, W + 2
    HWide = H * Wp
    Lp = _round_up(Hp * Wp + 2, 128)      # padded-flat slab length (+2 tap slack)
    Cp = _round_up(C, 16)                 # bf16 sublane-pack aligned in-channels
    Co = _round_up(C, 8)                  # sublane aligned out-channels

    # block batch: amortize per-grid-step pipeline overhead and widen the MXU N
    B_T = 1
    for cand in (4, 2, 1):
        if N % cand == 0:
            B_T = cand
            break
    NW = B_T * HWide
    Lcol = _round_up(NW, 128)

    # ---- host-side layout prep (pads / reshapes only, no transposes) ----
    xp = jnp.pad(x_nchw.astype(jnp.float32),
                 ((0, 0), (0, Cp - C), (1, 1), (1, 1)))          # (N,Cp,Hp,Wp)
    x_wide = jnp.pad(xp.reshape(N, Cp, Hp * Wp),
                     ((0, 0), (0, 0), (0, Lp - Hp * Wp)))        # (N,Cp,Lp)

    def flat3x3(w, cin_pad):
        kh, kw, cin, cout = w.shape
        wp = jnp.zeros((kh, kw, cin_pad, cout), jnp.float32)
        wp = wp.at[:, :, :cin, :].set(w)
        return jnp.transpose(wp, (3, 0, 1, 2)).reshape(cout, kh * kw * cin_pad)

    w1f = flat3x3(w1, Cp).astype(jnp.bfloat16)                   # (Chid, 9*Cp)
    w2f = flat3x3(w2, Chid).astype(jnp.bfloat16)                 # (Chid, 9*Chid)
    w3f = flat3x3(w3, Chid).astype(jnp.bfloat16)
    w4f = jnp.zeros((Co, Chid), jnp.float32).at[:C, :].set(
        jnp.transpose(w4[0, 0], (1, 0))).astype(jnp.bfloat16)    # (Co, Chid)

    b1c = b1.reshape(Chid, 1).astype(jnp.float32)
    b2c = b2.reshape(Chid, 1).astype(jnp.float32)
    b3c = b3.reshape(Chid, 1).astype(jnp.float32)
    b4c = jnp.zeros((Co, 1), jnp.float32).at[:C, 0].set(b4)

    # lane-validity mask for the wide (H x Wp) rows, tiled across the block
    # batch: kills the 2 junk cols/row of every image's merged output columns
    mask1 = (np.arange(HWide) % Wp < W).astype(np.float32)
    maskf = jnp.asarray(np.tile(mask1, B_T)).reshape(1, NW)

    scale1 = jnp.asarray(scale, jnp.float32).reshape(1)

    kernel = _make_refiner_kernel(H, W, Cp, Co, Chid, B_T, Lp)
    full = lambda s: pl.BlockSpec(s, lambda n: (0,) * len(s))

    out_wide = pl.pallas_call(
        kernel,
        out_shape=jax.ShapeDtypeStruct((N, Co, HWide), jnp.float32),
        grid_spec=pltpu.PrefetchScalarGridSpec(
            num_scalar_prefetch=0,
            grid=(N // B_T,),
            in_specs=[
                pl.BlockSpec((B_T, Cp, Lp), lambda n: (n, 0, 0)),
                full(w1f.shape), full(b1c.shape),
                full(w2f.shape), full(b2c.shape),
                full(w3f.shape), full(b3c.shape),
                full(w4f.shape), full(b4c.shape),
                full(maskf.shape),
                pl.BlockSpec(memory_space=pltpu.MemorySpace.SMEM),
            ],
            out_specs=pl.BlockSpec((B_T, Co, HWide), lambda n: (n, 0, 0)),
            scratch_shapes=[
                pltpu.VMEM((B_T, Chid, Lp), jnp.bfloat16),   # padded hidden slabs A
                pltpu.VMEM((B_T, Chid, Lp), jnp.bfloat16),   # padded hidden slabs B
                pltpu.VMEM((9 * Chid, Lcol), jnp.bfloat16),  # im2col staging
            ]),
        # TODO(synk): for large images add a second (parallel) row-tile grid
        # axis with a 3-row halo and explicit vmem_limit_bytes so the slabs fit
        # v7x's 64 MiB VMEM and both v7x TensorCores stay busy.
        compiler_params=pltpu.CompilerParams(
            dimension_semantics=("parallel",)),
    )(x_wide, w1f, b1c, w2f, b2c, w3f, b3c, w4f, b4c, maskf, scale1)

    # drop padded channels + the 2 junk columns per wide row, back to NCHW
    return out_wide[:, :C].reshape(N, C, H, Wp)[:, :, :, :W]


# ------------------------ deterministic param init ------------------------- #
def init_params(key, in_channels=3, hidden=32):
    ks = jax.random.split(key, 8)
    w1 = 0.1 * jax.random.normal(ks[0], (3, 3, in_channels, hidden), jnp.float32)
    b1 = 0.1 * jax.random.normal(ks[1], (hidden,), jnp.float32)
    w2 = 0.1 * jax.random.normal(ks[2], (3, 3, hidden, hidden), jnp.float32)
    b2 = 0.1 * jax.random.normal(ks[3], (hidden,), jnp.float32)
    w3 = 0.1 * jax.random.normal(ks[4], (3, 3, hidden, hidden), jnp.float32)
    b3 = 0.1 * jax.random.normal(ks[5], (hidden,), jnp.float32)
    w4 = 0.1 * jax.random.normal(ks[6], (1, 1, hidden, in_channels), jnp.float32)
    b4 = 0.1 * jax.random.normal(ks[7], (in_channels,), jnp.float32)
    scale = jnp.asarray(0.1, jnp.float32)           # nn.Parameter(tensor(0.1))
    return (w1, b1, w2, b2, w3, b3, w4, b4, scale)


# ---------------------------- pure-JAX reference --------------------------- #
def reference_forward(x_nchw, params):
    w1, b1, w2, b2, w3, b3, w4, b4, scale = params
    x = jnp.transpose(x_nchw, (0, 2, 3, 1))                 # NCHW -> NHWC

    def conv(h, w, b, pad):
        out = lax.conv_general_dilated(
            h, w, window_strides=(1, 1), padding=pad,
            dimension_numbers=('NHWC', 'HWIO', 'NHWC'))
        return out + b.reshape(1, 1, 1, -1)

    h = jax.nn.relu(conv(x, w1, b1, 'SAME'))
    h = jax.nn.relu(conv(h, w2, b2, 'SAME'))
    h = jax.nn.relu(conv(h, w3, b3, 'SAME'))
    res = conv(h, w4, b4, 'VALID')
    out = x + scale * res
    return jnp.transpose(out, (0, 3, 1, 2))


if __name__ == "__main__":
    key = jax.random.PRNGKey(0)
    k_x, k_p = jax.random.split(key)

    N, C, H, W = 2, 3, 16, 16                               # in_channels=3 (module default)
    coarse = jax.random.normal(k_x, (N, C, H, W), jnp.float32)
    params = init_params(k_p, in_channels=C)

    out = jax.block_until_ready(residual_refiner(coarse, params))
    ref = jax.block_until_ready(reference_forward(coarse, params))

    # bf16 MXU inputs (f32 accumulation) -> slightly relaxed tolerance
    np.testing.assert_allclose(np.asarray(out), np.asarray(ref),
                               rtol=1e-2, atol=1e-2)
    print("KERNEL_OK")
</pallas_src>

<mosaic_0001>
module attributes {stable_mosaic.version = 11 : i64} {
  func.func @kernel(%arg0: i32, %arg1: memref<2x16x384xf32, #tpu.memory_space<vmem>>, %arg2: memref<32x144xbf16, #tpu.memory_space<vmem>>, %arg3: memref<32x1xf32, #tpu.memory_space<vmem>>, %arg4: memref<32x288xbf16, #tpu.memory_space<vmem>>, %arg5: memref<32x1xf32, #tpu.memory_space<vmem>>, %arg6: memref<32x288xbf16, #tpu.memory_space<vmem>>, %arg7: memref<32x1xf32, #tpu.memory_space<vmem>>, %arg8: memref<8x32xbf16, #tpu.memory_space<vmem>>, %arg9: memref<8x1xf32, #tpu.memory_space<vmem>>, %arg10: memref<1x576xf32, #tpu.memory_space<vmem>>, %arg11: memref<1xf32, #tpu.memory_space<smem>>, %arg12: memref<2x8x288xf32, #tpu.memory_space<vmem>>, %arg13: memref<2x32x384xbf16, #tpu.memory_space<vmem>>, %arg14: memref<2x32x384xbf16, #tpu.memory_space<vmem>>, %arg15: memref<288x640xbf16, #tpu.memory_space<vmem>>) attributes {dimension_semantics = [#tpu.dimension_semantics<parallel>], iteration_bounds = array<i64: 1>, scalar_prefetch = 0 : i64, scratch_operands = 3 : i64, tpu.core_type = #tpu.core_type<tc>, window_params = [{transform_indices = @transform_0, window_bounds = array<i64: 2, 16, 384>}, {pipeline_mode = #tpu.pipeline_mode<synchronous>, transform_indices = @transform_1, window_bounds = array<i64: 32, 144>}, {pipeline_mode = #tpu.pipeline_mode<synchronous>, transform_indices = @transform_2, window_bounds = array<i64: 32, 1>}, {pipeline_mode = #tpu.pipeline_mode<synchronous>, transform_indices = @transform_3, window_bounds = array<i64: 32, 288>}, {pipeline_mode = #tpu.pipeline_mode<synchronous>, transform_indices = @transform_4, window_bounds = array<i64: 32, 1>}, {pipeline_mode = #tpu.pipeline_mode<synchronous>, transform_indices = @transform_5, window_bounds = array<i64: 32, 288>}, {pipeline_mode = #tpu.pipeline_mode<synchronous>, transform_indices = @transform_6, window_bounds = array<i64: 32, 1>}, {pipeline_mode = #tpu.pipeline_mode<synchronous>, transform_indices = @transform_7, window_bounds = array<i64: 8, 32>}, {pipeline_mode = #tpu.pipeline_mode<synchronous>, transform_indices = @transform_8, window_bounds = array<i64: 8, 1>}, {pipeline_mode = #tpu.pipeline_mode<synchronous>, transform_indices = @transform_9, window_bounds = array<i64: 1, 576>}, {transform_indices = @transform_10, window_bounds = array<i64: 1>}, {transform_indices = @transform_11, window_bounds = array<i64: 2, 8, 288>}]} {
    %cst = arith.constant 0.000000e+00 : bf16
    %0 = vector.broadcast %cst : bf16 to vector<32x19xbf16>
    %c0 = arith.constant 0 : index
    %c0_0 = arith.constant 0 : index
    %c0_1 = arith.constant 0 : index
    %1 = vector.load %arg13[%c0, %c0_0, %c0_1] : memref<2x32x384xbf16, #tpu.memory_space<vmem>>, vector<1x32x19xbf16>
    %2 = vector.shape_cast %1 : vector<1x32x19xbf16> to vector<32x19xbf16>
    %3 = vector.shape_cast %0 : vector<32x19xbf16> to vector<1x32x19xbf16>
    tpu.vector_store %arg13[%c0, %c0_0, %c0_1], %3 {strides = array<i32>} : memref<2x32x384xbf16, #tpu.memory_space<vmem>>, vector<1x32x19xbf16>,
    %cst_2 = arith.constant 0.000000e+00 : bf16
    %4 = vector.broadcast %cst_2 : bf16 to vector<32x77xbf16>
    %c0_3 = arith.constant 0 : index
    %c0_4 = arith.constant 0 : index
    %c307 = arith.constant 307 : index
    %5 = vector.load %arg13[%c0_3, %c0_4, %c307] : memref<2x32x384xbf16, #tpu.memory_space<vmem>>, vector<1x32x77xbf16>
    %6 = vector.shape_cast %5 : vector<1x32x77xbf16> to vector<32x77xbf16>
    %7 = vector.shape_cast %4 : vector<32x77xbf16> to vector<1x32x77xbf16>
    tpu.vector_store %arg13[%c0_3, %c0_4, %c307], %7 {strides = array<i32>} : memref<2x32x384xbf16, #tpu.memory_space<vmem>>, vector<1x32x77xbf16>,
    %cst_5 = arith.constant 0.000000e+00 : bf16
    %8 = vector.broadcast %cst_5 : bf16 to vector<32x19xbf16>
    %c1 = arith.constant 1 : index
    %c0_6 = arith.constant 0 : index
    %c0_7 = arith.constant 0 : index
    %9 = vector.load %arg13[%c1, %c0_6, %c0_7] : memref<2x32x384xbf16, #tpu.memory_space<vmem>>, vector<1x32x19xbf16>
    %10 = vector.shape_cast %9 : vector<1x32x19xbf16> to vector<32x19xbf16>
    %11 = vector.shape_cast %8 : vector<32x19xbf16> to vector<1x32x19xbf16>
    tpu.vector_store %arg13[%c1, %c0_6, %c0_7], %11 {strides = array<i32>} : memref<2x32x384xbf16, #tpu.memory_space<vmem>>, vector<1x32x19xbf16>,
    %cst_8 = arith.constant 0.000000e+00 : bf16
    %12 = vector.broadcast %cst_8 : bf16 to vector<32x77xbf16>
    %c1_9 = arith.constant 1 : index
    %c0_10 = arith.constant 0 : index
    %c307_11 = arith.constant 307 : index
    %13 = vector.load %arg13[%c1_9, %c0_10, %c307_11] : memref<2x32x384xbf16, #tpu.memory_space<vmem>>, vector<1x32x77xbf16>
    %14 = vector.shape_cast %13 : vector<1x32x77xbf16> to vector<32x77xbf16>
    %15 = vector.shape_cast %12 : vector<32x77xbf16> to vector<1x32x77xbf16>
    tpu.vector_store %arg13[%c1_9, %c0_10, %c307_11], %15 {strides = array<i32>} : memref<2x32x384xbf16, #tpu.memory_space<vmem>>, vector<1x32x77xbf16>,
    %cst_12 = arith.constant 0.000000e+00 : bf16
    %16 = vector.broadcast %cst_12 : bf16 to vector<32x19xbf16>
    %c0_13 = arith.constant 0 : index
    %c0_14 = arith.constant 0 : index
    %c0_15 = arith.constant 0 : index
    %17 = vector.load %arg14[%c0_13, %c0_14, %c0_15] : memref<2x32x384xbf16, #tpu.memory_space<vmem>>, vector<1x32x19xbf16>
    %18 = vector.shape_cast %17 : vector<1x32x19xbf16> to vector<32x19xbf16>
    %19 = vector.shape_cast %16 : vector<32x19xbf16> to vector<1x32x19xbf16>
    tpu.vector_store %arg14[%c0_13, %c0_14, %c0_15], %19 {strides = array<i32>} : memref<2x32x384xbf16, #tpu.memory_space<vmem>>, vector<1x32x19xbf16>,
    %cst_16 = arith.constant 0.000000e+00 : bf16
    %20 = vector.broadcast %cst_16 : bf16 to vector<32x77xbf16>
    %c0_17 = arith.constant 0 : index
    %c0_18 = arith.constant 0 : index
    %c307_19 = arith.constant 307 : index
    %21 = vector.load %arg14[%c0_17, %c0_18, %c307_19] : memref<2x32x384xbf16, #tpu.memory_space<vmem>>, vector<1x32x77xbf16>
    %22 = vector.shape_cast %21 : vector<1x32x77xbf16> to vector<32x77xbf16>
    %23 = vector.shape_cast %20 : vector<32x77xbf16> to vector<1x32x77xbf16>
    tpu.vector_store %arg14[%c0_17, %c0_18, %c307_19], %23 {strides = array<i32>} : memref<2x32x384xbf16, #tpu.memory_space<vmem>>, vector<1x32x77xbf16>,
    %cst_20 = arith.constant 0.000000e+00 : bf16
    %24 = vector.broadcast %cst_20 : bf16 to vector<32x19xbf16>
    %c1_21 = arith.constant 1 : index
    %c0_22 = arith.constant 0 : index
    %c0_23 = arith.constant 0 : index
    %25 = vector.load %arg14[%c1_21, %c0_22, %c0_23] : memref<2x32x384xbf16, #tpu.memory_space<vmem>>, vector<1x32x19xbf16>
    %26 = vector.shape_cast %25 : vector<1x32x19xbf16> to vector<32x19xbf16>
    %27 = vector.shape_cast %24 : vector<32x19xbf16> to vector<1x32x19xbf16>
    tpu.vector_store %arg14[%c1_21, %c0_22, %c0_23], %27 {strides = array<i32>} : memref<2x32x384xbf16, #tpu.memory_space<vmem>>, vector<1x32x19xbf16>,
    %cst_24 = arith.constant 0.000000e+00 : bf16
    %28 = vector.broadcast %cst_24 : bf16 to vector<32x77xbf16>
    %c1_25 = arith.constant 1 : index
    %c0_26 = arith.constant 0 : index
    %c307_27 = arith.constant 307 : index
    %29 = vector.load %arg14[%c1_25, %c0_26, %c307_27] : memref<2x32x384xbf16, #tpu.memory_space<vmem>>, vector<1x32x77xbf16>
    %30 = vector.shape_cast %29 : vector<1x32x77xbf16> to vector<32x77xbf16>
    %31 = vector.shape_cast %28 : vector<32x77xbf16> to vector<1x32x77xbf16>
    tpu.vector_store %arg14[%c1_25, %c0_26, %c307_27], %31 {strides = array<i32>} : memref<2x32x384xbf16, #tpu.memory_space<vmem>>, vector<1x32x77xbf16>,
    %c0_28 = arith.constant 0 : index
    %c0_29 = arith.constant 0 : index
    %32 = vector.load %arg10[%c0_28, %c0_29] : memref<1x576xf32, #tpu.memory_space<vmem>>, vector<1x576xf32>
    %c0_30 = arith.constant 0 : index
    %33 = memref.load %arg11[%c0_30] : memref<1xf32, #tpu.memory_space<smem>>
    %c0_31 = arith.constant 0 : index
    %c0_32 = arith.constant 0 : index
    %c0_33 = arith.constant 0 : index
    %34 = vector.load %arg1[%c0_31, %c0_32, %c0_33] : memref<2x16x384xf32, #tpu.memory_space<vmem>>, vector<1x16x288xf32>
    %35 = vector.shape_cast %34 : vector<1x16x288xf32> to vector<16x288xf32>
    %36 = arith.truncf %35 : vector<16x288xf32> to vector<16x288xbf16>
    %c0_34 = arith.constant 0 : index
    %c0_35 = arith.constant 0 : index
    %37 = vector.load %arg15[%c0_34, %c0_35] : memref<288x640xbf16, #tpu.memory_space<vmem>>, vector<16x288xbf16>
    tpu.vector_store %arg15[%c0_34, %c0_35], %36 {strides = array<i32>} : memref<288x640xbf16, #tpu.memory_space<vmem>>, vector<16x288xbf16>,
    %c1_36 = arith.constant 1 : index
    %c0_37 = arith.constant 0 : index
    %c0_38 = arith.constant 0 : index
    %38 = vector.load %arg1[%c1_36, %c0_37, %c0_38] : memref<2x16x384xf32, #tpu.memory_space<vmem>>, vector<1x16x288xf32>
    %39 = vector.shape_cast %38 : vector<1x16x288xf32> to vector<16x288xf32>
    %40 = arith.truncf %39 : vector<16x288xf32> to vector<16x288xbf16>
    %c0_39 = arith.constant 0 : index
    %c288 = arith.constant 288 : index
    %41 = vector.load %arg15[%c0_39, %c288] : memref<288x640xbf16, #tpu.memory_space<vmem>>, vector<16x288xbf16>
    tpu.vector_store %arg15[%c0_39, %c288], %40 {strides = array<i32>} : memref<288x640xbf16, #tpu.memory_space<vmem>>, vector<16x288xbf16>,
    %c0_40 = arith.constant 0 : index
    %c0_41 = arith.constant 0 : index
    %c1_42 = arith.constant 1 : index
    %42 = vector.load %arg1[%c0_40, %c0_41, %c1_42] : memref<2x16x384xf32, #tpu.memory_space<vmem>>, vector<1x16x288xf32>
    %43 = vector.shape_cast %42 : vector<1x16x288xf32> to vector<16x288xf32>
    %44 = arith.truncf %43 : vector<16x288xf32> to vector<16x288xbf16>
    %c16 = arith.constant 16 : index
    %c0_43 = arith.constant 0 : index
    %45 = vector.load %arg15[%c16, %c0_43] : memref<288x640xbf16, #tpu.memory_space<vmem>>, vector<16x288xbf16>
    tpu.vector_store %arg15[%c16, %c0_43], %44 {strides = array<i32>} : memref<288x640xbf16, #tpu.memory_space<vmem>>, vector<16x288xbf16>,
    %c1_44 = arith.constant 1 : index
    %c0_45 = arith.constant 0 : index
    %c1_46 = arith.constant 1 : index
    %46 = vector.load %arg1[%c1_44, %c0_45, %c1_46] : memref<2x16x384xf32, #tpu.memory_space<vmem>>, vector<1x16x288xf32>
    %47 = vector.shape_cast %46 : vector<1x16x288xf32> to vector<16x288xf32>
    %48 = arith.truncf %47 : vector<16x288xf32> to vector<16x288xbf16>
    %c16_47 = arith.constant 16 : index
    %c288_48 = arith.constant 288 : index
    %49 = vector.load %arg15[%c16_47, %c288_48] : memref<288x640xbf16, #tpu.memory_space<vmem>>, vector<16x288xbf16>
    tpu.vector_store %arg15[%c16_47, %c288_48], %48 {strides = array<i32>} : memref<288x640xbf16, #tpu.memory_space<vmem>>, vector<16x288xbf16>,
    %c0_49 = arith.constant 0 : index
    %c0_50 = arith.constant 0 : index
    %c2 = arith.constant 2 : index
    %50 = vector.load %arg1[%c0_49, %c0_50, %c2] : memref<2x16x384xf32, #tpu.memory_space<vmem>>, vector<1x16x288xf32>
    %51 = vector.shape_cast %50 : vector<1x16x288xf32> to vector<16x288xf32>
    %52 = arith.truncf %51 : vector<16x288xf32> to vector<16x288xbf16>
    %c32 = arith.constant 32 : index
    %c0_51 = arith.constant 0 : index
    %53 = vector.load %arg15[%c32, %c0_51] : memref<288x640xbf16, #tpu.memory_space<vmem>>, vector<16x288xbf16>
    tpu.vector_store %arg15[%c32, %c0_51], %52 {strides = array<i32>} : memref<288x640xbf16, #tpu.memory_space<vmem>>, vector<16x288xbf16>,
    %c1_52 = arith.constant 1 : index
    %c0_53 = arith.constant 0 : index
    %c2_54 = arith.constant 2 : index
    %54 = vector.load %arg1[%c1_52, %c0_53, %c2_54] : memref<2x16x384xf32, #tpu.memory_space<vmem>>, vector<1x16x288xf32>
    %55 = vector.shape_cast %54 : vector<1x16x288xf32> to vector<16x288xf32>
    %56 = arith.truncf %55 : vector<16x288xf32> to vector<16x288xbf16>
    %c32_55 = arith.constant 32 : index
    %c288_56 = arith.constant 288 : index
    %57 = vector.load %arg15[%c32_55, %c288_56] : memref<288x640xbf16, #tpu.memory_space<vmem>>, vector<16x288xbf16>
    tpu.vector_store %arg15[%c32_55, %c288_56], %56 {strides = array<i32>} : memref<288x640xbf16, #tpu.memory_space<vmem>>, vector<16x288xbf16>,
    %c0_57 = arith.constant 0 : index
    %c0_58 = arith.constant 0 : index
    %c18 = arith.constant 18 : index
    %58 = vector.load %arg1[%c0_57, %c0_58, %c18] : memref<2x16x384xf32, #tpu.memory_space<vmem>>, vector<1x16x288xf32>
    %59 = vector.shape_cast %58 : vector<1x16x288xf32> to vector<16x288xf32>
    %60 = arith.truncf %59 : vector<16x288xf32> to vector<16x288xbf16>
    %c48 = arith.constant 48 : index
    %c0_59 = arith.constant 0 : index
    %61 = vector.load %arg15[%c48, %c0_59] : memref<288x640xbf16, #tpu.memory_space<vmem>>, vector<16x288xbf16>
    tpu.vector_store %arg15[%c48, %c0_59], %60 {strides = array<i32>} : memref<288x640xbf16, #tpu.memory_space<vmem>>, vector<16x288xbf16>,
    %c1_60 = arith.constant 1 : index
    %c0_61 = arith.constant 0 : index
    %c18_62 = arith.constant 18 : index
    %62 = vector.load %arg1[%c1_60, %c0_61, %c18_62] : memref<2x16x384xf32, #tpu.memory_space<vmem>>, vector<1x16x288xf32>
    %63 = vector.shape_cast %62 : vector<1x16x288xf32> to vector<16x288xf32>
    %64 = arith.truncf %63 : vector<16x288xf32> to vector<16x288xbf16>
    %c48_63 = arith.constant 48 : index
    %c288_64 = arith.constant 288 : index
    %65 = vector.load %arg15[%c48_63, %c288_64] : memref<288x640xbf16, #tpu.memory_space<vmem>>, vector<16x288xbf16>
    tpu.vector_store %arg15[%c48_63, %c288_64], %64 {strides = array<i32>} : memref<288x640xbf16, #tpu.memory_space<vmem>>, vector<16x288xbf16>,
    %c0_65 = arith.constant 0 : index
    %c0_66 = arith.constant 0 : index
    %c19 = arith.constant 19 : index
    %66 = vector.load %arg1[%c0_65, %c0_66, %c19] : memref<2x16x384xf32, #tpu.memory_space<vmem>>, vector<1x16x288xf32>
    %67 = vector.shape_cast %66 : vector<1x16x288xf32> to vector<16x288xf32>
    %68 = arith.truncf %67 : vector<16x288xf32> to vector<16x288xbf16>
    %c64 = arith.constant 64 : index
    %c0_67 = arith.constant 0 : index
    %69 = vector.load %arg15[%c64, %c0_67] : memref<288x640xbf16, #tpu.memory_space<vmem>>, vector<16x288xbf16>
    tpu.vector_store %arg15[%c64, %c0_67], %68 {strides = array<i32>} : memref<288x640xbf16, #tpu.memory_space<vmem>>, vector<16x288xbf16>,
    %c1_68 = arith.constant 1 : index
    %c0_69 = arith.constant 0 : index
    %c19_70 = arith.constant 19 : index
    %70 = vector.load %arg1[%c1_68, %c0_69, %c19_70] : memref<2x16x384xf32, #tpu.memory_space<vmem>>, vector<1x16x288xf32>
    %71 = vector.shape_cast %70 : vector<1x16x288xf32> to vector<16x288xf32>
    %72 = arith.truncf %71 : vector<16x288xf32> to vector<16x288xbf16>
    %c64_71 = arith.constant 64 : index
    %c288_72 = arith.constant 288 : index
    %73 = vector.load %arg15[%c64_71, %c288_72] : memref<288x640xbf16, #tpu.memory_space<vmem>>, vector<16x288xbf16>
    tpu.vector_store %arg15[%c64_71, %c288_72], %72 {strides = array<i32>} : memref<288x640xbf16, #tpu.memory_space<vmem>>, vector<16x288xbf16>,
    %c0_73 = arith.constant 0 : index
    %c0_74 = arith.constant 0 : index
    %c20 = arith.constant 20 : index
    %74 = vector.load %arg1[%c0_73, %c0_74, %c20] : memref<2x16x384xf32, #tpu.memory_space<vmem>>, vector<1x16x288xf32>
    %75 = vector.shape_cast %74 : vector<1x16x288xf32> to vector<16x288xf32>
    %76 = arith.truncf %75 : vector<16x288xf32> to vector<16x288xbf16>
    %c80 = arith.constant 80 : index
    %c0_75 = arith.constant 0 : index
    %77 = vector.load %arg15[%c80, %c0_75] : memref<288x640xbf16, #tpu.memory_space<vmem>>, vector<16x288xbf16>
    tpu.vector_store %arg15[%c80, %c0_75], %76 {strides = array<i32>} : memref<288x640xbf16, #tpu.memory_space<vmem>>, vector<16x288xbf16>,
    %c1_76 = arith.constant 1 : index
    %c0_77 = arith.constant 0 : index
    %c20_78 = arith.constant 20 : index
    %78 = vector.load %arg1[%c1_76, %c0_77, %c20_78] : memref<2x16x384xf32, #tpu.memory_space<vmem>>, vector<1x16x288xf32>
    %79 = vector.shape_cast %78 : vector<1x16x288xf32> to vector<16x288xf32>
    %80 = arith.truncf %79 : vector<16x288xf32> to vector<16x288xbf16>
    %c80_79 = arith.constant 80 : index
    %c288_80 = arith.constant 288 : index
    %81 = vector.load %arg15[%c80_79, %c288_80] : memref<288x640xbf16, #tpu.memory_space<vmem>>, vector<16x288xbf16>
    tpu.vector_store %arg15[%c80_79, %c288_80], %80 {strides = array<i32>} : memref<288x640xbf16, #tpu.memory_space<vmem>>, vector<16x288xbf16>,
    %c0_81 = arith.constant 0 : index
    %c0_82 = arith.constant 0 : index
    %c36 = arith.constant 36 : index
    %82 = vector.load %arg1[%c0_81, %c0_82, %c36] : memref<2x16x384xf32, #tpu.memory_space<vmem>>, vector<1x16x288xf32>
    %83 = vector.shape_cast %82 : vector<1x16x288xf32> to vector<16x288xf32>
    %84 = arith.truncf %83 : vector<16x288xf32> to vector<16x288xbf16>
    %c96 = arith.constant 96 : index
    %c0_83 = arith.constant 0 : index
    %85 = vector.load %arg15[%c96, %c0_83] : memref<288x640xbf16, #tpu.memory_space<vmem>>, vector<16x288xbf16>
    tpu.vector_store %arg15[%c96, %c0_83], %84 {strides = array<i32>} : memref<288x640xbf16, #tpu.memory_space<vmem>>, vector<16x288xbf16>,
    %c1_84 = arith.constant 1 : index
    %c0_85 = arith.constant 0 : index
    %c36_86 = arith.constant 36 : index
    %86 = vector.load %arg1[%c1_84, %c0_85, %c36_86] : memref<2x16x384xf32, #tpu.memory_space<vmem>>, vector<1x16x288xf32>
    %87 = vector.shape_cast %86 : vector<1x16x288xf32> to vector<16x288xf32>
    %88 = arith.truncf %87 : vector<16x288xf32> to vector<16x288xbf16>
    %c96_87 = arith.constant 96 : index
    %c288_88 = arith.constant 288 : index
    %89 = vector.load %arg15[%c96_87, %c288_88] : memref<288x640xbf16, #tpu.memory_space<vmem>>, vector<16x288xbf16>
    tpu.vector_store %arg15[%c96_87, %c288_88], %88 {strides = array<i32>} : memref<288x640xbf16, #tpu.memory_space<vmem>>, vector<16x288xbf16>,
    %c0_89 = arith.constant 0 : index
    %c0_90 = arith.constant 0 : index
    %c37 = arith.constant 37 : index
    %90 = vector.load %arg1[%c0_89, %c0_90, %c37] : memref<2x16x384xf32, #tpu.memory_space<vmem>>, vector<1x16x288xf32>
    %91 = vector.shape_cast %90 : vector<1x16x288xf32> to vector<16x288xf32>
    %92 = arith.truncf %91 : vector<16x288xf32> to vector<16x288xbf16>
    %c112 = arith.constant 112 : index
    %c0_91 = arith.constant 0 : index
    %93 = vector.load %arg15[%c112, %c0_91] : memref<288x640xbf16, #tpu.memory_space<vmem>>, vector<16x288xbf16>
    tpu.vector_store %arg15[%c112, %c0_91], %92 {strides = array<i32>} : memref<288x640xbf16, #tpu.memory_space<vmem>>, vector<16x288xbf16>,
    %c1_92 = arith.constant 1 : index
    %c0_93 = arith.constant 0 : index
    %c37_94 = arith.constant 37 : index
    %94 = vector.load %arg1[%c1_92, %c0_93, %c37_94] : memref<2x16x384xf32, #tpu.memory_space<vmem>>, vector<1x16x288xf32>
    %95 = vector.shape_cast %94 : vector<1x16x288xf32> to vector<16x288xf32>
    %96 = arith.truncf %95 : vector<16x288xf32> to vector<16x288xbf16>
    %c112_95 = arith.constant 112 : index
    %c288_96 = arith.constant 288 : index
    %97 = vector.load %arg15[%c112_95, %c288_96] : memref<288x640xbf16, #tpu.memory_space<vmem>>, vector<16x288xbf16>
    tpu.vector_store %arg15[%c112_95, %c288_96], %96 {strides = array<i32>} : memref<288x640xbf16, #tpu.memory_space<vmem>>, vector<16x288xbf16>,
    %c0_97 = arith.constant 0 : index
    %c0_98 = arith.constant 0 : index
    %c38 = arith.constant 38 : index
    %98 = vector.load %arg1[%c0_97, %c0_98, %c38] : memref<2x16x384xf32, #tpu.memory_space<vmem>>, vector<1x16x288xf32>
    %99 = vector.shape_cast %98 : vector<1x16x288xf32> to vector<16x288xf32>
    %100 = arith.truncf %99 : vector<16x288xf32> to vector<16x288xbf16>
    %c128 = arith.constant 128 : index
    %c0_99 = arith.constant 0 : index
    %101 = vector.load %arg15[%c128, %c0_99] : memref<288x640xbf16, #tpu.memory_space<vmem>>, vector<16x288xbf16>
    tpu.vector_store %arg15[%c128, %c0_99], %100 {strides = array<i32>} : memref<288x640xbf16, #tpu.memory_space<vmem>>, vector<16x288xbf16>,
    %c1_100 = arith.constant 1 : index
    %c0_101 = arith.constant 0 : index
    %c38_102 = arith.constant 38 : index
    %102 = vector.load %arg1[%c1_100, %c0_101, %c38_102] : memref<2x16x384xf32, #tpu.memory_space<vmem>>, vector<1x16x288xf32>
    %103 = vector.shape_cast %102 : vector<1x16x288xf32> to vector<16x288xf32>
    %104 = arith.truncf %103 : vector<16x288xf32> to vector<16x288xbf16>
    %c128_103 = arith.constant 128 : index
    %c288_104 = arith.constant 288 : index
    %105 = vector.load %arg15[%c128_103, %c288_104] : memref<288x640xbf16, #tpu.memory_space<vmem>>, vector<16x288xbf16>
    tpu.vector_store %arg15[%c128_103, %c288_104], %104 {strides = array<i32>} : memref<288x640xbf16, #tpu.memory_space<vmem>>, vector<16x288xbf16>,
    %c0_105 = arith.constant 0 : index
    %c0_106 = arith.constant 0 : index
    %106 = vector.load %arg15[%c0_105, %c0_106] : memref<288x640xbf16, #tpu.memory_space<vmem>>, vector<144x576xbf16>
    %c0_107 = arith.constant 0 : index
    %c0_108 = arith.constant 0 : index
    %107 = vector.load %arg2[%c0_107, %c0_108] : memref<32x144xbf16, #tpu.memory_space<vmem>>, vector<32x144xbf16>
    %cst_109 = arith.constant dense<0.000000e+00> : vector<32x576xf32>
    %108 = tpu.matmul %107, %106, %cst_109 {dimension_numbers = #tpu.dot_dimension_numbers<[1], [0], [0], [1], [0, 0, 1, 1], [], []>} : vector<32x144xbf16>, vector<144x576xbf16>, vector<32x576xf32> -> vector<32x576xf32>
    %c0_110 = arith.constant 0 : index
    %c0_111 = arith.constant 0 : index
    %109 = vector.load %arg3[%c0_110, %c0_111] : memref<32x1xf32, #tpu.memory_space<vmem>>, vector<32x1xf32>
    %110 = vector.broadcast %109 : vector<32x1xf32> to vector<32x576xf32>
    %111 = arith.addf %108, %110 : vector<32x576xf32>
    %cst_112 = arith.constant 0.000000e+00 : f32
    %112 = vector.broadcast %cst_112 : f32 to vector<32x576xf32>
    %113 = arith.maximumf %111, %112 : vector<32x576xf32>
    %114 = vector.broadcast %32 : vector<1x576xf32> to vector<32x576xf32>
    %115 = arith.mulf %113, %114 : vector<32x576xf32>
    %116 = arith.truncf %115 : vector<32x576xf32> to vector<32x576xbf16>
    %117 = vector.extract_strided_slice %116 {offsets = [0, 0], sizes = [32, 288], strides = [1, 1]} : vector<32x576xbf16> to vector<32x288xbf16>
    %c0_113 = arith.constant 0 : index
    %c0_114 = arith.constant 0 : index
    %c19_115 = arith.constant 19 : index
    %118 = vector.load %arg13[%c0_113, %c0_114, %c19_115] : memref<2x32x384xbf16, #tpu.memory_space<vmem>>, vector<1x32x288xbf16>
    %119 = vector.shape_cast %118 : vector<1x32x288xbf16> to vector<32x288xbf16>
    %120 = vector.shape_cast %117 : vector<32x288xbf16> to vector<1x32x288xbf16>
    tpu.vector_store %arg13[%c0_113, %c0_114, %c19_115], %120 {strides = array<i32>} : memref<2x32x384xbf16, #tpu.memory_space<vmem>>, vector<1x32x288xbf16>,
    %121 = vector.extract_strided_slice %116 {offsets = [0, 288], sizes = [32, 288], strides = [1, 1]} : vector<32x576xbf16> to vector<32x288xbf16>
    %c1_116 = arith.constant 1 : index
    %c0_117 = arith.constant 0 : index
    %c19_118 = arith.constant 19 : index
    %122 = vector.load %arg13[%c1_116, %c0_117, %c19_118] : memref<2x32x384xbf16, #tpu.memory_space<vmem>>, vector<1x32x288xbf16>
    %123 = vector.shape_cast %122 : vector<1x32x288xbf16> to vector<32x288xbf16>
    %124 = vector.shape_cast %121 : vector<32x288xbf16> to vector<1x32x288xbf16>
    tpu.vector_store %arg13[%c1_116, %c0_117, %c19_118], %124 {strides = array<i32>} : memref<2x32x384xbf16, #tpu.memory_space<vmem>>, vector<1x32x288xbf16>,
    %c0_119 = arith.constant 0 : index
    %c0_120 = arith.constant 0 : index
    %c0_121 = arith.constant 0 : index
    %125 = vector.load %arg13[%c0_119, %c0_120, %c0_121] : memref<2x32x384xbf16, #tpu.memory_space<vmem>>, vector<1x32x288xbf16>
    %126 = vector.shape_cast %125 : vector<1x32x288xbf16> to vector<32x288xbf16>
    %c0_122 = arith.constant 0 : index
    %c0_123 = arith.constant 0 : index
    %127 = vector.load %arg15[%c0_122, %c0_123] : memref<288x640xbf16, #tpu.memory_space<vmem>>, vector<32x288xbf16>
    tpu.vector_store %arg15[%c0_122, %c0_123], %126 {strides = array<i32>} : memref<288x640xbf16, #tpu.memory_space<vmem>>, vector<32x288xbf16>,
    %c1_124 = arith.constant 1 : index
    %c0_125 = arith.constant 0 : index
    %c0_126 = arith.constant 0 : index
    %128 = vector.load %arg13[%c1_124, %c0_125, %c0_126] : memref<2x32x384xbf16, #tpu.memory_space<vmem>>, vector<1x32x288xbf16>
    %129 = vector.shape_cast %128 : vector<1x32x288xbf16> to vector<32x288xbf16>
    %c0_127 = arith.constant 0 : index
    %c288_128 = arith.constant 288 : index
    %130 = vector.load %arg15[%c0_127, %c288_128] : memref<288x640xbf16, #tpu.memory_space<vmem>>, vector<32x288xbf16>
    tpu.vector_store %arg15[%c0_127, %c288_128], %129 {strides = array<i32>} : memref<288x640xbf16, #tpu.memory_space<vmem>>, vector<32x288xbf16>,
    %c0_129 = arith.constant 0 : index
    %c0_130 = arith.constant 0 : index
    %c1_131 = arith.constant 1 : index
    %131 = vector.load %arg13[%c0_129, %c0_130, %c1_131] : memref<2x32x384xbf16, #tpu.memory_space<vmem>>, vector<1x32x288xbf16>
    %132 = vector.shape_cast %131 : vector<1x32x288xbf16> to vector<32x288xbf16>
    %c32_132 = arith.constant 32 : index
    %c0_133 = arith.constant 0 : index
    %133 = vector.load %arg15[%c32_132, %c0_133] : memref<288x640xbf16, #tpu.memory_space<vmem>>, vector<32x288xbf16>
    tpu.vector_store %arg15[%c32_132, %c0_133], %132 {strides = array<i32>} : memref<288x640xbf16, #tpu.memory_space<vmem>>, vector<32x288xbf16>,
    %c1_134 = arith.constant 1 : index
    %c0_135 = arith.constant 0 : index
    %c1_136 = arith.constant 1 : index
    %134 = vector.load %arg13[%c1_134, %c0_135, %c1_136] : memref<2x32x384xbf16, #tpu.memory_space<vmem>>, vector<1x32x288xbf16>
    %135 = vector.shape_cast %134 : vector<1x32x288xbf16> to vector<32x288xbf16>
    %c32_137 = arith.constant 32 : index
    %c288_138 = arith.constant 288 : index
    %136 = vector.load %arg15[%c32_137, %c288_138] : memref<288x640xbf16, #tpu.memory_space<vmem>>, vector<32x288xbf16>
    tpu.vector_store %arg15[%c32_137, %c288_138], %135 {strides = array<i32>} : memref<288x640xbf16, #tpu.memory_space<vmem>>, vector<32x288xbf16>,
    %c0_139 = arith.constant 0 : index
    %c0_140 = arith.constant 0 : index
    %c2_141 = arith.constant 2 : index
    %137 = vector.load %arg13[%c0_139, %c0_140, %c2_141] : memref<2x32x384xbf16, #tpu.memory_space<vmem>>, vector<1x32x288xbf16>
    %138 = vector.shape_cast %137 : vector<1x32x288xbf16> to vector<32x288xbf16>
    %c64_142 = arith.constant 64 : index
    %c0_143 = arith.constant 0 : index
    %139 = vector.load %arg15[%c64_142, %c0_143] : memref<288x640xbf16, #tpu.memory_space<vmem>>, vector<32x288xbf16>
    tpu.vector_store %arg15[%c64_142, %c0_143], %138 {strides = array<i32>} : memref<288x640xbf16, #tpu.memory_space<vmem>>, vector<32x288xbf16>,
    %c1_144 = arith.constant 1 : index
    %c0_145 = arith.constant 0 : index
    %c2_146 = arith.constant 2 : index
    %140 = vector.load %arg13[%c1_144, %c0_145, %c2_146] : memref<2x32x384xbf16, #tpu.memory_space<vmem>>, vector<1x32x288xbf16>
    %141 = vector.shape_cast %140 : vector<1x32x288xbf16> to vector<32x288xbf16>
    %c64_147 = arith.constant 64 : index
    %c288_148 = arith.constant 288 : index
    %142 = vector.load %arg15[%c64_147, %c288_148] : memref<288x640xbf16, #tpu.memory_space<vmem>>, vector<32x288xbf16>
    tpu.vector_store %arg15[%c64_147, %c288_148], %141 {strides = array<i32>} : memref<288x640xbf16, #tpu.memory_space<vmem>>, vector<32x288xbf16>,
    %c0_149 = arith.constant 0 : index
    %c0_150 = arith.constant 0 : index
    %c18_151 = arith.constant 18 : index
    %143 = vector.load %arg13[%c0_149, %c0_150, %c18_151] : memref<2x32x384xbf16, #tpu.memory_space<vmem>>, vector<1x32x288xbf16>
    %144 = vector.shape_cast %143 : vector<1x32x288xbf16> to vector<32x288xbf16>
    %c96_152 = arith.constant 96 : index
    %c0_153 = arith.constant 0 : index
    %145 = vector.load %arg15[%c96_152, %c0_153] : memref<288x640xbf16, #tpu.memory_space<vmem>>, vector<32x288xbf16>
    tpu.vector_store %arg15[%c96_152, %c0_153], %144 {strides = array<i32>} : memref<288x640xbf16, #tpu.memory_space<vmem>>, vector<32x288xbf16>,
    %c1_154 = arith.constant 1 : index
    %c0_155 = arith.constant 0 : index
    %c18_156 = arith.constant 18 : index
    %146 = vector.load %arg13[%c1_154, %c0_155, %c18_156] : memref<2x32x384xbf16, #tpu.memory_space<vmem>>, vector<1x32x288xbf16>
    %147 = vector.shape_cast %146 : vector<1x32x288xbf16> to vector<32x288xbf16>
    %c96_157 = arith.constant 96 : index
    %c288_158 = arith.constant 288 : index
    %148 = vector.load %arg15[%c96_157, %c288_158] : memref<288x640xbf16, #tpu.memory_space<vmem>>, vector<32x288xbf16>
    tpu.vector_store %arg15[%c96_157, %c288_158], %147 {strides = array<i32>} : memref<288x640xbf16, #tpu.memory_space<vmem>>, vector<32x288xbf16>,
    %c0_159 = arith.constant 0 : index
    %c0_160 = arith.constant 0 : index
    %c19_161 = arith.constant 19 : index
    %149 = vector.load %arg13[%c0_159, %c0_160, %c19_161] : memref<2x32x384xbf16, #tpu.memory_space<vmem>>, vector<1x32x288xbf16>
    %150 = vector.shape_cast %149 : vector<1x32x288xbf16> to vector<32x288xbf16>
    %c128_162 = arith.constant 128 : index
    %c0_163 = arith.constant 0 : index
    %151 = vector.load %arg15[%c128_162, %c0_163] : memref<288x640xbf16, #tpu.memory_space<vmem>>, vector<32x288xbf16>
    tpu.vector_store %arg15[%c128_162, %c0_163], %150 {strides = array<i32>} : memref<288x640xbf16, #tpu.memory_space<vmem>>, vector<32x288xbf16>,
    %c1_164 = arith.constant 1 : index
    %c0_165 = arith.constant 0 : index
    %c19_166 = arith.constant 19 : index
    %152 = vector.load %arg13[%c1_164, %c0_165, %c19_166] : memref<2x32x384xbf16, #tpu.memory_space<vmem>>, vector<1x32x288xbf16>
    %153 = vector.shape_cast %152 : vector<1x32x288xbf16> to vector<32x288xbf16>
    %c128_167 = arith.constant 128 : index
    %c288_168 = arith.constant 288 : index
    %154 = vector.load %arg15[%c128_167, %c288_168] : memref<288x640xbf16, #tpu.memory_space<vmem>>, vector<32x288xbf16>
    tpu.vector_store %arg15[%c128_167, %c288_168], %153 {strides = array<i32>} : memref<288x640xbf16, #tpu.memory_space<vmem>>, vector<32x288xbf16>,
    %c0_169 = arith.constant 0 : index
    %c0_170 = arith.constant 0 : index
    %c20_171 = arith.constant 20 : index
    %155 = vector.load %arg13[%c0_169, %c0_170, %c20_171] : memref<2x32x384xbf16, #tpu.memory_space<vmem>>, vector<1x32x288xbf16>
    %156 = vector.shape_cast %155 : vector<1x32x288xbf16> to vector<32x288xbf16>
    %c160 = arith.constant 160 : index
    %c0_172 = arith.constant 0 : index
    %157 = vector.load %arg15[%c160, %c0_172] : memref<288x640xbf16, #tpu.memory_space<vmem>>, vector<32x288xbf16>
    tpu.vector_store %arg15[%c160, %c0_172], %156 {strides = array<i32>} : memref<288x640xbf16, #tpu.memory_space<vmem>>, vector<32x288xbf16>,
    %c1_173 = arith.constant 1 : index
    %c0_174 = arith.constant 0 : index
    %c20_175 = arith.constant 20 : index
    %158 = vector.load %arg13[%c1_173, %c0_174, %c20_175] : memref<2x32x384xbf16, #tpu.memory_space<vmem>>, vector<1x32x288xbf16>
    %159 = vector.shape_cast %158 : vector<1x32x288xbf16> to vector<32x288xbf16>
    %c160_176 = arith.constant 160 : index
    %c288_177 = arith.constant 288 : index
    %160 = vector.load %arg15[%c160_176, %c288_177] : memref<288x640xbf16, #tpu.memory_space<vmem>>, vector<32x288xbf16>
    tpu.vector_store %arg15[%c160_176, %c288_177], %159 {strides = array<i32>} : memref<288x640xbf16, #tpu.memory_space<vmem>>, vector<32x288xbf16>,
    %c0_178 = arith.constant 0 : index
    %c0_179 = arith.constant 0 : index
    %c36_180 = arith.constant 36 : index
    %161 = vector.load %arg13[%c0_178, %c0_179, %c36_180] : memref<2x32x384xbf16, #tpu.memory_space<vmem>>, vector<1x32x288xbf16>
    %162 = vector.shape_cast %161 : vector<1x32x288xbf16> to vector<32x288xbf16>
    %c192 = arith.constant 192 : index
    %c0_181 = arith.constant 0 : index
    %163 = vector.load %arg15[%c192, %c0_181] : memref<288x640xbf16, #tpu.memory_space<vmem>>, vector<32x288xbf16>
    tpu.vector_store %arg15[%c192, %c0_181], %162 {strides = array<i32>} : memref<288x640xbf16, #tpu.memory_space<vmem>>, vector<32x288xbf16>,
    %c1_182 = arith.constant 1 : index
    %c0_183 = arith.constant 0 : index
    %c36_184 = arith.constant 36 : index
    %164 = vector.load %arg13[%c1_182, %c0_183, %c36_184] : memref<2x32x384xbf16, #tpu.memory_space<vmem>>, vector<1x32x288xbf16>
    %165 = vector.shape_cast %164 : vector<1x32x288xbf16> to vector<32x288xbf16>
    %c192_185 = arith.constant 192 : index
    %c288_186 = arith.constant 288 : index
    %166 = vector.load %arg15[%c192_185, %c288_186] : memref<288x640xbf16, #tpu.memory_space<vmem>>, vector<32x288xbf16>
    tpu.vector_store %arg15[%c192_185, %c288_186], %165 {strides = array<i32>} : memref<288x640xbf16, #tpu.memory_space<vmem>>, vector<32x288xbf16>,
    %c0_187 = arith.constant 0 : index
    %c0_188 = arith.constant 0 : index
    %c37_189 = arith.constant 37 : index
    %167 = vector.load %arg13[%c0_187, %c0_188, %c37_189] : memref<2x32x384xbf16, #tpu.memory_space<vmem>>, vector<1x32x288xbf16>
    %168 = vector.shape_cast %167 : vector<1x32x288xbf16> to vector<32x288xbf16>
    %c224 = arith.constant 224 : index
    %c0_190 = arith.constant 0 : index
    %169 = vector.load %arg15[%c224, %c0_190] : memref<288x640xbf16, #tpu.memory_space<vmem>>, vector<32x288xbf16>
    tpu.vector_store %arg15[%c224, %c0_190], %168 {strides = array<i32>} : memref<288x640xbf16, #tpu.memory_space<vmem>>, vector<32x288xbf16>,
    %c1_191 = arith.constant 1 : index
    %c0_192 = arith.constant 0 : index
    %c37_193 = arith.constant 37 : index
    %170 = vector.load %arg13[%c1_191, %c0_192, %c37_193] : memref<2x32x384xbf16, #tpu.memory_space<vmem>>, vector<1x32x288xbf16>
    %171 = vector.shape_cast %170 : vector<1x32x288xbf16> to vector<32x288xbf16>
    %c224_194 = arith.constant 224 : index
    %c288_195 = arith.constant 288 : index
    %172 = vector.load %arg15[%c224_194, %c288_195] : memref<288x640xbf16, #tpu.memory_space<vmem>>, vector<32x288xbf16>
    tpu.vector_store %arg15[%c224_194, %c288_195], %171 {strides = array<i32>} : memref<288x640xbf16, #tpu.memory_space<vmem>>, vector<32x288xbf16>,
    %c0_196 = arith.constant 0 : index
    %c0_197 = arith.constant 0 : index
    %c38_198 = arith.constant 38 : index
    %173 = vector.load %arg13[%c0_196, %c0_197, %c38_198] : memref<2x32x384xbf16, #tpu.memory_space<vmem>>, vector<1x32x288xbf16>
    %174 = vector.shape_cast %173 : vector<1x32x288xbf16> to vector<32x288xbf16>
    %c256 = arith.constant 256 : index
    %c0_199 = arith.constant 0 : index
    %175 = vector.load %arg15[%c256, %c0_199] : memref<288x640xbf16, #tpu.memory_space<vmem>>, vector<32x288xbf16>
    tpu.vector_store %arg15[%c256, %c0_199], %174 {strides = array<i32>} : memref<288x640xbf16, #tpu.memory_space<vmem>>, vector<32x288xbf16>,
    %c1_200 = arith.constant 1 : index
    %c0_201 = arith.constant 0 : index
    %c38_202 = arith.constant 38 : index
    %176 = vector.load %arg13[%c1_200, %c0_201, %c38_202] : memref<2x32x384xbf16, #tpu.memory_space<vmem>>, vector<1x32x288xbf16>
    %177 = vector.shape_cast %176 : vector<1x32x288xbf16> to vector<32x288xbf16>
    %c256_203 = arith.constant 256 : index
    %c288_204 = arith.constant 288 : index
    %178 = vector.load %arg15[%c256_203, %c288_204] : memref<288x640xbf16, #tpu.memory_space<vmem>>, vector<32x288xbf16>
    tpu.vector_store %arg15[%c256_203, %c288_204], %177 {strides = array<i32>} : memref<288x640xbf16, #tpu.memory_space<vmem>>, vector<32x288xbf16>,
    %c0_205 = arith.constant 0 : index
    %c0_206 = arith.constant 0 : index
    %179 = vector.load %arg15[%c0_205, %c0_206] : memref<288x640xbf16, #tpu.memory_space<vmem>>, vector<288x576xbf16>
    %c0_207 = arith.constant 0 : index
    %c0_208 = arith.constant 0 : index
    %180 = vector.load %arg4[%c0_207, %c0_208] : memref<32x288xbf16, #tpu.memory_space<vmem>>, vector<32x288xbf16>
    %cst_209 = arith.constant dense<0.000000e+00> : vector<32x576xf32>
    %181 = tpu.matmul %180, %179, %cst_209 {dimension_numbers = #tpu.dot_dimension_numbers<[1], [0], [0], [1], [0, 0, 1, 1], [], []>} : vector<32x288xbf16>, vector<288x576xbf16>, vector<32x576xf32> -> vector<32x576xf32>
    %c0_210 = arith.constant 0 : index
    %c0_211 = arith.constant 0 : index
    %182 = vector.load %arg5[%c0_210, %c0_211] : memref<32x1xf32, #tpu.memory_space<vmem>>, vector<32x1xf32>
    %183 = vector.broadcast %182 : vector<32x1xf32> to vector<32x576xf32>
    %184 = arith.addf %181, %183 : vector<32x576xf32>
    %cst_212 = arith.constant 0.000000e+00 : f32
    %185 = vector.broadcast %cst_212 : f32 to vector<32x576xf32>
    %186 = arith.maximumf %184, %185 : vector<32x576xf32>
    %187 = vector.broadcast %32 : vector<1x576xf32> to vector<32x576xf32>
    %188 = arith.mulf %186, %187 : vector<32x576xf32>
    %189 = arith.truncf %188 : vector<32x576xf32> to vector<32x576xbf16>
    %190 = vector.extract_strided_slice %189 {offsets = [0, 0], sizes = [32, 288], strides = [1, 1]} : vector<32x576xbf16> to vector<32x288xbf16>
    %c0_213 = arith.constant 0 : index
    %c0_214 = arith.constant 0 : index
    %c19_215 = arith.constant 19 : index
    %191 = vector.load %arg14[%c0_213, %c0_214, %c19_215] : memref<2x32x384xbf16, #tpu.memory_space<vmem>>, vector<1x32x288xbf16>
    %192 = vector.shape_cast %191 : vector<1x32x288xbf16> to vector<32x288xbf16>
    %193 = vector.shape_cast %190 : vector<32x288xbf16> to vector<1x32x288xbf16>
    tpu.vector_store %arg14[%c0_213, %c0_214, %c19_215], %193 {strides = array<i32>} : memref<2x32x384xbf16, #tpu.memory_space<vmem>>, vector<1x32x288xbf16>,
    %194 = vector.extract_strided_slice %189 {offsets = [0, 288], sizes = [32, 288], strides = [1, 1]} : vector<32x576xbf16> to vector<32x288xbf16>
    %c1_216 = arith.constant 1 : index
    %c0_217 = arith.constant 0 : index
    %c19_218 = arith.constant 19 : index
    %195 = vector.load %arg14[%c1_216, %c0_217, %c19_218] : memref<2x32x384xbf16, #tpu.memory_space<vmem>>, vector<1x32x288xbf16>
    %196 = vector.shape_cast %195 : vector<1x32x288xbf16> to vector<32x288xbf16>
    %197 = vector.shape_cast %194 : vector<32x288xbf16> to vector<1x32x288xbf16>
    tpu.vector_store %arg14[%c1_216, %c0_217, %c19_218], %197 {strides = array<i32>} : memref<2x32x384xbf16, #tpu.memory_space<vmem>>, vector<1x32x288xbf16>,
    %c0_219 = arith.constant 0 : index
    %c0_220 = arith.constant 0 : index
    %c0_221 = arith.constant 0 : index
    %198 = vector.load %arg14[%c0_219, %c0_220, %c0_221] : memref<2x32x384xbf16, #tpu.memory_space<vmem>>, vector<1x32x288xbf16>
    %199 = vector.shape_cast %198 : vector<1x32x288xbf16> to vector<32x288xbf16>
    %c0_222 = arith.constant 0 : index
    %c0_223 = arith.constant 0 : index
    %200 = vector.load %arg15[%c0_222, %c0_223] : memref<288x640xbf16, #tpu.memory_space<vmem>>, vector<32x288xbf16>
    tpu.vector_store %arg15[%c0_222, %c0_223], %199 {strides = array<i32>} : memref<288x640xbf16, #tpu.memory_space<vmem>>, vector<32x288xbf16>,
    %c1_224 = arith.constant 1 : index
    %c0_225 = arith.constant 0 : index
    %c0_226 = arith.constant 0 : index
    %201 = vector.load %arg14[%c1_224, %c0_225, %c0_226] : memref<2x32x384xbf16, #tpu.memory_space<vmem>>, vector<1x32x288xbf16>
    %202 = vector.shape_cast %201 : vector<1x32x288xbf16> to vector<32x288xbf16>
    %c0_227 = arith.constant 0 : index
    %c288_228 = arith.constant 288 : index
    %203 = vector.load %arg15[%c0_227, %c288_228] : memref<288x640xbf16, #tpu.memory_space<vmem>>, vector<32x288xbf16>
    tpu.vector_store %arg15[%c0_227, %c288_228], %202 {strides = array<i32>} : memref<288x640xbf16, #tpu.memory_space<vmem>>, vector<32x288xbf16>,
    %c0_229 = arith.constant 0 : index
    %c0_230 = arith.constant 0 : index
    %c1_231 = arith.constant 1 : index
    %204 = vector.load %arg14[%c0_229, %c0_230, %c1_231] : memref<2x32x384xbf16, #tpu.memory_space<vmem>>, vector<1x32x288xbf16>
    %205 = vector.shape_cast %204 : vector<1x32x288xbf16> to vector<32x288xbf16>
    %c32_232 = arith.constant 32 : index
    %c0_233 = arith.constant 0 : index
    %206 = vector.load %arg15[%c32_232, %c0_233] : memref<288x640xbf16, #tpu.memory_space<vmem>>, vector<32x288xbf16>
    tpu.vector_store %arg15[%c32_232, %c0_233], %205 {strides = array<i32>} : memref<288x640xbf16, #tpu.memory_space<vmem>>, vector<32x288xbf16>,
    %c1_234 = arith.constant 1 : index
    %c0_235 = arith.constant 0 : index
    %c1_236 = arith.constant 1 : index
    %207 = vector.load %arg14[%c1_234, %c0_235, %c1_236] : memref<2x32x384xbf16, #tpu.memory_space<vmem>>, vector<1x32x288xbf16>
    %208 = vector.shape_cast %207 : vector<1x32x288xbf16> to vector<32x288xbf16>
    %c32_237 = arith.constant 32 : index
    %c288_238 = arith.constant 288 : index
    %209 = vector.load %arg15[%c32_237, %c288_238] : memref<288x640xbf16, #tpu.memory_space<vmem>>, vector<32x288xbf16>
    tpu.vector_store %arg15[%c32_237, %c288_238], %208 {strides = array<i32>} : memref<288x640xbf16, #tpu.memory_space<vmem>>, vector<32x288xbf16>,
    %c0_239 = arith.constant 0 : index
    %c0_240 = arith.constant 0 : index
    %c2_241 = arith.constant 2 : index
    %210 = vector.load %arg14[%c0_239, %c0_240, %c2_241] : memref<2x32x384xbf16, #tpu.memory_space<vmem>>, vector<1x32x288xbf16>
    %211 = vector.shape_cast %210 : vector<1x32x288xbf16> to vector<32x288xbf16>
    %c64_242 = arith.constant 64 : index
    %c0_243 = arith.constant 0 : index
    %212 = vector.load %arg15[%c64_242, %c0_243] : memref<288x640xbf16, #tpu.memory_space<vmem>>, vector<32x288xbf16>
    tpu.vector_store %arg15[%c64_242, %c0_243], %211 {strides = array<i32>} : memref<288x640xbf16, #tpu.memory_space<vmem>>, vector<32x288xbf16>,
    %c1_244 = arith.constant 1 : index
    %c0_245 = arith.constant 0 : index
    %c2_246 = arith.constant 2 : index
    %213 = vector.load %arg14[%c1_244, %c0_245, %c2_246] : memref<2x32x384xbf16, #tpu.memory_space<vmem>>, vector<1x32x288xbf16>
    %214 = vector.shape_cast %213 : vector<1x32x288xbf16> to vector<32x288xbf16>
    %c64_247 = arith.constant 64 : index
    %c288_248 = arith.constant 288 : index
    %215 = vector.load %arg15[%c64_247, %c288_248] : memref<288x640xbf16, #tpu.memory_space<vmem>>, vector<32x288xbf16>
    tpu.vector_store %arg15[%c64_247, %c288_248], %214 {strides = array<i32>} : memref<288x640xbf16, #tpu.memory_space<vmem>>, vector<32x288xbf16>,
    %c0_249 = arith.constant 0 : index
    %c0_250 = arith.constant 0 : index
    %c18_251 = arith.constant 18 : index
    %216 = vector.load %arg14[%c0_249, %c0_250, %c18_251] : memref<2x32x384xbf16, #tpu.memory_space<vmem>>, vector<1x32x288xbf16>
    %217 = vector.shape_cast %216 : vector<1x32x288xbf16> to vector<32x288xbf16>
    %c96_252 = arith.constant 96 : index
    %c0_253 = arith.constant 0 : index
    %218 = vector.load %arg15[%c96_252, %c0_253] : memref<288x640xbf16, #tpu.memory_space<vmem>>, vector<32x288xbf16>
    tpu.vector_store %arg15[%c96_252, %c0_253], %217 {strides = array<i32>} : memref<288x640xbf16, #tpu.memory_space<vmem>>, vector<32x288xbf16>,
    %c1_254 = arith.constant 1 : index
    %c0_255 = arith.constant 0 : index
    %c18_256 = arith.constant 18 : index
    %219 = vector.load %arg14[%c1_254, %c0_255, %c18_256] : memref<2x32x384xbf16, #tpu.memory_space<vmem>>, vector<1x32x288xbf16>
    %220 = vector.shape_cast %219 : vector<1x32x288xbf16> to vector<32x288xbf16>
    %c96_257 = arith.constant 96 : index
    %c288_258 = arith.constant 288 : index
    %221 = vector.load %arg15[%c96_257, %c288_258] : memref<288x640xbf16, #tpu.memory_space<vmem>>, vector<32x288xbf16>
    tpu.vector_store %arg15[%c96_257, %c288_258], %220 {strides = array<i32>} : memref<288x640xbf16, #tpu.memory_space<vmem>>, vector<32x288xbf16>,
    %c0_259 = arith.constant 0 : index
    %c0_260 = arith.constant 0 : index
    %c19_261 = arith.constant 19 : index
    %222 = vector.load %arg14[%c0_259, %c0_260, %c19_261] : memref<2x32x384xbf16, #tpu.memory_space<vmem>>, vector<1x32x288xbf16>
    %223 = vector.shape_cast %222 : vector<1x32x288xbf16> to vector<32x288xbf16>
    %c128_262 = arith.constant 128 : index
    %c0_263 = arith.constant 0 : index
    %224 = vector.load %arg15[%c128_262, %c0_263] : memref<288x640xbf16, #tpu.memory_space<vmem>>, vector<32x288xbf16>
    tpu.vector_store %arg15[%c128_262, %c0_263], %223 {strides = array<i32>} : memref<288x640xbf16, #tpu.memory_space<vmem>>, vector<32x288xbf16>,
    %c1_264 = arith.constant 1 : index
    %c0_265 = arith.constant 0 : index
    %c19_266 = arith.constant 19 : index
    %225 = vector.load %arg14[%c1_264, %c0_265, %c19_266] : memref<2x32x384xbf16, #tpu.memory_space<vmem>>, vector<1x32x288xbf16>
    %226 = vector.shape_cast %225 : vector<1x32x288xbf16> to vector<32x288xbf16>
    %c128_267 = arith.constant 128 : index
    %c288_268 = arith.constant 288 : index
    %227 = vector.load %arg15[%c128_267, %c288_268] : memref<288x640xbf16, #tpu.memory_space<vmem>>, vector<32x288xbf16>
    tpu.vector_store %arg15[%c128_267, %c288_268], %226 {strides = array<i32>} : memref<288x640xbf16, #tpu.memory_space<vmem>>, vector<32x288xbf16>,
    %c0_269 = arith.constant 0 : index
    %c0_270 = arith.constant 0 : index
    %c20_271 = arith.constant 20 : index
    %228 = vector.load %arg14[%c0_269, %c0_270, %c20_271] : memref<2x32x384xbf16, #tpu.memory_space<vmem>>, vector<1x32x288xbf16>
    %229 = vector.shape_cast %228 : vector<1x32x288xbf16> to vector<32x288xbf16>
    %c160_272 = arith.constant 160 : index
    %c0_273 = arith.constant 0 : index
    %230 = vector.load %arg15[%c160_272, %c0_273] : memref<288x640xbf16, #tpu.memory_space<vmem>>, vector<32x288xbf16>
    tpu.vector_store %arg15[%c160_272, %c0_273], %229 {strides = array<i32>} : memref<288x640xbf16, #tpu.memory_space<vmem>>, vector<32x288xbf16>,
    %c1_274 = arith.constant 1 : index
    %c0_275 = arith.constant 0 : index
    %c20_276 = arith.constant 20 : index
    %231 = vector.load %arg14[%c1_274, %c0_275, %c20_276] : memref<2x32x384xbf16, #tpu.memory_space<vmem>>, vector<1x32x288xbf16>
    %232 = vector.shape_cast %231 : vector<1x32x288xbf16> to vector<32x288xbf16>
    %c160_277 = arith.constant 160 : index
    %c288_278 = arith.constant 288 : index
    %233 = vector.load %arg15[%c160_277, %c288_278] : memref<288x640xbf16, #tpu.memory_space<vmem>>, vector<32x288xbf16>
    tpu.vector_store %arg15[%c160_277, %c288_278], %232 {strides = array<i32>} : memref<288x640xbf16, #tpu.memory_space<vmem>>, vector<32x288xbf16>,
    %c0_279 = arith.constant 0 : index
    %c0_280 = arith.constant 0 : index
    %c36_281 = arith.constant 36 : index
    %234 = vector.load %arg14[%c0_279, %c0_280, %c36_281] : memref<2x32x384xbf16, #tpu.memory_space<vmem>>, vector<1x32x288xbf16>
    %235 = vector.shape_cast %234 : vector<1x32x288xbf16> to vector<32x288xbf16>
    %c192_282 = arith.constant 192 : index
    %c0_283 = arith.constant 0 : index
    %236 = vector.load %arg15[%c192_282, %c0_283] : memref<288x640xbf16, #tpu.memory_space<vmem>>, vector<32x288xbf16>
    tpu.vector_store %arg15[%c192_282, %c0_283], %235 {strides = array<i32>} : memref<288x640xbf16, #tpu.memory_space<vmem>>, vector<32x288xbf16>,
    %c1_284 = arith.constant 1 : index
    %c0_285 = arith.constant 0 : index
    %c36_286 = arith.constant 36 : index
    %237 = vector.load %arg14[%c1_284, %c0_285, %c36_286] : memref<2x32x384xbf16, #tpu.memory_space<vmem>>, vector<1x32x288xbf16>
    %238 = vector.shape_cast %237 : vector<1x32x288xbf16> to vector<32x288xbf16>
    %c192_287 = arith.constant 192 : index
    %c288_288 = arith.constant 288 : index
    %239 = vector.load %arg15[%c192_287, %c288_288] : memref<288x640xbf16, #tpu.memory_space<vmem>>, vector<32x288xbf16>
    tpu.vector_store %arg15[%c192_287, %c288_288], %238 {strides = array<i32>} : memref<288x640xbf16, #tpu.memory_space<vmem>>, vector<32x288xbf16>,
    %c0_289 = arith.constant 0 : index
    %c0_290 = arith.constant 0 : index
    %c37_291 = arith.constant 37 : index
    %240 = vector.load %arg14[%c0_289, %c0_290, %c37_291] : memref<2x32x384xbf16, #tpu.memory_space<vmem>>, vector<1x32x288xbf16>
    %241 = vector.shape_cast %240 : vector<1x32x288xbf16> to vector<32x288xbf16>
    %c224_292 = arith.constant 224 : index
    %c0_293 = arith.constant 0 : index
    %242 = vector.load %arg15[%c224_292, %c0_293] : memref<288x640xbf16, #tpu.memory_space<vmem>>, vector<32x288xbf16>
    tpu.vector_store %arg15[%c224_292, %c0_293], %241 {strides = array<i32>} : memref<288x640xbf16, #tpu.memory_space<vmem>>, vector<32x288xbf16>,
    %c1_294 = arith.constant 1 : index
    %c0_295 = arith.constant 0 : index
    %c37_296 = arith.constant 37 : index
    %243 = vector.load %arg14[%c1_294, %c0_295, %c37_296] : memref<2x32x384xbf16, #tpu.memory_space<vmem>>, vector<1x32x288xbf16>
    %244 = vector.shape_cast %243 : vector<1x32x288xbf16> to vector<32x288xbf16>
    %c224_297 = arith.constant 224 : index
    %c288_298 = arith.constant 288 : index
    %245 = vector.load %arg15[%c224_297, %c288_298] : memref<288x640xbf16, #tpu.memory_space<vmem>>, vector<32x288xbf16>
    tpu.vector_store %arg15[%c224_297, %c288_298], %244 {strides = array<i32>} : memref<288x640xbf16, #tpu.memory_space<vmem>>, vector<32x288xbf16>,
    %c0_299 = arith.constant 0 : index
    %c0_300 = arith.constant 0 : index
    %c38_301 = arith.constant 38 : index
    %246 = vector.load %arg14[%c0_299, %c0_300, %c38_301] : memref<2x32x384xbf16, #tpu.memory_space<vmem>>, vector<1x32x288xbf16>
    %247 = vector.shape_cast %246 : vector<1x32x288xbf16> to vector<32x288xbf16>
    %c256_302 = arith.constant 256 : index
    %c0_303 = arith.constant 0 : index
    %248 = vector.load %arg15[%c256_302, %c0_303] : memref<288x640xbf16, #tpu.memory_space<vmem>>, vector<32x288xbf16>
    tpu.vector_store %arg15[%c256_302, %c0_303], %247 {strides = array<i32>} : memref<288x640xbf16, #tpu.memory_space<vmem>>, vector<32x288xbf16>,
    %c1_304 = arith.constant 1 : index
    %c0_305 = arith.constant 0 : index
    %c38_306 = arith.constant 38 : index
    %249 = vector.load %arg14[%c1_304, %c0_305, %c38_306] : memref<2x32x384xbf16, #tpu.memory_space<vmem>>, vector<1x32x288xbf16>
    %250 = vector.shape_cast %249 : vector<1x32x288xbf16> to vector<32x288xbf16>
    %c256_307 = arith.constant 256 : index
    %c288_308 = arith.constant 288 : index
    %251 = vector.load %arg15[%c256_307, %c288_308] : memref<288x640xbf16, #tpu.memory_space<vmem>>, vector<32x288xbf16>
    tpu.vector_store %arg15[%c256_307, %c288_308], %250 {strides = array<i32>} : memref<288x640xbf16, #tpu.memory_space<vmem>>, vector<32x288xbf16>,
    %c0_309 = arith.constant 0 : index
    %c0_310 = arith.constant 0 : index
    %252 = vector.load %arg15[%c0_309, %c0_310] : memref<288x640xbf16, #tpu.memory_space<vmem>>, vector<288x576xbf16>
    %c0_311 = arith.constant 0 : index
    %c0_312 = arith.constant 0 : index
    %253 = vector.load %arg6[%c0_311, %c0_312] : memref<32x288xbf16, #tpu.memory_space<vmem>>, vector<32x288xbf16>
    %cst_313 = arith.constant dense<0.000000e+00> : vector<32x576xf32>
    %254 = tpu.matmul %253, %252, %cst_313 {dimension_numbers = #tpu.dot_dimension_numbers<[1], [0], [0], [1], [0, 0, 1, 1], [], []>} : vector<32x288xbf16>, vector<288x576xbf16>, vector<32x576xf32> -> vector<32x576xf32>
    %c0_314 = arith.constant 0 : index
    %c0_315 = arith.constant 0 : index
    %255 = vector.load %arg7[%c0_314, %c0_315] : memref<32x1xf32, #tpu.memory_space<vmem>>, vector<32x1xf32>
    %256 = vector.broadcast %255 : vector<32x1xf32> to vector<32x576xf32>
    %257 = arith.addf %254, %256 : vector<32x576xf32>
    %cst_316 = arith.constant 0.000000e+00 : f32
    %258 = vector.broadcast %cst_316 : f32 to vector<32x576xf32>
    %259 = arith.maximumf %257, %258 : vector<32x576xf32>
    %c0_317 = arith.constant 0 : index
    %c0_318 = arith.constant 0 : index
    %260 = vector.load %arg8[%c0_317, %c0_318] : memref<8x32xbf16, #tpu.memory_space<vmem>>, vector<8x32xbf16>
    %261 = arith.truncf %259 : vector<32x576xf32> to vector<32x576xbf16>
    %cst_319 = arith.constant dense<0.000000e+00> : vector<8x576xf32>
    %262 = tpu.matmul %260, %261, %cst_319 {dimension_numbers = #tpu.dot_dimension_numbers<[1], [0], [0], [1], [0, 0, 1, 1], [], []>} : vector<8x32xbf16>, vector<32x576xbf16>, vector<8x576xf32> -> vector<8x576xf32>
    %c0_320 = arith.constant 0 : index
    %c0_321 = arith.constant 0 : index
    %263 = vector.load %arg9[%c0_320, %c0_321] : memref<8x1xf32, #tpu.memory_space<vmem>>, vector<8x1xf32>
    %264 = vector.broadcast %263 : vector<8x1xf32> to vector<8x576xf32>
    %265 = arith.addf %262, %264 : vector<8x576xf32>
    %c0_322 = arith.constant 0 : index
    %c0_323 = arith.constant 0 : index
    %c19_324 = arith.constant 19 : index
    %266 = vector.load %arg1[%c0_322, %c0_323, %c19_324] : memref<2x16x384xf32, #tpu.memory_space<vmem>>, vector<1x8x288xf32>
    %267 = vector.shape_cast %266 : vector<1x8x288xf32> to vector<8x288xf32>
    %268 = vector.extract_strided_slice %265 {offsets = [0, 0], sizes = [8, 288], strides = [1, 1]} : vector<8x576xf32> to vector<8x288xf32>
    %269 = vector.broadcast %33 : f32 to vector<8x288xf32>
    %270 = arith.mulf %269, %268 : vector<8x288xf32>
    %271 = arith.addf %267, %270 : vector<8x288xf32>
    %c0_325 = arith.constant 0 : index
    %c0_326 = arith.constant 0 : index
    %c0_327 = arith.constant 0 : index
    %272 = vector.load %arg12[%c0_325, %c0_326, %c0_327] : memref<2x8x288xf32, #tpu.memory_space<vmem>>, vector<1x8x288xf32>
    %273 = vector.shape_cast %272 : vector<1x8x288xf32> to vector<8x288xf32>
    %274 = vector.shape_cast %271 : vector<8x288xf32> to vector<1x8x288xf32>
    tpu.vector_store %arg12[%c0_325, %c0_326, %c0_327], %274 {strides = array<i32>} : memref<2x8x288xf32, #tpu.memory_space<vmem>>, vector<1x8x288xf32>,
    %c1_328 = arith.constant 1 : index
    %c0_329 = arith.constant 0 : index
    %c19_330 = arith.constant 19 : index
    %275 = vector.load %arg1[%c1_328, %c0_329, %c19_330] : memref<2x16x384xf32, #tpu.memory_space<vmem>>, vector<1x8x288xf32>
    %276 = vector.shape_cast %275 : vector<1x8x288xf32> to vector<8x288xf32>
    %277 = vector.extract_strided_slice %265 {offsets = [0, 288], sizes = [8, 288], strides = [1, 1]} : vector<8x576xf32> to vector<8x288xf32>
    %278 = vector.broadcast %33 : f32 to vector<8x288xf32>
    %279 = arith.mulf %278, %277 : vector<8x288xf32>
    %280 = arith.addf %276, %279 : vector<8x288xf32>
    %c1_331 = arith.constant 1 : index
    %c0_332 = arith.constant 0 : index
    %c0_333 = arith.constant 0 : index
    %281 = vector.load %arg12[%c1_331, %c0_332, %c0_333] : memref<2x8x288xf32, #tpu.memory_space<vmem>>, vector<1x8x288xf32>
    %282 = vector.shape_cast %281 : vector<1x8x288xf32> to vector<8x288xf32>
    %283 = vector.shape_cast %280 : vector<8x288xf32> to vector<1x8x288xf32>
    tpu.vector_store %arg12[%c1_331, %c0_332, %c0_333], %283 {strides = array<i32>} : memref<2x8x288xf32, #tpu.memory_space<vmem>>, vector<1x8x288xf32>,
    return
  }
  func.func @transform_0(%arg0: i32) -> (i32, i32, i32) {
    %c0_i32 = arith.constant 0 : i32
    %c0_i32_0 = arith.constant 0 : i32
    %c0_i32_1 = arith.constant 0 : i32
    return %arg0, %c0_i32, %c0_i32_0 : i32, i32, i32
  }
  func.func @transform_1(%arg0: i32) -> (i32, i32) {
    %c0_i32 = arith.constant 0 : i32
    %c0_i32_0 = arith.constant 0 : i32
    %c0_i32_1 = arith.constant 0 : i32
    return %c0_i32, %c0_i32_0 : i32, i32
  }
  func.func @transform_2(%arg0: i32) -> (i32, i32) {
    %c0_i32 = arith.constant 0 : i32
    %c0_i32_0 = arith.constant 0 : i32
    %c0_i32_1 = arith.constant 0 : i32
    return %c0_i32, %c0_i32_0 : i32, i32
  }
  func.func @transform_3(%arg0: i32) -> (i32, i32) {
    %c0_i32 = arith.constant 0 : i32
    %c0_i32_0 = arith.constant 0 : i32
    %c0_i32_1 = arith.constant 0 : i32
    return %c0_i32, %c0_i32_0 : i32, i32
  }
  func.func @transform_4(%arg0: i32) -> (i32, i32) {
    %c0_i32 = arith.constant 0 : i32
    %c0_i32_0 = arith.constant 0 : i32
    %c0_i32_1 = arith.constant 0 : i32
    return %c0_i32, %c0_i32_0 : i32, i32
  }
  func.func @transform_5(%arg0: i32) -> (i32, i32) {
    %c0_i32 = arith.constant 0 : i32
    %c0_i32_0 = arith.constant 0 : i32
    %c0_i32_1 = arith.constant 0 : i32
    return %c0_i32, %c0_i32_0 : i32, i32
  }
  func.func @transform_6(%arg0: i32) -> (i32, i32) {
    %c0_i32 = arith.constant 0 : i32
    %c0_i32_0 = arith.constant 0 : i32
    %c0_i32_1 = arith.constant 0 : i32
    return %c0_i32, %c0_i32_0 : i32, i32
  }
  func.func @transform_7(%arg0: i32) -> (i32, i32) {
    %c0_i32 = arith.constant 0 : i32
    %c0_i32_0 = arith.constant 0 : i32
    %c0_i32_1 = arith.constant 0 : i32
    return %c0_i32, %c0_i32_0 : i32, i32
  }
  func.func @transform_8(%arg0: i32) -> (i32, i32) {
    %c0_i32 = arith.constant 0 : i32
    %c0_i32_0 = arith.constant 0 : i32
    %c0_i32_1 = arith.constant 0 : i32
    return %c0_i32, %c0_i32_0 : i32, i32
  }
  func.func @transform_9(%arg0: i32) -> (i32, i32) {
    %c0_i32 = arith.constant 0 : i32
    %c0_i32_0 = arith.constant 0 : i32
    %c0_i32_1 = arith.constant 0 : i32
    return %c0_i32, %c0_i32_0 : i32, i32
  }
  func.func @transform_10(%arg0: i32) -> i32 {
    %c0_i32 = arith.constant 0 : i32
    %c0_i32_0 = arith.constant 0 : i32
    return %c0_i32 : i32
  }
  func.func @transform_11(%arg0: i32) -> (i32, i32, i32) {
    %c0_i32 = arith.constant 0 : i32
    %c0_i32_0 = arith.constant 0 : i32
    %c0_i32_1 = arith.constant 0 : i32
    return %arg0, %c0_i32, %c0_i32_0 : i32, i32, i32
  }
}

</mosaic_0001>

<llo_original>
// kernel: tpu_custom_call.1
$region0: #{tpu_custom_call.1}
  #allocation0 [shape = 'u32[]', space=smem, size = 0x4, offset = 0x4, fixed_abs, tag = 'smem constant byte address 0x4 - core index']
  #allocation1 [shape = 'u32[72,128]{1,0:T(1,128)}', space=vmem, size = 0x9000, scoped, tag = 'internal scratch']
  #allocation2 [shape = 'bf16[2,32,384]{2,1,0:T(8,128)(2,1)}', space=vmem, size = 0xc000, scoped, tag = 'scratch operand']
  #allocation3 [shape = 'bf16[2,32,384]{2,1,0:T(8,128)(2,1)}', space=vmem, size = 0xc000, scoped, tag = 'scratch operand']
  #allocation4 [shape = 'bf16[288,640]{1,0:T(8,128)(2,1)}', space=vmem, size = 0x5a000, scoped, tag = 'scratch operand']
  #allocation5 [shape = 'f32[1]{0:T(128)S(6)}', space=smem, size = 0x200, scoped, tag = 'scoped memory for tpu_custom_call.1']
  %s0 = inlined_call_operand.hbm [shape: f32[2,16,384], index: 0, kind: input, shape index: {}]
  %s1 = inlined_call_operand.hbm [shape: bf16[32,144], index: 1, kind: input, shape index: {}]
  %s2 = inlined_call_operand.vmem [shape: f32[32,1], index: 2, kind: input, shape index: {}]
  %s3 = inlined_call_operand.vmem [shape: bf16[32,288], index: 3, kind: input, shape index: {}]
  %s4 = inlined_call_operand.vmem [shape: f32[32,1], index: 4, kind: input, shape index: {}]
  %s5 = inlined_call_operand.vmem [shape: bf16[32,288], index: 5, kind: input, shape index: {}]
  %s6 = inlined_call_operand.vmem [shape: f32[32,1], index: 6, kind: input, shape index: {}]
  %s7 = inlined_call_operand.vmem [shape: bf16[8,32], index: 7, kind: input, shape index: {}]
  %s8 = inlined_call_operand.vmem [shape: f32[8,1], index: 8, kind: input, shape index: {}]
  %s9 = inlined_call_operand.vmem [shape: f32[1,576], index: 9, kind: input, shape index: {}]
  %s10 = inlined_call_operand.<no memory space> [shape: f32[1], index: 10, kind: input, shape index: {}]
  %s11 = inlined_call_operand.hbm [shape: f32[2,8,288], index: 11, kind: output, shape index: {}]
  %s12 = sld [smem:[#allocation0]]
  $region62: #{tpu_custom_call.1} parent=0
    _
  %s14 = ssub.s32 1, %s12
  %s15 = scalar_select 0, %s14, %s12
  %16 = sst [smem:[#allocation5]] %s10
  $region1: #{tpu_custom_call.1} parent=0
    #allocation6 [shape = 'u8[49152]{0}', space=vmem, size = 0xc000, scoped, tag = 'input window, operand 0, single buffered']
    #allocation7 [shape = 's32[1]{0}', space=sflag, size = 0x4, scoped, tag = 'scoped memory for tpu_custom_call.1']
    #allocation8 [shape = 's32[1]{0}', space=sflag, size = 0x4, scoped, tag = 'scoped memory for tpu_custom_call.1']
    #allocation9 [shape = 'u8[16384]{0}', space=vmem, size = 0x4000, scoped, tag = 'input window, operand 1, single buffered']
    #allocation10 [shape = 's32[1]{0}', space=sflag, size = 0x4, scoped, tag = 'scoped memory for tpu_custom_call.1']
    #allocation11 [shape = 'u8[24576]{0}', space=vmem, size = 0x6000, scoped, tag = 'output window, operand 0, single buffered']
    %17 = vsyncpa [#allocation7], 0
    %18 = vsyncpa [#allocation10], 0
    %19 = vsyncpa [#allocation8], 0
    // Predicated region
    $region2: #{tpu_custom_call.1} parent=1 // pred_check
      _
    $region3: #{tpu_custom_call.1} parent=1 // pred_check_branch
      %21 = sbr.rel (0) target = $region5
    $region4: #{tpu_custom_call.1} parent=1 // pred_region
      %23 = vsyncadd [#allocation7], 0
      %s24 = sshll.u32 %s0, 4
      %s25 = int_to_ptr.hbm [resolvable:$true] %s24
      %s26 = sshll.u32 [#allocation6], 4
      %s27 = int_to_ptr.vmem [resolvable:$true] %s26
      %32 = dma.hbm_to_vmem [thread:$0]  %s25, 1536, %s27, [#allocation7], 384, 384, 24
    $region5: #{tpu_custom_call.1} parent=1 // pred_fallthru
      _
    // Predicated region
    $region6: #{tpu_custom_call.1} parent=1 // pred_check
      _
    $region7: #{tpu_custom_call.1} parent=1 // pred_check_branch
      %34 = sbr.rel (0) target = $region9
    $region8: #{tpu_custom_call.1} parent=1 // pred_region
      %36 = vsyncadd [#allocation10], 0
      %s37 = sshll.u32 %s1, 4
      %s38 = int_to_ptr.hbm [resolvable:$true] %s37
      %s39 = sshll.u32 [#allocation9], 4
      %s40 = int_to_ptr.vmem [resolvable:$true] %s39
      %45 = dma.hbm_to_vmem [thread:$0]  %s38, 512, %s40, [#allocation10], 128, 128, 8
    $region9: #{tpu_custom_call.1} parent=1 // pred_fallthru
      _
    // Predicated region
    $region10: #{tpu_custom_call.1} parent=1 // pred_check
      _
    $region11: #{tpu_custom_call.1} parent=1 // pred_check_branch
      %47 = sbr.rel (0) target = $region13
    $region12: #{tpu_custom_call.1} parent=1 // pred_region
      _
    $region13: #{tpu_custom_call.1} parent=1 // pred_fallthru
      _
    // Predicated region
    $region14: #{tpu_custom_call.1} parent=1 // pred_check
      _
    $region15: #{tpu_custom_call.1} parent=1 // pred_check_branch
      %49 = sbr.rel (0) target = $region17
    $region16: #{tpu_custom_call.1} parent=1 // pred_region
      _
    $region17: #{tpu_custom_call.1} parent=1 // pred_fallthru
      _
    // Predicated region
    $region18: #{tpu_custom_call.1} parent=1 // pred_check
      _
    $region19: #{tpu_custom_call.1} parent=1 // pred_check_branch
      %51 = sbr.rel (0) target = $region21
    $region20: #{tpu_custom_call.1} parent=1 // pred_region
      _
    $region21: #{tpu_custom_call.1} parent=1 // pred_fallthru
      _
    // Predicated region
    $region22: #{tpu_custom_call.1} parent=1 // pred_check
      _
    $region23: #{tpu_custom_call.1} parent=1 // pred_check_branch
      %53 = sbr.rel (0) target = $region25
    $region24: #{tpu_custom_call.1} parent=1 // pred_region
      _
    $region25: #{tpu_custom_call.1} parent=1 // pred_fallthru
      _
    // Predicated region
    $region26: #{tpu_custom_call.1} parent=1 // pred_check
      _
    $region27: #{tpu_custom_call.1} parent=1 // pred_check_branch
      %55 = sbr.rel (0) target = $region29
    $region28: #{tpu_custom_call.1} parent=1 // pred_region
      _
    $region29: #{tpu_custom_call.1} parent=1 // pred_fallthru
      _
    // Predicated region
    $region30: #{tpu_custom_call.1} parent=1 // pred_check
      _
    $region31: #{tpu_custom_call.1} parent=1 // pred_check_branch
      %57 = sbr.rel (0) target = $region33
    $region32: #{tpu_custom_call.1} parent=1 // pred_region
      _
    $region33: #{tpu_custom_call.1} parent=1 // pred_fallthru
      _
    // Predicated region
    $region34: #{tpu_custom_call.1} parent=1 // pred_check
      _
    $region35: #{tpu_custom_call.1} parent=1 // pred_check_branch
      %59 = sbr.rel (0) target = $region37
    $region36: #{tpu_custom_call.1} parent=1 // pred_region
      _
    $region37: #{tpu_custom_call.1} parent=1 // pred_fallthru
      _
    // Predicated region
    $region38: #{tpu_custom_call.1} parent=1 // pred_check
      _
    $region39: #{tpu_custom_call.1} parent=1 // pred_check_branch
      %61 = sbr.rel (0) target = $region41
    $region40: #{tpu_custom_call.1} parent=1 // pred_region
      _
    $region41: #{tpu_custom_call.1} parent=1 // pred_fallthru
      _
    // Predicated region
    $region42: #{tpu_custom_call.1} parent=1 // pred_check
      _
    $region43: #{tpu_custom_call.1} parent=1 // pred_check_branch
      %63 = sbr.rel (0) target = $region45
    $region44: #{tpu_custom_call.1} parent=1 // pred_region
      _
    $region45: #{tpu_custom_call.1} parent=1 // pred_fallthru
      _
    // Predicated region
    $region46: #{tpu_custom_call.1} parent=1 // pred_check
      _
    $region47: #{tpu_custom_call.1} parent=1 // pred_check_branch
      %65 = sbr.rel (0) target = $region49
    $region48: #{tpu_custom_call.1} parent=1 // pred_region
      %67 = dma.done [#allocation7], 1536
    $region49: #{tpu_custom_call.1} parent=1 // pred_fallthru
      _
    // Predicated region
    $region50: #{tpu_custom_call.1} parent=1 // pred_check
      _
    $region51: #{tpu_custom_call.1} parent=1 // pred_check_branch
      %69 = sbr.rel (0) target = $region53
    $region52: #{tpu_custom_call.1} parent=1 // pred_region
      %71 = dma.done [#allocation10], 512
    $region53: #{tpu_custom_call.1} parent=1 // pred_fallthru
      _
    %vm73 = vcmask 150528
    %74 = vst.msk [vmem:[#allocation2] sm:$0xf] %vm73, 0
    %75 = vst.msk [vmem:[#allocation2 + $0xc] sm:$0xf] %vm73, 0
    %76 = vst.msk [vmem:[#allocation2 + $0x18] sm:$0xf] %vm73, 0
    %77 = vst.msk [vmem:[#allocation2 + $0x24] sm:$0xf] %vm73, 0
    %vm78 = vcmask 1043864
    %79 = vst.msk [vmem:[#allocation2 + $0x8] sm:$0xf] %vm78, 0
    %80 = vst.msk [vmem:[#allocation2 + $0x14] sm:$0xf] %vm78, 0
    %81 = vst.msk [vmem:[#allocation2 + $0x20] sm:$0xf] %vm78, 0
    %82 = vst.msk [vmem:[#allocation2 + $0x2c] sm:$0xf] %vm78, 0
    %s83 = scalar_lea.vmem [#allocation2], 48
    %84 = vst.msk [vmem:[%s83] sm:$0xf] %vm73, 0
    %85 = vst.msk [vmem:[%s83 + $0xc] sm:$0xf] %vm73, 0
    %86 = vst.msk [vmem:[%s83 + $0x18] sm:$0xf] %vm73, 0
    %87 = vst.msk [vmem:[%s83 + $0x24] sm:$0xf] %vm73, 0
    %88 = vst.msk [vmem:[%s83 + $0x8] sm:$0xf] %vm78, 0
    %89 = vst.msk [vmem:[%s83 + $0x14] sm:$0xf] %vm78, 0
    %90 = vst.msk [vmem:[%s83 + $0x20] sm:$0xf] %vm78, 0
    %91 = vst.msk [vmem:[%s83 + $0x2c] sm:$0xf] %vm78, 0
    %92 = vst.msk [vmem:[#allocation3] sm:$0xf] %vm73, 0
    %93 = vst.msk [vmem:[#allocation3 + $0xc] sm:$0xf] %vm73, 0
    %94 = vst.msk [vmem:[#allocation3 + $0x18] sm:$0xf] %vm73, 0
    %95 = vst.msk [vmem:[#allocation3 + $0x24] sm:$0xf] %vm73, 0
    %96 = vst.msk [vmem:[#allocation3 + $0x8] sm:$0xf] %vm78, 0
    %97 = vst.msk [vmem:[#allocation3 + $0x14] sm:$0xf] %vm78, 0
    %98 = vst.msk [vmem:[#allocation3 + $0x20] sm:$0xf] %vm78, 0
    %99 = vst.msk [vmem:[#allocation3 + $0x2c] sm:$0xf] %vm78, 0
    %s100 = scalar_lea.vmem [#allocation3], 48
    %101 = vst.msk [vmem:[%s100] sm:$0xf] %vm73, 0
    %102 = vst.msk [vmem:[%s100 + $0xc] sm:$0xf] %vm73, 0
    %103 = vst.msk [vmem:[%s100 + $0x18] sm:$0xf] %vm73, 0
    %104 = vst.msk [vmem:[%s100 + $0x24] sm:$0xf] %vm73, 0
    %105 = vst.msk [vmem:[%s100 + $0x8] sm:$0xf] %vm78, 0
    %106 = vst.msk [vmem:[%s100 + $0x14] sm:$0xf] %vm78, 0
    %107 = vst.msk [vmem:[%s100 + $0x20] sm:$0xf] %vm78, 0
    %108 = vst.msk [vmem:[%s100 + $0x2c] sm:$0xf] %vm78, 0
    %v109 = vld [vmem:[%s9] sm:$0x1f]
    %s110 = sld [smem:[#allocation5]]
    %v111 = vld [vmem:[#allocation6] sm:$0xff]
    %v112 = vld [vmem:[#allocation6 + $0x8] sm:$0xff]
    %v113 = vld [vmem:[#allocation6 + $0x10] sm:$0xff]
    %v114 = vld [vmem:[#allocation6 + $0x18] sm:$0xff]
    %v115 = vld [vmem:[#allocation6 + $0x20] sm:$0xff]
    %v116 = vld [vmem:[#allocation6 + $0x28] sm:$0xff]
    %v117 = vpack.c.bf16 %v112, %v111
    %v118 = vpack.c.bf16 %v113, %v113
    %v119 = vpack.c.bf16 %v115, %v114
    %v120 = vpack.c.bf16 %v116, %v116
    %121 = vst [vmem:[#allocation4] sm:$0xff] %v117
    %vm122 = vcmask 257024
    %123 = vst.msk [vmem:[#allocation4 + $0x8] sm:$0xf] %vm122, %v118
    %124 = vst [vmem:[#allocation4 + $0x14] sm:$0xff] %v119
    %125 = vst.msk [vmem:[#allocation4 + $0x1c] sm:$0xf] %vm122, %v120
    %s126 = scalar_lea.vmem [#allocation6], 48
    %v127 = vld [vmem:[%s126] sm:$0xff]
    %v128 = vld [vmem:[%s126 + $0x8] sm:$0xff]
    %v129 = vld [vmem:[%s126 + $0x10] sm:$0xff]
    %v130 = vld [vmem:[%s126 + $0x18] sm:$0xff]
    %v131 = vld [vmem:[%s126 + $0x20] sm:$0xff]
    %v132 = vld [vmem:[%s126 + $0x28] sm:$0xff]
    %v133 = vpack.c.bf16 %v128, %v127
    %v134 = vpack.c.bf16 %v129, %v129
    %v135 = vpack.c.bf16 %v131, %v130
    %v136 = vpack.c.bf16 %v132, %v132
    %141 = vrot.lane.b32.xlu0 %v133, 32
    %v142 = vpop.permute.xlu0 %141
    %143 = vrot.lane.b32.xlu0 %v134, 32
    %v144 = vpop.permute.xlu0 %143
    %145 = vrot.lane.b32.xlu0 %v135, 32
    %v146 = vpop.permute.xlu0 %145
    %147 = vrot.lane.b32.xlu0 %v136, 32
    %v148 = vpop.permute.xlu0 %147
    %v149 = vrot.slane %v142, 4
    %v150 = vrot.slane %v146, 4
    %vm151 = vcmask 261120
    %v152 = vsel %vm151, %v149, %v142
    %v153 = vsel %vm151, %v149, %v144
    %v154 = vsel %vm151, %v150, %v146
    %v155 = vsel %vm151, %v150, %v148
    %vm160 = vcmask 1043712
    %vm161 = vcmask 1047556
    %vm162 = vmor %vm161, %vm160
    %163 = vst.msk [vmem:[#allocation4 + $0x8] sm:$0xff] %vm162, %v152
    %vm164 = vcmask 519168
    %165 = vst.msk [vmem:[#allocation4 + $0x10] sm:$0xf] %vm164, %v153
    %166 = vst.msk [vmem:[#allocation4 + $0x1c] sm:$0xff] %vm162, %v154
    %167 = vst.msk [vmem:[#allocation4 + $0x24] sm:$0xf] %vm164, %v155
    %v168 = vld [vmem:[#allocation6] sm:$0xff]
    %v169 = vld [vmem:[#allocation6 + $0x8] sm:$0xff]
    %v170 = vld [vmem:[#allocation6 + $0x10] sm:$0xff]
    %v171 = vld [vmem:[#allocation6 + $0x18] sm:$0xff]
    %v172 = vld [vmem:[#allocation6 + $0x20] sm:$0xff]
    %v173 = vld [vmem:[#allocation6 + $0x28] sm:$0xff]
    %v174 = vpack.c.bf16 %v169, %v168
    %v175 = vpack.c.bf16 %v170, %v170
    %v176 = vpack.c.bf16 %v172, %v171
    %v177 = vpack.c.bf16 %v173, %v173
    %182 = vrot.lane.b32.xlu0 %v174, 127
    %v183 = vpop.permute.xlu0 %182
    %184 = vrot.lane.b32.xlu0 %v175, 127
    %v185 = vpop.permute.xlu0 %184
    %186 = vrot.lane.b32.xlu0 %v176, 127
    %v187 = vpop.permute.xlu0 %186
    %188 = vrot.lane.b32.xlu0 %v177, 127
    %v189 = vpop.permute.xlu0 %188
    %v190 = vrot.slane %v183, 4
    %v191 = vrot.slane %v185, 4
    %v192 = vrot.slane %v187, 4
    %v193 = vrot.slane %v189, 4
    %vm194 = vcmask 1043456
    %v195 = vsel %vm194, %v190, %v191
    %vm196 = vcmask 1039360
    %v197 = vsel %vm196, %v183, %v195
    %v198 = vsel %vm194, %v192, %v193
    %v199 = vsel %vm196, %v187, %v198
    %204 = vst [vmem:[#allocation4 + $0x28] sm:$0xff] %v197
    %205 = vst.msk [vmem:[#allocation4 + $0x30] sm:$0xf] %vm122, %v185
    %206 = vst [vmem:[#allocation4 + $0x3c] sm:$0xff] %v199
    %207 = vst.msk [vmem:[#allocation4 + $0x44] sm:$0xf] %vm122, %v189
    %v208 = vld [vmem:[%s126] sm:$0xff]
    %v209 = vld [vmem:[%s126 + $0x8] sm:$0xff]
    %v210 = vld [vmem:[%s126 + $0x10] sm:$0xff]
    %v211 = vld [vmem:[%s126 + $0x18] sm:$0xff]
    %v212 = vld [vmem:[%s126 + $0x20] sm:$0xff]
    %v213 = vld [vmem:[%s126 + $0x28] sm:$0xff]
    %v214 = vpack.c.bf16 %v209, %v208
    %v215 = vpack.c.bf16 %v210, %v210
    %v216 = vpack.c.bf16 %v212, %v211
    %v217 = vpack.c.bf16 %v213, %v213
    %222 = vrot.lane.b32.xlu0 %v214, 31
    %v223 = vpop.permute.xlu0 %222
    %224 = vrot.lane.b32.xlu0 %v215, 31
    %v225 = vpop.permute.xlu0 %224
    %226 = vrot.lane.b32.xlu0 %v216, 31
    %v227 = vpop.permute.xlu0 %226
    %228 = vrot.lane.b32.xlu0 %v217, 31
    %v229 = vpop.permute.xlu0 %228
    %v230 = vrot.slane %v223, 4
    %v231 = vrot.slane %v227, 4
    %vm232 = vcmask 252928
    %v233 = vsel %vm232, %v230, %v223
    %v234 = vsel %vm232, %v230, %v225
    %v235 = vsel %vm232, %v231, %v227
    %v236 = vsel %vm232, %v231, %v229
    %241 = vst.msk [vmem:[#allocation4 + $0x30] sm:$0xff] %vm162, %v233
    %242 = vst.msk [vmem:[#allocation4 + $0x38] sm:$0xf] %vm164, %v234
    %243 = vst.msk [vmem:[#allocation4 + $0x44] sm:$0xff] %vm162, %v235
    %244 = vst.msk [vmem:[#allocation4 + $0x4c] sm:$0xf] %vm164, %v236
    %v245 = vld [vmem:[#allocation6] sm:$0xff]
    %v246 = vld [vmem:[#allocation6 + $0x8] sm:$0xff]
    %v247 = vld [vmem:[#allocation6 + $0x10] sm:$0xff]
    %v248 = vld [vmem:[#allocation6 + $0x18] sm:$0xff]
    %v249 = vld [vmem:[#allocation6 + $0x20] sm:$0xff]
    %v250 = vld [vmem:[#allocation6 + $0x28] sm:$0xff]
    %v251 = vpack.c.bf16 %v246, %v245
    %v252 = vpack.c.bf16 %v247, %v247
    %v253 = vpack.c.bf16 %v249, %v248
    %v254 = vpack.c.bf16 %v250, %v250
    %259 = vrot.lane.b32.xlu0 %v251, 126
    %v260 = vpop.permute.xlu0 %259
    %261 = vrot.lane.b32.xlu0 %v252, 126
    %v262 = vpop.permute.xlu0 %261
    %263 = vrot.lane.b32.xlu0 %v253, 126
    %v264 = vpop.permute.xlu0 %263
    %265 = vrot.lane.b32.xlu0 %v254, 126
    %v266 = vpop.permute.xlu0 %265
    %v267 = vrot.slane %v260, 4
    %v268 = vrot.slane %v262, 4
    %v269 = vrot.slane %v264, 4
    %v270 = vrot.slane %v266, 4
    %v271 = vsel %vm194, %v267, %v268
    %vm272 = vcmask 1031168
    %v273 = vsel %vm272, %v260, %v271
    %v274 = vsel %vm194, %v269, %v270
    %v275 = vsel %vm272, %v264, %v274
    %280 = vst [vmem:[#allocation4 + $0x50] sm:$0xff] %v273
    %281 = vst.msk [vmem:[#allocation4 + $0x58] sm:$0xf] %vm122, %v262
    %282 = vst [vmem:[#allocation4 + $0x64] sm:$0xff] %v275
    %283 = vst.msk [vmem:[#allocation4 + $0x6c] sm:$0xf] %vm122, %v266
    %v284 = vld [vmem:[%s126] sm:$0xff]
    %v285 = vld [vmem:[%s126 + $0x8] sm:$0xff]
    %v286 = vld [vmem:[%s126 + $0x10] sm:$0xff]
    %v287 = vld [vmem:[%s126 + $0x18] sm:$0xff]
    %v288 = vld [vmem:[%s126 + $0x20] sm:$0xff]
    %v289 = vld [vmem:[%s126 + $0x28] sm:$0xff]
    %v290 = vpack.c.bf16 %v285, %v284
    %v291 = vpack.c.bf16 %v286, %v286
    %v292 = vpack.c.bf16 %v288, %v287
    %v293 = vpack.c.bf16 %v289, %v289
    %298 = vrot.lane.b32.xlu0 %v290, 30
    %v299 = vpop.permute.xlu0 %298
    %300 = vrot.lane.b32.xlu0 %v291, 30
    %v301 = vpop.permute.xlu0 %300
    %302 = vrot.lane.b32.xlu0 %v292, 30
    %v303 = vpop.permute.xlu0 %302
    %304 = vrot.lane.b32.xlu0 %v293, 30
    %v305 = vpop.permute.xlu0 %304
    %v306 = vrot.slane %v299, 4
    %v307 = vrot.slane %v303, 4
    %vm308 = vcmask 244736
    %v309 = vsel %vm308, %v306, %v299
    %v310 = vsel %vm308, %v306, %v301
    %v311 = vsel %vm308, %v307, %v303
    %v312 = vsel %vm308, %v307, %v305
    %317 = vst.msk [vmem:[#allocation4 + $0x58] sm:$0xff] %vm162, %v309
    %318 = vst.msk [vmem:[#allocation4 + $0x60] sm:$0xf] %vm164, %v310
    %319 = vst.msk [vmem:[#allocation4 + $0x6c] sm:$0xff] %vm162, %v311
    %320 = vst.msk [vmem:[#allocation4 + $0x74] sm:$0xf] %vm164, %v312
    %v321 = vld [vmem:[#allocation6] sm:$0xff]
    %v322 = vld [vmem:[#allocation6 + $0x8] sm:$0xff]
    %v323 = vld [vmem:[#allocation6 + $0x10] sm:$0xff]
    %v324 = vld [vmem:[#allocation6 + $0x18] sm:$0xff]
    %v325 = vld [vmem:[#allocation6 + $0x20] sm:$0xff]
    %v326 = vld [vmem:[#allocation6 + $0x28] sm:$0xff]
    %v327 = vpack.c.bf16 %v322, %v321
    %v328 = vpack.c.bf16 %v323, %v323
    %v329 = vpack.c.bf16 %v325, %v324
    %v330 = vpack.c.bf16 %v326, %v326
    %335 = vrot.lane.b32.xlu0 %v327, 110
    %v336 = vpop.permute.xlu0 %335
    %337 = vrot.lane.b32.xlu0 %v328, 110
    %v338 = vpop.permute.xlu0 %337
    %339 = vrot.lane.b32.xlu0 %v329, 110
    %v340 = vpop.permute.xlu0 %339
    %341 = vrot.lane.b32.xlu0 %v330, 110
    %v342 = vpop.permute.xlu0 %341
    %v343 = vrot.slane %v336, 4
    %v344 = vrot.slane %v338, 4
    %v345 = vrot.slane %v340, 4
    %v346 = vrot.slane %v342, 4
    %v347 = vsel %vm194, %v343, %v344
    %vm348 = vcmask 900096
    %v349 = vsel %vm348, %v336, %v347
    %v350 = vsel %vm194, %v345, %v346
    %v351 = vsel %vm348, %v340, %v350
    %356 = vst [vmem:[#allocation4 + $0x78] sm:$0xff] %v349
    %357 = vst.msk [vmem:[#allocation4 + $0x80] sm:$0xf] %vm122, %v338
    %358 = vst [vmem:[#allocation4 + $0x8c] sm:$0xff] %v351
    %359 = vst.msk [vmem:[#allocation4 + $0x94] sm:$0xf] %vm122, %v342
    %v360 = vld [vmem:[%s126] sm:$0xff]
    %v361 = vld [vmem:[%s126 + $0x8] sm:$0xff]
    %v362 = vld [vmem:[%s126 + $0x10] sm:$0xff]
    %v363 = vld [vmem:[%s126 + $0x18] sm:$0xff]
    %v364 = vld [vmem:[%s126 + $0x20] sm:$0xff]
    %v365 = vld [vmem:[%s126 + $0x28] sm:$0xff]
    %v366 = vpack.c.bf16 %v361, %v360
    %v367 = vpack.c.bf16 %v362, %v362
    %v368 = vpack.c.bf16 %v364, %v363
    %v369 = vpack.c.bf16 %v365, %v365
    %374 = vrot.lane.b32.xlu0 %v366, 14
    %v375 = vpop.permute.xlu0 %374
    %376 = vrot.lane.b32.xlu0 %v367, 14
    %v377 = vpop.permute.xlu0 %376
    %378 = vrot.lane.b32.xlu0 %v368, 14
    %v379 = vpop.permute.xlu0 %378
    %380 = vrot.lane.b32.xlu0 %v369, 14
    %v381 = vpop.permute.xlu0 %380
    %v382 = vrot.slane %v375, 4
    %v383 = vrot.slane %v379, 4
    %vm384 = vcmask 113664
    %v385 = vsel %vm384, %v382, %v375
    %v386 = vsel %vm384, %v382, %v377
    %v387 = vsel %vm384, %v383, %v379
    %v388 = vsel %vm384, %v383, %v381
    %393 = vst.msk [vmem:[#allocation4 + $0x80] sm:$0xff] %vm162, %v385
    %394 = vst.msk [vmem:[#allocation4 + $0x88] sm:$0xf] %vm164, %v386
    %395 = vst.msk [vmem:[#allocation4 + $0x94] sm:$0xff] %vm162, %v387
    %396 = vst.msk [vmem:[#allocation4 + $0x9c] sm:$0xf] %vm164, %v388
    %v397 = vld [vmem:[#allocation6] sm:$0xff]
    %v398 = vld [vmem:[#allocation6 + $0x8] sm:$0xff]
    %v399 = vld [vmem:[#allocation6 + $0x10] sm:$0xff]
    %v400 = vld [vmem:[#allocation6 + $0x18] sm:$0xff]
    %v401 = vld [vmem:[#allocation6 + $0x20] sm:$0xff]
    %v402 = vld [vmem:[#allocation6 + $0x28] sm:$0xff]
    %v403 = vpack.c.bf16 %v398, %v397
    %v404 = vpack.c.bf16 %v399, %v399
    %v405 = vpack.c.bf16 %v401, %v400
    %v406 = vpack.c.bf16 %v402, %v402
    %411 = vrot.lane.b32.xlu0 %v403, 109
    %v412 = vpop.permute.xlu0 %411
    %413 = vrot.lane.b32.xlu0 %v404, 109
    %v414 = vpop.permute.xlu0 %413
    %415 = vrot.lane.b32.xlu0 %v405, 109
    %v416 = vpop.permute.xlu0 %415
    %417 = vrot.lane.b32.xlu0 %v406, 109
    %v418 = vpop.permute.xlu0 %417
    %v419 = vrot.slane %v412, 4
    %v420 = vrot.slane %v414, 4
    %v421 = vrot.slane %v416, 4
    %v422 = vrot.slane %v418, 4
    %v423 = vsel %vm194, %v419, %v420
    %vm424 = vcmask 891904
    %v425 = vsel %vm424, %v412, %v423
    %v426 = vsel %vm194, %v421, %v422
    %v427 = vsel %vm424, %v416, %v426
    %432 = vst [vmem:[#allocation4 + $0xa0] sm:$0xff] %v425
    %433 = vst.msk [vmem:[#allocation4 + $0xa8] sm:$0xf] %vm122, %v414
    %434 = vst [vmem:[#allocation4 + $0xb4] sm:$0xff] %v427
    %435 = vst.msk [vmem:[#allocation4 + $0xbc] sm:$0xf] %vm122, %v418
    %v436 = vld [vmem:[%s126] sm:$0xff]
    %v437 = vld [vmem:[%s126 + $0x8] sm:$0xff]
    %v438 = vld [vmem:[%s126 + $0x10] sm:$0xff]
    %v439 = vld [vmem:[%s126 + $0x18] sm:$0xff]
    %v440 = vld [vmem:[%s126 + $0x20] sm:$0xff]
    %v441 = vld [vmem:[%s126 + $0x28] sm:$0xff]
    %v442 = vpack.c.bf16 %v437, %v436
    %v443 = vpack.c.bf16 %v438, %v438
    %v444 = vpack.c.bf16 %v440, %v439
    %v445 = vpack.c.bf16 %v441, %v441
    %450 = vrot.lane.b32.xlu0 %v442, 13
    %v451 = vpop.permute.xlu0 %450
    %452 = vrot.lane.b32.xlu0 %v443, 13
    %v453 = vpop.permute.xlu0 %452
    %454 = vrot.lane.b32.xlu0 %v444, 13
    %v455 = vpop.permute.xlu0 %454
    %456 = vrot.lane.b32.xlu0 %v445, 13
    %v457 = vpop.permute.xlu0 %456
    %v458 = vrot.slane %v451, 4
    %v459 = vrot.slane %v455, 4
    %vm460 = vcmask 105472
    %v461 = vsel %vm460, %v458, %v451
    %v462 = vsel %vm460, %v458, %v453
    %v463 = vsel %vm460, %v459, %v455
    %v464 = vsel %vm460, %v459, %v457
    %469 = vst.msk [vmem:[#allocation4 + $0xa8] sm:$0xff] %vm162, %v461
    %470 = vst.msk [vmem:[#allocation4 + $0xb0] sm:$0xf] %vm164, %v462
    %471 = vst.msk [vmem:[#allocation4 + $0xbc] sm:$0xff] %vm162, %v463
    %472 = vst.msk [vmem:[#allocation4 + $0xc4] sm:$0xf] %vm164, %v464
    %v473 = vld [vmem:[#allocation6] sm:$0xff]
    %v474 = vld [vmem:[#allocation6 + $0x8] sm:$0xff]
    %v475 = vld [vmem:[#allocation6 + $0x10] sm:$0xff]
    %v476 = vld [vmem:[#allocation6 + $0x18] sm:$0xff]
    %v477 = vld [vmem:[#allocation6 + $0x20] sm:$0xff]
    %v478 = vld [vmem:[#allocation6 + $0x28] sm:$0xff]
    %v479 = vpack.c.bf16 %v474, %v473
    %v480 = vpack.c.bf16 %v475, %v475
    %v481 = vpack.c.bf16 %v477, %v476
    %v482 = vpack.c.bf16 %v478, %v478
    %487 = vrot.lane.b32.xlu0 %v479, 108
    %v488 = vpop.permute.xlu0 %487
    %489 = vrot.lane.b32.xlu0 %v480, 108
    %v490 = vpop.permute.xlu0 %489
    %491 = vrot.lane.b32.xlu0 %v481, 108
    %v492 = vpop.permute.xlu0 %491
    %493 = vrot.lane.b32.xlu0 %v482, 108
    %v494 = vpop.permute.xlu0 %493
    %v495 = vrot.slane %v488, 4
    %v496 = vrot.slane %v490, 4
    %v497 = vrot.slane %v492, 4
    %v498 = vrot.slane %v494, 4
    %v499 = vsel %vm194, %v495, %v496
    %vm500 = vcmask 883712
    %v501 = vsel %vm500, %v488, %v499
    %v502 = vsel %vm194, %v497, %v498
    %v503 = vsel %vm500, %v492, %v502
    %508 = vst [vmem:[#allocation4 + $0xc8] sm:$0xff] %v501
    %509 = vst.msk [vmem:[#allocation4 + $0xd0] sm:$0xf] %vm122, %v490
    %510 = vst [vmem:[#allocation4 + $0xdc] sm:$0xff] %v503
    %511 = vst.msk [vmem:[#allocation4 + $0xe4] sm:$0xf] %vm122, %v494
    %v512 = vld [vmem:[%s126] sm:$0xff]
    %v513 = vld [vmem:[%s126 + $0x8] sm:$0xff]
    %v514 = vld [vmem:[%s126 + $0x10] sm:$0xff]
    %v515 = vld [vmem:[%s126 + $0x18] sm:$0xff]
    %v516 = vld [vmem:[%s126 + $0x20] sm:$0xff]
    %v517 = vld [vmem:[%s126 + $0x28] sm:$0xff]
    %v518 = vpack.c.bf16 %v513, %v512
    %v519 = vpack.c.bf16 %v514, %v514
    %v520 = vpack.c.bf16 %v516, %v515
    %v521 = vpack.c.bf16 %v517, %v517
    %526 = vrot.lane.b32.xlu0 %v518, 12
    %v527 = vpop.permute.xlu0 %526
    %528 = vrot.lane.b32.xlu0 %v519, 12
    %v529 = vpop.permute.xlu0 %528
    %530 = vrot.lane.b32.xlu0 %v520, 12
    %v531 = vpop.permute.xlu0 %530
    %532 = vrot.lane.b32.xlu0 %v521, 12
    %v533 = vpop.permute.xlu0 %532
    %v534 = vrot.slane %v527, 4
    %v535 = vrot.slane %v531, 4
    %vm536 = vcmask 97280
    %v537 = vsel %vm536, %v534, %v527
    %v538 = vsel %vm536, %v534, %v529
    %v539 = vsel %vm536, %v535, %v531
    %v540 = vsel %vm536, %v535, %v533
    %545 = vst.msk [vmem:[#allocation4 + $0xd0] sm:$0xff] %vm162, %v537
    %546 = vst.msk [vmem:[#allocation4 + $0xd8] sm:$0xf] %vm164, %v538
    %547 = vst.msk [vmem:[#allocation4 + $0xe4] sm:$0xff] %vm162, %v539
    %548 = vst.msk [vmem:[#allocation4 + $0xec] sm:$0xf] %vm164, %v540
    %v549 = vld [vmem:[#allocation6] sm:$0xff]
    %v550 = vld [vmem:[#allocation6 + $0x8] sm:$0xff]
    %v551 = vld [vmem:[#allocation6 + $0x10] sm:$0xff]
    %v552 = vld [vmem:[#allocation6 + $0x18] sm:$0xff]
    %v553 = vld [vmem:[#allocation6 + $0x20] sm:$0xff]
    %v554 = vld [vmem:[#allocation6 + $0x28] sm:$0xff]
    %v555 = vpack.c.bf16 %v550, %v549
    %v556 = vpack.c.bf16 %v551, %v551
    %v557 = vpack.c.bf16 %v553, %v552
    %v558 = vpack.c.bf16 %v554, %v554
    %563 = vrot.lane.b32.xlu0 %v555, 92
    %v564 = vpop.permute.xlu0 %563
    %565 = vrot.lane.b32.xlu0 %v556, 92
    %v566 = vpop.permute.xlu0 %565
    %567 = vrot.lane.b32.xlu0 %v557, 92
    %v568 = vpop.permute.xlu0 %567
    %569 = vrot.lane.b32.xlu0 %v558, 92
    %v570 = vpop.permute.xlu0 %569
    %v571 = vrot.slane %v564, 4
    %v572 = vrot.slane %v566, 4
    %v573 = vrot.slane %v568, 4
    %v574 = vrot.slane %v570, 4
    %v575 = vsel %vm194, %v571, %v572
    %vm576 = vcmask 752640
    %v577 = vsel %vm576, %v564, %v575
    %v578 = vsel %vm194, %v573, %v574
    %v579 = vsel %vm576, %v568, %v578
    %584 = vst [vmem:[#allocation4 + $0xf0] sm:$0xff] %v577
    %585 = vst.msk [vmem:[#allocation4 + $0xf8] sm:$0xf] %vm122, %v566
    %586 = vst [vmem:[#allocation4 + $0x104] sm:$0xff] %v579
    %587 = vst.msk [vmem:[#allocation4 + $0x10c] sm:$0xf] %vm122, %v570
    %v588 = vld [vmem:[%s126] sm:$0xff]
    %v589 = vld [vmem:[%s126 + $0x8] sm:$0xff]
    %v590 = vld [vmem:[%s126 + $0x10] sm:$0xff]
    %v591 = vld [vmem:[%s126 + $0x18] sm:$0xff]
    %v592 = vld [vmem:[%s126 + $0x20] sm:$0xff]
    %v593 = vld [vmem:[%s126 + $0x28] sm:$0xff]
    %v594 = vpack.c.bf16 %v589, %v588
    %v595 = vpack.c.bf16 %v590, %v590
    %v596 = vpack.c.bf16 %v592, %v591
    %v597 = vpack.c.bf16 %v593, %v593
    %602 = vrot.lane.b32.xlu0 %v594, 124
    %v603 = vpop.permute.xlu0 %602
    %604 = vrot.lane.b32.xlu0 %v595, 124
    %v605 = vpop.permute.xlu0 %604
    %606 = vrot.lane.b32.xlu0 %v596, 124
    %v607 = vpop.permute.xlu0 %606
    %608 = vrot.lane.b32.xlu0 %v597, 124
    %v609 = vpop.permute.xlu0 %608
    %v610 = vrot.slane %v603, 4
    %v611 = vrot.slane %v605, 4
    %v612 = vrot.slane %v607, 4
    %v613 = vrot.slane %v609, 4
    %v614 = vsel %vm194, %v610, %v611
    %vm615 = vcmask 1014784
    %v616 = vsel %vm615, %v603, %v614
    %v617 = vsel %vm194, %v612, %v613
    %v618 = vsel %vm615, %v607, %v617
    %623 = vst.msk [vmem:[#allocation4 + $0xf8] sm:$0xff] %vm162, %v616
    %624 = vst.msk [vmem:[#allocation4 + $0x100] sm:$0xf] %vm164, %v605
    %625 = vst.msk [vmem:[#allocation4 + $0x10c] sm:$0xff] %vm162, %v618
    %626 = vst.msk [vmem:[#allocation4 + $0x114] sm:$0xf] %vm164, %v609
    %v627 = vld [vmem:[#allocation6] sm:$0xff]
    %v628 = vld [vmem:[#allocation6 + $0x8] sm:$0xff]
    %v629 = vld [vmem:[#allocation6 + $0x10] sm:$0xff]
    %v630 = vld [vmem:[#allocation6 + $0x18] sm:$0xff]
    %v631 = vld [vmem:[#allocation6 + $0x20] sm:$0xff]
    %v632 = vld [vmem:[#allocation6 + $0x28] sm:$0xff]
    %v633 = vpack.c.bf16 %v628, %v627
    %v634 = vpack.c.bf16 %v629, %v629
    %v635 = vpack.c.bf16 %v631, %v630
    %v636 = vpack.c.bf16 %v632, %v632
    %641 = vrot.lane.b32.xlu0 %v633, 91
    %v642 = vpop.permute.xlu0 %641
    %643 = vrot.lane.b32.xlu0 %v634, 91
    %v644 = vpop.permute.xlu0 %643
    %645 = vrot.lane.b32.xlu0 %v635, 91
    %v646 = vpop.permute.xlu0 %645
    %647 = vrot.lane.b32.xlu0 %v636, 91
    %v648 = vpop.permute.xlu0 %647
    %v649 = vrot.slane %v642, 4
    %v650 = vrot.slane %v644, 4
    %v651 = vrot.slane %v646, 4
    %v652 = vrot.slane %v648, 4
    %v653 = vsel %vm194, %v649, %v650
    %vm654 = vcmask 744448
    %v655 = vsel %vm654, %v642, %v653
    %v656 = vsel %vm194, %v651, %v652
    %v657 = vsel %vm654, %v646, %v656
    %662 = vst [vmem:[#allocation4 + $0x118] sm:$0xff] %v655
    %663 = vst.msk [vmem:[#allocation4 + $0x120] sm:$0xf] %vm122, %v644
    %664 = vst [vmem:[#allocation4 + $0x12c] sm:$0xff] %v657
    %665 = vst.msk [vmem:[#allocation4 + $0x134] sm:$0xf] %vm122, %v648
    %v666 = vld [vmem:[%s126] sm:$0xff]
    %v667 = vld [vmem:[%s126 + $0x8] sm:$0xff]
    %v668 = vld [vmem:[%s126 + $0x10] sm:$0xff]
    %v669 = vld [vmem:[%s126 + $0x18] sm:$0xff]
    %v670 = vld [vmem:[%s126 + $0x20] sm:$0xff]
    %v671 = vld [vmem:[%s126 + $0x28] sm:$0xff]
    %v672 = vpack.c.bf16 %v667, %v666
    %v673 = vpack.c.bf16 %v668, %v668
    %v674 = vpack.c.bf16 %v670, %v669
    %v675 = vpack.c.bf16 %v671, %v671
    %680 = vrot.lane.b32.xlu0 %v672, 123
    %v681 = vpop.permute.xlu0 %680
    %682 = vrot.lane.b32.xlu0 %v673, 123
    %v683 = vpop.permute.xlu0 %682
    %684 = vrot.lane.b32.xlu0 %v674, 123
    %v685 = vpop.permute.xlu0 %684
    %686 = vrot.lane.b32.xlu0 %v675, 123
    %v687 = vpop.permute.xlu0 %686
    %v688 = vrot.slane %v681, 4
    %v689 = vrot.slane %v683, 4
    %v690 = vrot.slane %v685, 4
    %v691 = vrot.slane %v687, 4
    %v692 = vsel %vm194, %v688, %v689
    %vm693 = vcmask 1006592
    %v694 = vsel %vm693, %v681, %v692
    %v695 = vsel %vm194, %v690, %v691
    %v696 = vsel %vm693, %v685, %v695
    %701 = vst.msk [vmem:[#allocation4 + $0x120] sm:$0xff] %vm162, %v694
    %702 = vst.msk [vmem:[#allocation4 + $0x128] sm:$0xf] %vm164, %v683
    %703 = vst.msk [vmem:[#allocation4 + $0x134] sm:$0xff] %vm162, %v696
    %704 = vst.msk [vmem:[#allocation4 + $0x13c] sm:$0xf] %vm164, %v687
    %v705 = vld [vmem:[#allocation6] sm:$0xff]
    %v706 = vld [vmem:[#allocation6 + $0x8] sm:$0xff]
    %v707 = vld [vmem:[#allocation6 + $0x10] sm:$0xff]
    %v708 = vld [vmem:[#allocation6 + $0x18] sm:$0xff]
    %v709 = vld [vmem:[#allocation6 + $0x20] sm:$0xff]
    %v710 = vld [vmem:[#allocation6 + $0x28] sm:$0xff]
    %v711 = vpack.c.bf16 %v706, %v705
    %v712 = vpack.c.bf16 %v707, %v707
    %v713 = vpack.c.bf16 %v709, %v708
    %v714 = vpack.c.bf16 %v710, %v710
    %719 = vrot.lane.b32.xlu0 %v711, 90
    %v720 = vpop.permute.xlu0 %719
    %721 = vrot.lane.b32.xlu0 %v712, 90
    %v722 = vpop.permute.xlu0 %721
    %723 = vrot.lane.b32.xlu0 %v713, 90
    %v724 = vpop.permute.xlu0 %723
    %725 = vrot.lane.b32.xlu0 %v714, 90
    %v726 = vpop.permute.xlu0 %725
    %v727 = vrot.slane %v720, 4
    %v728 = vrot.slane %v722, 4
    %v729 = vrot.slane %v724, 4
    %v730 = vrot.slane %v726, 4
    %v731 = vsel %vm194, %v727, %v728
    %vm732 = vcmask 736256
    %v733 = vsel %vm732, %v720, %v731
    %v734 = vsel %vm194, %v729, %v730
    %v735 = vsel %vm732, %v724, %v734
    %740 = vst [vmem:[#allocation4 + $0x140] sm:$0xff] %v733
    %741 = vst.msk [vmem:[#allocation4 + $0x148] sm:$0xf] %vm122, %v722
    %742 = vst [vmem:[#allocation4 + $0x154] sm:$0xff] %v735
    %743 = vst.msk [vmem:[#allocation4 + $0x15c] sm:$0xf] %vm122, %v726
    %v744 = vld [vmem:[%s126] sm:$0xff]
    %v745 = vld [vmem:[%s126 + $0x8] sm:$0xff]
    %v746 = vld [vmem:[%s126 + $0x10] sm:$0xff]
    %v747 = vld [vmem:[%s126 + $0x18] sm:$0xff]
    %v748 = vld [vmem:[%s126 + $0x20] sm:$0xff]
    %v749 = vld [vmem:[%s126 + $0x28] sm:$0xff]
    %v750 = vpack.c.bf16 %v745, %v744
    %v751 = vpack.c.bf16 %v746, %v746
    %v752 = vpack.c.bf16 %v748, %v747
    %v753 = vpack.c.bf16 %v749, %v749
    %758 = vrot.lane.b32.xlu0 %v750, 122
    %v759 = vpop.permute.xlu0 %758
    %760 = vrot.lane.b32.xlu0 %v751, 122
    %v761 = vpop.permute.xlu0 %760
    %762 = vrot.lane.b32.xlu0 %v752, 122
    %v763 = vpop.permute.xlu0 %762
    %764 = vrot.lane.b32.xlu0 %v753, 122
    %v765 = vpop.permute.xlu0 %764
    %v766 = vrot.slane %v759, 4
    %v767 = vrot.slane %v761, 4
    %v768 = vrot.slane %v763, 4
    %v769 = vrot.slane %v765, 4
    %v770 = vsel %vm194, %v766, %v767
    %vm771 = vcmask 998400
    %v772 = vsel %vm771, %v759, %v770
    %v773 = vsel %vm194, %v768, %v769
    %v774 = vsel %vm771, %v763, %v773
    %779 = vst.msk [vmem:[#allocation4 + $0x148] sm:$0xff] %vm162, %v772
    %780 = vst.msk [vmem:[#allocation4 + $0x150] sm:$0xf] %vm164, %v761
    %781 = vst.msk [vmem:[#allocation4 + $0x15c] sm:$0xff] %vm162, %v774
    %782 = vst.msk [vmem:[#allocation4 + $0x164] sm:$0xf] %vm164, %v765
    %v783 = vld [vmem:[#allocation4] sm:$0xff]
    %v784 = vld [vmem:[#allocation4 + $0x8] sm:$0xff]
    %v785 = vld [vmem:[#allocation4 + $0x10] sm:$0xf]
    %v786 = vld [vmem:[#allocation4 + $0x14] sm:$0xff]
    %v787 = vld [vmem:[#allocation4 + $0x1c] sm:$0xff]
    %v788 = vld [vmem:[#allocation4 + $0x24] sm:$0xf]
    %v789 = vld [vmem:[#allocation4 + $0x28] sm:$0xff]
    %v790 = vld [vmem:[#allocation4 + $0x30] sm:$0xff]
    %v791 = vld [vmem:[#allocation4 + $0x38] sm:$0xf]
    %v792 = vld [vmem:[#allocation4 + $0x3c] sm:$0xff]
    %v793 = vld [vmem:[#allocation4 + $0x44] sm:$0xff]
    %v794 = vld [vmem:[#allocation4 + $0x4c] sm:$0xf]
    %v795 = vld [vmem:[#allocation4 + $0x50] sm:$0xff]
    %v796 = vld [vmem:[#allocation4 + $0x58] sm:$0xff]
    %v797 = vld [vmem:[#allocation4 + $0x60] sm:$0xf]
    %v798 = vld [vmem:[#allocation4 + $0x64] sm:$0xff]
    %v799 = vld [vmem:[#allocation4 + $0x6c] sm:$0xff]
    %v800 = vld [vmem:[#allocation4 + $0x74] sm:$0xf]
    %v801 = vld [vmem:[#allocation4 + $0x78] sm:$0xff]
    %v802 = vld [vmem:[#allocation4 + $0x80] sm:$0xff]
    %v803 = vld [vmem:[#allocation4 + $0x88] sm:$0xf]
    %v804 = vld [vmem:[#allocation4 + $0x8c] sm:$0xff]
    %v805 = vld [vmem:[#allocation4 + $0x94] sm:$0xff]
    %v806 = vld [vmem:[#allocation4 + $0x9c] sm:$0xf]
    %v807 = vld [vmem:[#allocation4 + $0xa0] sm:$0xff]
    %v808 = vld [vmem:[#allocation4 + $0xa8] sm:$0xff]
    %v809 = vld [vmem:[#allocation4 + $0xb0] sm:$0xf]
    %v810 = vld [vmem:[#allocation4 + $0xb4] sm:$0xff]
    %v811 = vld [vmem:[#allocation4 + $0xbc] sm:$0xff]
    %v812 = vld [vmem:[#allocation4 + $0xc4] sm:$0xf]
    %v813 = vld [vmem:[#allocation4 + $0xc8] sm:$0xff]
    %v814 = vld [vmem:[#allocation4 + $0xd0] sm:$0xff]
    %v815 = vld [vmem:[#allocation4 + $0xd8] sm:$0xf]
    %v816 = vld [vmem:[#allocation4 + $0xdc] sm:$0xff]
    %v817 = vld [vmem:[#allocation4 + $0xe4] sm:$0xff]
    %v818 = vld [vmem:[#allocation4 + $0xec] sm:$0xf]
    %v819 = vld [vmem:[#allocation4 + $0xf0] sm:$0xff]
    %v820 = vld [vmem:[#allocation4 + $0xf8] sm:$0xff]
    %v821 = vld [vmem:[#allocation4 + $0x100] sm:$0xf]
    %v822 = vld [vmem:[#allocation4 + $0x104] sm:$0xff]
    %v823 = vld [vmem:[#allocation4 + $0x10c] sm:$0xff]
    %v824 = vld [vmem:[#allocation4 + $0x114] sm:$0xf]
    %v825 = vld [vmem:[#allocation4 + $0x118] sm:$0xff]
    %v826 = vld [vmem:[#allocation4 + $0x120] sm:$0xff]
    %v827 = vld [vmem:[#allocation4 + $0x128] sm:$0xf]
    %v828 = vld [vmem:[#allocation4 + $0x12c] sm:$0xff]
    %v829 = vld [vmem:[#allocation4 + $0x134] sm:$0xff]
    %v830 = vld [vmem:[#allocation4 + $0x13c] sm:$0xf]
    %v831 = vld [vmem:[#allocation4 + $0x140] sm:$0xff]
    %v832 = vld [vmem:[#allocation4 + $0x148] sm:$0xff]
    %v833 = vld [vmem:[#allocation4 + $0x150] sm:$0xf]
    %v834 = vld [vmem:[#allocation4 + $0x154] sm:$0xff]
    %v835 = vld [vmem:[#allocation4 + $0x15c] sm:$0xff]
    %v836 = vld [vmem:[#allocation4 + $0x164] sm:$0xf]
    %v837 = vld [vmem:[#allocation9] sm:$0xff]
    %v838 = vld [vmem:[#allocation9 + $0x8] sm:$0xff]
    %v839 = vld [vmem:[#allocation9 + $0x10] sm:$0xff]
    %v840 = vld [vmem:[#allocation9 + $0x18] sm:$0xff]
    %v841 = vld [vmem:[%s2] sm:$0xff]
    %v842 = vld [vmem:[%s2 + $0x8] sm:$0xff]
    %v843 = vld [vmem:[%s2 + $0x10] sm:$0xff]
    %v844 = vld [vmem:[%s2 + $0x18] sm:$0xff]
    %846 = vset.pattern.permute.xlu0 0
    %847 = vperm.xlu0 %846, %v841
    %v848 = vpop.permute.xlu0 %847
    %851 = vset.pattern.permute.xlu0 0
    %852 = vperm.xlu0 %851, %v842
    %v853 = vpop.permute.xlu0 %852
    %856 = vset.pattern.permute.xlu0 0
    %857 = vperm.xlu0 %856, %v843
    %v858 = vpop.permute.xlu0 %857
    %861 = vset.pattern.permute.xlu0 0
    %862 = vperm.xlu0 %861, %v844
    %v863 = vpop.permute.xlu0 %862
    %v869 = vunpack.c.l.b16 %v837
    %v870 = vunpack.c.h.b16 %v837
    %v871 = vunpack.c.l.b16 %v838
    %v872 = vunpack.c.h.b16 %v838
    %v873 = vunpack.c.l.b16 %v839
    %v874 = vunpack.c.h.b16 %v839
    %v875 = vunpack.c.l.b16 %v840
    %v876 = vunpack.c.h.b16 %v840
    %v877 = vpack.c.b16 %v871, %v869
    %v878 = vpack.c.b16 %v872, %v870
    %v879 = vpack.c.b16 %v875, %v873
    %v880 = vpack.c.b16 %v876, %v874
    %v937 = vunpack.c.l.b16 %v783
    %v938 = vunpack.c.h.b16 %v783
    %v939 = vunpack.c.l.b16 %v784
    %v940 = vunpack.c.h.b16 %v784
    %v941 = vunpack.c.l.b16 %v785
    %v942 = vunpack.c.l.b16 %v786
    %v943 = vunpack.c.h.b16 %v786
    %v944 = vunpack.c.l.b16 %v787
    %v945 = vunpack.c.h.b16 %v787
    %v946 = vunpack.c.l.b16 %v788
    %v947 = vunpack.c.l.b16 %v789
    %v948 = vunpack.c.h.b16 %v789
    %v949 = vunpack.c.l.b16 %v790
    %v950 = vunpack.c.h.b16 %v790
    %v951 = vunpack.c.l.b16 %v791
    %v952 = vunpack.c.l.b16 %v792
    %v953 = vunpack.c.h.b16 %v792
    %v954 = vunpack.c.l.b16 %v793
    %v955 = vunpack.c.h.b16 %v793
    %v956 = vunpack.c.l.b16 %v794
    %v957 = vunpack.c.l.b16 %v795
    %v958 = vunpack.c.h.b16 %v795
    %v959 = vunpack.c.l.b16 %v796
    %v960 = vunpack.c.h.b16 %v796
    %v961 = vunpack.c.l.b16 %v797
    %v962 = vunpack.c.l.b16 %v798
    %v963 = vunpack.c.h.b16 %v798
    %v964 = vunpack.c.l.b16 %v799
    %v965 = vunpack.c.h.b16 %v799
    %v966 = vunpack.c.l.b16 %v800
    %v967 = vunpack.c.l.b16 %v801
    %v968 = vunpack.c.h.b16 %v801
    %v969 = vunpack.c.l.b16 %v802
    %v970 = vunpack.c.h.b16 %v802
    %v971 = vunpack.c.l.b16 %v803
    %v972 = vunpack.c.l.b16 %v804
    %v973 = vunpack.c.h.b16 %v804
    %v974 = vunpack.c.l.b16 %v805
    %v975 = vunpack.c.h.b16 %v805
    %v976 = vunpack.c.l.b16 %v806
    %v977 = vunpack.c.l.b16 %v807
    %v978 = vunpack.c.h.b16 %v807
    %v979 = vunpack.c.l.b16 %v808
    %v980 = vunpack.c.h.b16 %v808
    %v981 = vunpack.c.l.b16 %v809
    %v982 = vunpack.c.l.b16 %v810
    %v983 = vunpack.c.h.b16 %v810
    %v984 = vunpack.c.l.b16 %v811
    %v985 = vunpack.c.h.b16 %v811
    %v986 = vunpack.c.l.b16 %v812
    %v987 = vunpack.c.l.b16 %v813
    %v988 = vunpack.c.h.b16 %v813
    %v989 = vunpack.c.l.b16 %v814
    %v990 = vunpack.c.h.b16 %v814
    %v991 = vunpack.c.l.b16 %v815
    %v992 = vunpack.c.l.b16 %v816
    %v993 = vunpack.c.h.b16 %v816
    %v994 = vunpack.c.l.b16 %v817
    %v995 = vunpack.c.h.b16 %v817
    %v996 = vunpack.c.l.b16 %v818
    %v997 = vunpack.c.l.b16 %v819
    %v998 = vunpack.c.h.b16 %v819
    %v999 = vunpack.c.l.b16 %v820
    %v1000 = vunpack.c.h.b16 %v820
    %v1001 = vunpack.c.l.b16 %v821
    %v1002 = vunpack.c.l.b16 %v822
    %v1003 = vunpack.c.h.b16 %v822
    %v1004 = vunpack.c.l.b16 %v823
    %v1005 = vunpack.c.h.b16 %v823
    %v1006 = vunpack.c.l.b16 %v824
    %v1007 = vunpack.c.l.b16 %v825
    %v1008 = vunpack.c.h.b16 %v825
    %v1009 = vunpack.c.l.b16 %v826
    %v1010 = vunpack.c.h.b16 %v826
    %v1011 = vunpack.c.l.b16 %v827
    %v1012 = vunpack.c.l.b16 %v828
    %v1013 = vunpack.c.h.b16 %v828
    %v1014 = vunpack.c.l.b16 %v829
    %v1015 = vunpack.c.h.b16 %v829
    %v1016 = vunpack.c.l.b16 %v830
    %v1017 = vunpack.c.l.b16 %v831
    %v1018 = vunpack.c.h.b16 %v831
    %v1019 = vunpack.c.l.b16 %v832
    %v1020 = vunpack.c.h.b16 %v832
    %v1021 = vunpack.c.l.b16 %v833
    %v1022 = vunpack.c.l.b16 %v834
    %v1023 = vunpack.c.h.b16 %v834
    %v1024 = vunpack.c.l.b16 %v835
    %v1025 = vunpack.c.h.b16 %v835
    %v1026 = vunpack.c.l.b16 %v836
    %v1027 = vpack.c.b16 %v942, %v937
    %v1028 = vpack.c.b16 %v943, %v938
    %v1029 = vpack.c.b16 %v944, %v939
    %v1030 = vpack.c.b16 %v945, %v940
    %v1031 = vpack.c.b16 %v946, %v941
    %v1032 = vpack.c.b16 %v952, %v947
    %v1033 = vpack.c.b16 %v953, %v948
    %v1034 = vpack.c.b16 %v954, %v949
    %v1035 = vpack.c.b16 %v955, %v950
    %v1036 = vpack.c.b16 %v956, %v951
    %v1037 = vpack.c.b16 %v962, %v957
    %v1038 = vpack.c.b16 %v963, %v958
    %v1039 = vpack.c.b16 %v964, %v959
    %v1040 = vpack.c.b16 %v965, %v960
    %v1041 = vpack.c.b16 %v966, %v961
    %v1042 = vpack.c.b16 %v972, %v967
    %v1043 = vpack.c.b16 %v973, %v968
    %v1044 = vpack.c.b16 %v974, %v969
    %v1045 = vpack.c.b16 %v975, %v970
    %v1046 = vpack.c.b16 %v976, %v971
    %v1047 = vpack.c.b16 %v982, %v977
    %v1048 = vpack.c.b16 %v983, %v978
    %v1049 = vpack.c.b16 %v984, %v979
    %v1050 = vpack.c.b16 %v985, %v980
    %v1051 = vpack.c.b16 %v986, %v981
    %v1052 = vpack.c.b16 %v992, %v987
    %v1053 = vpack.c.b16 %v993, %v988
    %v1054 = vpack.c.b16 %v994, %v989
    %v1055 = vpack.c.b16 %v995, %v990
    %v1056 = vpack.c.b16 %v996, %v991
    %v1057 = vpack.c.b16 %v1002, %v997
    %v1058 = vpack.c.b16 %v1003, %v998
    %v1059 = vpack.c.b16 %v1004, %v999
    %v1060 = vpack.c.b16 %v1005, %v1000
    %v1061 = vpack.c.b16 %v1006, %v1001
    %v1062 = vpack.c.b16 %v1012, %v1007
    %v1063 = vpack.c.b16 %v1013, %v1008
    %v1064 = vpack.c.b16 %v1014, %v1009
    %v1065 = vpack.c.b16 %v1015, %v1010
    %v1066 = vpack.c.b16 %v1016, %v1011
    %v1067 = vpack.c.b16 %v1022, %v1017
    %v1068 = vpack.c.b16 %v1023, %v1018
    %v1069 = vpack.c.b16 %v1024, %v1019
    %v1070 = vpack.c.b16 %v1025, %v1020
    %v1071 = vpack.c.b16 %v1026, %v1021
    %vm1117 = vcmask 130048
    %v1119 = vsel %vm1117, %v878, 0
    %v1122 = vsel %vm1117, %v880, 0
    %1124 = vmatpush.bf16.msra.mxu0 %v1062
    %1125 = vmatpush.bf16.msra.mxu0 %v1057
    %1126 = vmatpush.bf16.msra.mxu0 %v1052
    %1127 = vmatpush.bf16.msra.mxu0 %v1047
    %1128 = vmatpush.bf16.msra.mxu0 %v1042
    %1129 = vmatpush.bf16.msra.mxu0 %v1037
    %1130 = vmatpush.bf16.msra.mxu0 %v1032
    %1131 = vmatpush.bf16.msra.mxu0 %v1027
    %1132 = vmatmul.bf16.gmra.mxu0 %v877
    %v1133 = vpop.f32.mrf.mxu0
    %v1134 = vadd.f32 %v848, %v1133
    %v1135 = vpop.f32.mrf.mxu0
    %v1136 = vadd.f32 %v853, %v1135
    %1137 = vmatmul.bf16.gmra.mxu0 %v879
    %v1138 = vpop.f32.mrf.mxu0
    %v1139 = vadd.f32 %v858, %v1138
    %v1140 = vpop.f32.mrf.mxu0
    %v1141 = vadd.f32 %v863, %v1140
    %1142 = vdwg.mxu0
    %1143 = vmatpush.bf16.msra.mxu0 0
    %1144 = vmatpush.bf16.msra.mxu0 0
    %1145 = vmatpush.bf16.msra.mxu0 0
    %1146 = vmatpush.bf16.msra.mxu0 0
    %1147 = vmatpush.bf16.msra.mxu0 0
    %1148 = vmatpush.bf16.msra.mxu0 0
    %1149 = vmatpush.bf16.msra.mxu0 0
    %1150 = vmatpush.bf16.msra.mxu0 %v1067
    %1151 = vmatmul.bf16.gmra.mxu0 %v1119
    %v1152 = vpop.f32.mrf.mxu0
    %v1153 = vadd.f32 %v1134, %v1152
    %v1154 = vpop.f32.mrf.mxu0
    %v1155 = vadd.f32 %v1136, %v1154
    %1156 = vmatmul.bf16.gmra.mxu0 %v1122
    %v1157 = vpop.f32.mrf.mxu0
    %v1158 = vadd.f32 %v1139, %v1157
    %v1159 = vpop.f32.mrf.mxu0
    %v1160 = vadd.f32 %v1141, %v1159
    %1161 = vdwg.mxu0
    %1162 = vmatpush.bf16.msra.mxu0 %v1063
    %1163 = vmatpush.bf16.msra.mxu0 %v1058
    %1164 = vmatpush.bf16.msra.mxu0 %v1053
    %1165 = vmatpush.bf16.msra.mxu0 %v1048
    %1166 = vmatpush.bf16.msra.mxu0 %v1043
    %1167 = vmatpush.bf16.msra.mxu0 %v1038
    %1168 = vmatpush.bf16.msra.mxu0 %v1033
    %1169 = vmatpush.bf16.msra.mxu0 %v1028
    %1170 = vmatmul.bf16.gmra.mxu0 %v877
    %v1171 = vpop.f32.mrf.mxu0
    %v1172 = vadd.f32 %v848, %v1171
    %v1173 = vpop.f32.mrf.mxu0
    %v1174 = vadd.f32 %v853, %v1173
    %1175 = vmatmul.bf16.gmra.mxu0 %v879
    %v1176 = vpop.f32.mrf.mxu0
    %v1177 = vadd.f32 %v858, %v1176
    %v1178 = vpop.f32.mrf.mxu0
    %v1179 = vadd.f32 %v863, %v1178
    %1180 = vdwg.mxu0
    %1181 = vmatpush.bf16.msra.mxu0 0
    %1182 = vmatpush.bf16.msra.mxu0 0
    %1183 = vmatpush.bf16.msra.mxu0 0
    %1184 = vmatpush.bf16.msra.mxu0 0
    %1185 = vmatpush.bf16.msra.mxu0 0
    %1186 = vmatpush.bf16.msra.mxu0 0
    %1187 = vmatpush.bf16.msra.mxu0 0
    %1188 = vmatpush.bf16.msra.mxu0 %v1068
    %1189 = vmatmul.bf16.gmra.mxu0 %v1119
    %v1190 = vpop.f32.mrf.mxu0
    %v1191 = vadd.f32 %v1172, %v1190
    %v1192 = vpop.f32.mrf.mxu0
    %v1193 = vadd.f32 %v1174, %v1192
    %1194 = vmatmul.bf16.gmra.mxu0 %v1122
    %v1195 = vpop.f32.mrf.mxu0
    %v1196 = vadd.f32 %v1177, %v1195
    %v1197 = vpop.f32.mrf.mxu0
    %v1198 = vadd.f32 %v1179, %v1197
    %1199 = vdwg.mxu0
    %1200 = vmatpush.bf16.msra.mxu0 %v1064
    %1201 = vmatpush.bf16.msra.mxu0 %v1059
    %1202 = vmatpush.bf16.msra.mxu0 %v1054
    %1203 = vmatpush.bf16.msra.mxu0 %v1049
    %1204 = vmatpush.bf16.msra.mxu0 %v1044
    %1205 = vmatpush.bf16.msra.mxu0 %v1039
    %1206 = vmatpush.bf16.msra.mxu0 %v1034
    %1207 = vmatpush.bf16.msra.mxu0 %v1029
    %1208 = vmatmul.bf16.gmra.mxu0 %v877
    %v1209 = vpop.f32.mrf.mxu0
    %v1210 = vadd.f32 %v848, %v1209
    %v1211 = vpop.f32.mrf.mxu0
    %v1212 = vadd.f32 %v853, %v1211
    %1213 = vmatmul.bf16.gmra.mxu0 %v879
    %v1214 = vpop.f32.mrf.mxu0
    %v1215 = vadd.f32 %v858, %v1214
    %v1216 = vpop.f32.mrf.mxu0
    %v1217 = vadd.f32 %v863, %v1216
    %1218 = vdwg.mxu0
    %1219 = vmatpush.bf16.msra.mxu0 0
    %1220 = vmatpush.bf16.msra.mxu0 0
    %1221 = vmatpush.bf16.msra.mxu0 0
    %1222 = vmatpush.bf16.msra.mxu0 0
    %1223 = vmatpush.bf16.msra.mxu0 0
    %1224 = vmatpush.bf16.msra.mxu0 0
    %1225 = vmatpush.bf16.msra.mxu0 0
    %1226 = vmatpush.bf16.msra.mxu0 %v1069
    %1227 = vmatmul.bf16.gmra.mxu0 %v1119
    %v1228 = vpop.f32.mrf.mxu0
    %v1229 = vadd.f32 %v1210, %v1228
    %v1230 = vpop.f32.mrf.mxu0
    %v1231 = vadd.f32 %v1212, %v1230
    %1232 = vmatmul.bf16.gmra.mxu0 %v1122
    %v1233 = vpop.f32.mrf.mxu0
    %v1234 = vadd.f32 %v1215, %v1233
    %v1235 = vpop.f32.mrf.mxu0
    %v1236 = vadd.f32 %v1217, %v1235
    %1237 = vdwg.mxu0
    %1238 = vmatpush.bf16.msra.mxu0 %v1065
    %1239 = vmatpush.bf16.msra.mxu0 %v1060
    %1240 = vmatpush.bf16.msra.mxu0 %v1055
    %1241 = vmatpush.bf16.msra.mxu0 %v1050
    %1242 = vmatpush.bf16.msra.mxu0 %v1045
    %1243 = vmatpush.bf16.msra.mxu0 %v1040
    %1244 = vmatpush.bf16.msra.mxu0 %v1035
    %1245 = vmatpush.bf16.msra.mxu0 %v1030
    %1246 = vmatmul.bf16.gmra.mxu0 %v877
    %v1247 = vpop.f32.mrf.mxu0
    %v1248 = vadd.f32 %v848, %v1247
    %v1249 = vpop.f32.mrf.mxu0
    %v1250 = vadd.f32 %v853, %v1249
    %1251 = vmatmul.bf16.gmra.mxu0 %v879
    %v1252 = vpop.f32.mrf.mxu0
    %v1253 = vadd.f32 %v858, %v1252
    %v1254 = vpop.f32.mrf.mxu0
    %v1255 = vadd.f32 %v863, %v1254
    %1256 = vdwg.mxu0
    %1257 = vmatpush.bf16.msra.mxu0 0
    %1258 = vmatpush.bf16.msra.mxu0 0
    %1259 = vmatpush.bf16.msra.mxu0 0
    %1260 = vmatpush.bf16.msra.mxu0 0
    %1261 = vmatpush.bf16.msra.mxu0 0
    %1262 = vmatpush.bf16.msra.mxu0 0
    %1263 = vmatpush.bf16.msra.mxu0 0
    %1264 = vmatpush.bf16.msra.mxu0 %v1070
    %1265 = vmatmul.bf16.gmra.mxu0 %v1119
    %v1266 = vpop.f32.mrf.mxu0
    %v1267 = vadd.f32 %v1248, %v1266
    %v1268 = vpop.f32.mrf.mxu0
    %v1269 = vadd.f32 %v1250, %v1268
    %1270 = vmatmul.bf16.gmra.mxu0 %v1122
    %v1271 = vpop.f32.mrf.mxu0
    %v1272 = vadd.f32 %v1253, %v1271
    %v1273 = vpop.f32.mrf.mxu0
    %v1274 = vadd.f32 %v1255, %v1273
    %1275 = vdwg.mxu0
    %1276 = vmatpush.bf16.msra.mxu0 %v1066
    %1277 = vmatpush.bf16.msra.mxu0 %v1061
    %1278 = vmatpush.bf16.msra.mxu0 %v1056
    %1279 = vmatpush.bf16.msra.mxu0 %v1051
    %1280 = vmatpush.bf16.msra.mxu0 %v1046
    %1281 = vmatpush.bf16.msra.mxu0 %v1041
    %1282 = vmatpush.bf16.msra.mxu0 %v1036
    %1283 = vmatpush.bf16.msra.mxu0 %v1031
    %1284 = vmatmul.bf16.gmra.mxu0 %v877
    %v1285 = vpop.f32.mrf.mxu0
    %v1286 = vadd.f32 %v848, %v1285
    %v1287 = vpop.f32.mrf.mxu0
    %v1288 = vadd.f32 %v853, %v1287
    %1289 = vmatmul.bf16.gmra.mxu0 %v879
    %v1290 = vpop.f32.mrf.mxu0
    %v1291 = vadd.f32 %v858, %v1290
    %v1292 = vpop.f32.mrf.mxu0
    %v1293 = vadd.f32 %v863, %v1292
    %1294 = vdwg.mxu0
    %1295 = vmatpush.bf16.msra.mxu0 0
    %1296 = vmatpush.bf16.msra.mxu0 0
    %1297 = vmatpush.bf16.msra.mxu0 0
    %1298 = vmatpush.bf16.msra.mxu0 0
    %1299 = vmatpush.bf16.msra.mxu0 0
    %1300 = vmatpush.bf16.msra.mxu0 0
    %1301 = vmatpush.bf16.msra.mxu0 0
    %1302 = vmatpush.bf16.msra.mxu0 %v1071
    %1303 = vmatmul.bf16.gmra.mxu0 %v1119
    %v1304 = vpop.f32.mrf.mxu0
    %v1305 = vadd.f32 %v1286, %v1304
    %v1306 = vpop.f32.mrf.mxu0
    %v1307 = vadd.f32 %v1288, %v1306
    %1308 = vmatmul.bf16.gmra.mxu0 %v1122
    %v1309 = vpop.f32.mrf.mxu0
    %v1310 = vadd.f32 %v1291, %v1309
    %v1311 = vpop.f32.mrf.mxu0
    %v1312 = vadd.f32 %v1293, %v1311
    %1313 = vdwg.mxu0
    %v1314 = vmax.f32 %v1153, 0.0
    %v1315 = vmax.f32 %v1191, 0.0
    %v1316 = vmax.f32 %v1229, 0.0
    %v1317 = vmax.f32 %v1267, 0.0
    %v1318 = vmax.f32 %v1305, 0.0
    %v1319 = vmax.f32 %v1155, 0.0
    %v1320 = vmax.f32 %v1193, 0.0
    %v1321 = vmax.f32 %v1231, 0.0
    %v1322 = vmax.f32 %v1269, 0.0
    %v1323 = vmax.f32 %v1307, 0.0
    %v1324 = vmax.f32 %v1158, 0.0
    %v1325 = vmax.f32 %v1196, 0.0
    %v1326 = vmax.f32 %v1234, 0.0
    %v1327 = vmax.f32 %v1272, 0.0
    %v1328 = vmax.f32 %v1310, 0.0
    %v1329 = vmax.f32 %v1160, 0.0
    %v1330 = vmax.f32 %v1198, 0.0
    %v1331 = vmax.f32 %v1236, 0.0
    %v1332 = vmax.f32 %v1274, 0.0
    %v1333 = vmax.f32 %v1312, 0.0
    %v1335 = vperm.slane %v109, 0
    %v1336 = vperm.slane %v109, 1
    %v1337 = vperm.slane %v109, 2
    %v1338 = vperm.slane %v109, 3
    %v1339 = vperm.slane %v109, 4
    %v1345 = vmul.f32 %v1314, %v1335
    %v1346 = vmul.f32 %v1315, %v1336
    %v1347 = vmul.f32 %v1316, %v1337
    %v1348 = vmul.f32 %v1317, %v1338
    %v1349 = vmul.f32 %v1318, %v1339
    %v1350 = vmul.f32 %v1319, %v1335
    %v1351 = vmul.f32 %v1320, %v1336
    %v1352 = vmul.f32 %v1321, %v1337
    %v1353 = vmul.f32 %v1322, %v1338
    %v1354 = vmul.f32 %v1323, %v1339
    %v1355 = vmul.f32 %v1324, %v1335
    %v1356 = vmul.f32 %v1325, %v1336
    %v1357 = vmul.f32 %v1326, %v1337
    %v1358 = vmul.f32 %v1327, %v1338
    %v1359 = vmul.f32 %v1328, %v1339
    %v1360 = vmul.f32 %v1329, %v1335
    %v1361 = vmul.f32 %v1330, %v1336
    %v1362 = vmul.f32 %v1331, %v1337
    %v1363 = vmul.f32 %v1332, %v1338
    %v1364 = vmul.f32 %v1333, %v1339
    %v1365 = vpack.c.bf16 %v1346, %v1345
    %v1366 = vpack.c.bf16 %v1348, %v1347
    %v1367 = vpack.c.bf16 %v1349, %v1349
    %v1368 = vpack.c.bf16 %v1351, %v1350
    %v1369 = vpack.c.bf16 %v1353, %v1352
    %v1370 = vpack.c.bf16 %v1354, %v1354
    %v1371 = vpack.c.bf16 %v1356, %v1355
    %v1372 = vpack.c.bf16 %v1358, %v1357
    %v1373 = vpack.c.bf16 %v1359, %v1359
    %v1374 = vpack.c.bf16 %v1361, %v1360
    %v1375 = vpack.c.bf16 %v1363, %v1362
    %v1376 = vpack.c.bf16 %v1364, %v1364
    %1385 = vrot.lane.b32.xlu0 %v1365, 19
    %v1386 = vpop.permute.xlu0 %1385
    %1387 = vrot.lane.b32.xlu0 %v1366, 19
    %v1388 = vpop.permute.xlu0 %1387
    %1389 = vrot.lane.b32.xlu0 %v1368, 19
    %v1390 = vpop.permute.xlu0 %1389
    %1391 = vrot.lane.b32.xlu0 %v1369, 19
    %v1392 = vpop.permute.xlu0 %1391
    %1393 = vrot.lane.b32.xlu0 %v1371, 19
    %v1394 = vpop.permute.xlu0 %1393
    %1395 = vrot.lane.b32.xlu0 %v1372, 19
    %v1396 = vpop.permute.xlu0 %1395
    %1397 = vrot.lane.b32.xlu0 %v1374, 19
    %v1398 = vpop.permute.xlu0 %1397
    %1399 = vrot.lane.b32.xlu0 %v1375, 19
    %v1400 = vpop.permute.xlu0 %1399
    %v1401 = vrot.slane %v1386, 4
    %v1402 = vrot.slane %v1390, 4
    %v1403 = vrot.slane %v1394, 4
    %v1404 = vrot.slane %v1398, 4
    %vm1405 = vcmask 154624
    %v1406 = vsel %vm1405, %v1401, %v1386
    %v1407 = vsel %vm1405, %v1401, %v1388
    %v1408 = vsel %vm1405, %v1402, %v1390
    %v1409 = vsel %vm1405, %v1402, %v1392
    %v1410 = vsel %vm1405, %v1403, %v1394
    %v1411 = vsel %vm1405, %v1403, %v1396
    %v1412 = vsel %vm1405, %v1404, %v1398
    %v1413 = vsel %vm1405, %v1404, %v1400
    %vm1422 = vcmask 1043608
    %vm1423 = vmor %vm161, %vm1422
    %1424 = vst.msk [vmem:[#allocation2] sm:$0xff] %vm1423, %v1406
    %vm1425 = vcmask 412672
    %1426 = vst.msk [vmem:[#allocation2 + $0x8] sm:$0xf] %vm1425, %v1407
    %1427 = vst.msk [vmem:[#allocation2 + $0xc] sm:$0xff] %vm1423, %v1408
    %1428 = vst.msk [vmem:[#allocation2 + $0x14] sm:$0xf] %vm1425, %v1409
    %1429 = vst.msk [vmem:[#allocation2 + $0x18] sm:$0xff] %vm1423, %v1410
    %1430 = vst.msk [vmem:[#allocation2 + $0x20] sm:$0xf] %vm1425, %v1411
    %1431 = vst.msk [vmem:[#allocation2 + $0x24] sm:$0xff] %vm1423, %v1412
    %1432 = vst.msk [vmem:[#allocation2 + $0x2c] sm:$0xf] %vm1425, %v1413
    %1437 = vrot.lane.b32.xlu0 %v1366, 115
    %v1438 = vpop.permute.xlu0 %1437
    %1439 = vrot.lane.b32.xlu0 %v1367, 115
    %v1440 = vpop.permute.xlu0 %1439
    %1441 = vrot.lane.b32.xlu0 %v1369, 115
    %v1442 = vpop.permute.xlu0 %1441
    %1443 = vrot.lane.b32.xlu0 %v1370, 115
    %v1444 = vpop.permute.xlu0 %1443
    %1445 = vrot.lane.b32.xlu0 %v1372, 115
    %v1446 = vpop.permute.xlu0 %1445
    %1447 = vrot.lane.b32.xlu0 %v1373, 115
    %v1448 = vpop.permute.xlu0 %1447
    %1449 = vrot.lane.b32.xlu0 %v1375, 115
    %v1450 = vpop.permute.xlu0 %1449
    %1451 = vrot.lane.b32.xlu0 %v1376, 115
    %v1452 = vpop.permute.xlu0 %1451
    %v1453 = vrot.slane %v1438, 4
    %v1454 = vrot.slane %v1440, 4
    %v1455 = vrot.slane %v1442, 4
    %v1456 = vrot.slane %v1444, 4
    %v1457 = vrot.slane %v1446, 4
    %v1458 = vrot.slane %v1448, 4
    %v1459 = vrot.slane %v1450, 4
    %v1460 = vrot.slane %v1452, 4
    %v1461 = vsel %vm194, %v1453, %v1454
    %vm1462 = vcmask 941056
    %v1463 = vsel %vm1462, %v1438, %v1461
    %v1464 = vsel %vm194, %v1455, %v1456
    %v1465 = vsel %vm1462, %v1442, %v1464
    %v1466 = vsel %vm194, %v1457, %v1458
    %v1467 = vsel %vm1462, %v1446, %v1466
    %v1468 = vsel %vm194, %v1459, %v1460
    %v1469 = vsel %vm1462, %v1450, %v1468
    %1478 = vst.msk [vmem:[%s83] sm:$0xff] %vm1423, %v1463
    %1479 = vst.msk [vmem:[%s83 + $0x8] sm:$0xf] %vm1425, %v1440
    %1480 = vst.msk [vmem:[%s83 + $0xc] sm:$0xff] %vm1423, %v1465
    %1481 = vst.msk [vmem:[%s83 + $0x14] sm:$0xf] %vm1425, %v1444
    %1482 = vst.msk [vmem:[%s83 + $0x18] sm:$0xff] %vm1423, %v1467
    %1483 = vst.msk [vmem:[%s83 + $0x20] sm:$0xf] %vm1425, %v1448
    %1484 = vst.msk [vmem:[%s83 + $0x24] sm:$0xff] %vm1423, %v1469
    %1485 = vst.msk [vmem:[%s83 + $0x2c] sm:$0xf] %vm1425, %v1452
    %v1486 = vld [vmem:[#allocation2] sm:$0xff]
    %v1487 = vld [vmem:[#allocation2 + $0x8] sm:$0xf]
    %v1488 = vld [vmem:[#allocation2 + $0xc] sm:$0xff]
    %v1489 = vld [vmem:[#allocation2 + $0x14] sm:$0xf]
    %v1490 = vld [vmem:[#allocation2 + $0x18] sm:$0xff]
    %v1491 = vld [vmem:[#allocation2 + $0x20] sm:$0xf]
    %v1492 = vld [vmem:[#allocation2 + $0x24] sm:$0xff]
    %v1493 = vld [vmem:[#allocation2 + $0x2c] sm:$0xf]
    %1494 = vst [vmem:[#allocation4] sm:$0xff] %v1486
    %1495 = vst.msk [vmem:[#allocation4 + $0x8] sm:$0xf] %vm122, %v1487
    %1496 = vst [vmem:[#allocation4 + $0x14] sm:$0xff] %v1488
    %1497 = vst.msk [vmem:[#allocation4 + $0x1c] sm:$0xf] %vm122, %v1489
    %1498 = vst [vmem:[#allocation4 + $0x28] sm:$0xff] %v1490
    %1499 = vst.msk [vmem:[#allocation4 + $0x30] sm:$0xf] %vm122, %v1491
    %1500 = vst [vmem:[#allocation4 + $0x3c] sm:$0xff] %v1492
    %1501 = vst.msk [vmem:[#allocation4 + $0x44] sm:$0xf] %vm122, %v1493
    %v1502 = vld [vmem:[%s83] sm:$0xff]
    %v1503 = vld [vmem:[%s83 + $0x8] sm:$0xf]
    %v1504 = vld [vmem:[%s83 + $0xc] sm:$0xff]
    %v1505 = vld [vmem:[%s83 + $0x14] sm:$0xf]
    %v1506 = vld [vmem:[%s83 + $0x18] sm:$0xff]
    %v1507 = vld [vmem:[%s83 + $0x20] sm:$0xf]
    %v1508 = vld [vmem:[%s83 + $0x24] sm:$0xff]
    %v1509 = vld [vmem:[%s83 + $0x2c] sm:$0xf]
    %1518 = vrot.lane.b32.xlu0 %v1502, 32
    %v1519 = vpop.permute.xlu0 %1518
    %1520 = vrot.lane.b32.xlu0 %v1503, 32
    %v1521 = vpop.permute.xlu0 %1520
    %1522 = vrot.lane.b32.xlu0 %v1504, 32
    %v1523 = vpop.permute.xlu0 %1522
    %1524 = vrot.lane.b32.xlu0 %v1505, 32
    %v1525 = vpop.permute.xlu0 %1524
    %1526 = vrot.lane.b32.xlu0 %v1506, 32
    %v1527 = vpop.permute.xlu0 %1526
    %1528 = vrot.lane.b32.xlu0 %v1507, 32
    %v1529 = vpop.permute.xlu0 %1528
    %1530 = vrot.lane.b32.xlu0 %v1508, 32
    %v1531 = vpop.permute.xlu0 %1530
    %1532 = vrot.lane.b32.xlu0 %v1509, 32
    %v1533 = vpop.permute.xlu0 %1532
    %v1534 = vrot.slane %v1519, 4
    %v1535 = vrot.slane %v1523, 4
    %v1536 = vrot.slane %v1527, 4
    %v1537 = vrot.slane %v1531, 4
    %v1538 = vsel %vm151, %v1534, %v1519
    %v1539 = vsel %vm151, %v1534, %v1521
    %v1540 = vsel %vm151, %v1535, %v1523
    %v1541 = vsel %vm151, %v1535, %v1525
    %v1542 = vsel %vm151, %v1536, %v1527
    %v1543 = vsel %vm151, %v1536, %v1529
    %v1544 = vsel %vm151, %v1537, %v1531
    %v1545 = vsel %vm151, %v1537, %v1533
    %1554 = vst.msk [vmem:[#allocation4 + $0x8] sm:$0xff] %vm162, %v1538
    %1555 = vst.msk [vmem:[#allocation4 + $0x10] sm:$0xf] %vm164, %v1539
    %1556 = vst.msk [vmem:[#allocation4 + $0x1c] sm:$0xff] %vm162, %v1540
    %1557 = vst.msk [vmem:[#allocation4 + $0x24] sm:$0xf] %vm164, %v1541
    %1558 = vst.msk [vmem:[#allocation4 + $0x30] sm:$0xff] %vm162, %v1542
    %1559 = vst.msk [vmem:[#allocation4 + $0x38] sm:$0xf] %vm164, %v1543
    %1560 = vst.msk [vmem:[#allocation4 + $0x44] sm:$0xff] %vm162, %v1544
    %1561 = vst.msk [vmem:[#allocation4 + $0x4c] sm:$0xf] %vm164, %v1545
    %v1562 = vld [vmem:[#allocation2] sm:$0xff]
    %v1563 = vld [vmem:[#allocation2 + $0x8] sm:$0xf]
    %v1564 = vld [vmem:[#allocation2 + $0xc] sm:$0xff]
    %v1565 = vld [vmem:[#allocation2 + $0x14] sm:$0xf]
    %v1566 = vld [vmem:[#allocation2 + $0x18] sm:$0xff]
    %v1567 = vld [vmem:[#allocation2 + $0x20] sm:$0xf]
    %v1568 = vld [vmem:[#allocation2 + $0x24] sm:$0xff]
    %v1569 = vld [vmem:[#allocation2 + $0x2c] sm:$0xf]
    %1578 = vrot.lane.b32.xlu0 %v1562, 127
    %v1579 = vpop.permute.xlu0 %1578
    %1580 = vrot.lane.b32.xlu0 %v1563, 127
    %v1581 = vpop.permute.xlu0 %1580
    %1582 = vrot.lane.b32.xlu0 %v1564, 127
    %v1583 = vpop.permute.xlu0 %1582
    %1584 = vrot.lane.b32.xlu0 %v1565, 127
    %v1585 = vpop.permute.xlu0 %1584
    %1586 = vrot.lane.b32.xlu0 %v1566, 127
    %v1587 = vpop.permute.xlu0 %1586
    %1588 = vrot.lane.b32.xlu0 %v1567, 127
    %v1589 = vpop.permute.xlu0 %1588
    %1590 = vrot.lane.b32.xlu0 %v1568, 127
    %v1591 = vpop.permute.xlu0 %1590
    %1592 = vrot.lane.b32.xlu0 %v1569, 127
    %v1593 = vpop.permute.xlu0 %1592
    %v1594 = vrot.slane %v1579, 4
    %v1595 = vrot.slane %v1581, 4
    %v1596 = vrot.slane %v1583, 4
    %v1597 = vrot.slane %v1585, 4
    %v1598 = vrot.slane %v1587, 4
    %v1599 = vrot.slane %v1589, 4
    %v1600 = vrot.slane %v1591, 4
    %v1601 = vrot.slane %v1593, 4
    %v1602 = vsel %vm194, %v1594, %v1595
    %v1603 = vsel %vm196, %v1579, %v1602
    %v1604 = vsel %vm194, %v1596, %v1597
    %v1605 = vsel %vm196, %v1583, %v1604
    %v1606 = vsel %vm194, %v1598, %v1599
    %v1607 = vsel %vm196, %v1587, %v1606
    %v1608 = vsel %vm194, %v1600, %v1601
    %v1609 = vsel %vm196, %v1591, %v1608
    %1618 = vst [vmem:[#allocation4 + $0x50] sm:$0xff] %v1603
    %1619 = vst.msk [vmem:[#allocation4 + $0x58] sm:$0xf] %vm122, %v1581
    %1620 = vst [vmem:[#allocation4 + $0x64] sm:$0xff] %v1605
    %1621 = vst.msk [vmem:[#allocation4 + $0x6c] sm:$0xf] %vm122, %v1585
    %1622 = vst [vmem:[#allocation4 + $0x78] sm:$0xff] %v1607
    %1623 = vst.msk [vmem:[#allocation4 + $0x80] sm:$0xf] %vm122, %v1589
    %1624 = vst [vmem:[#allocation4 + $0x8c] sm:$0xff] %v1609
    %1625 = vst.msk [vmem:[#allocation4 + $0x94] sm:$0xf] %vm122, %v1593
    %v1626 = vld [vmem:[%s83] sm:$0xff]
    %v1627 = vld [vmem:[%s83 + $0x8] sm:$0xf]
    %v1628 = vld [vmem:[%s83 + $0xc] sm:$0xff]
    %v1629 = vld [vmem:[%s83 + $0x14] sm:$0xf]
    %v1630 = vld [vmem:[%s83 + $0x18] sm:$0xff]
    %v1631 = vld [vmem:[%s83 + $0x20] sm:$0xf]
    %v1632 = vld [vmem:[%s83 + $0x24] sm:$0xff]
    %v1633 = vld [vmem:[%s83 + $0x2c] sm:$0xf]
    %1642 = vrot.lane.b32.xlu0 %v1626, 31
    %v1643 = vpop.permute.xlu0 %1642
    %1644 = vrot.lane.b32.xlu0 %v1627, 31
    %v1645 = vpop.permute.xlu0 %1644
    %1646 = vrot.lane.b32.xlu0 %v1628, 31
    %v1647 = vpop.permute.xlu0 %1646
    %1648 = vrot.lane.b32.xlu0 %v1629, 31
    %v1649 = vpop.permute.xlu0 %1648
    %1650 = vrot.lane.b32.xlu0 %v1630, 31
    %v1651 = vpop.permute.xlu0 %1650
    %1652 = vrot.lane.b32.xlu0 %v1631, 31
    %v1653 = vpop.permute.xlu0 %1652
    %1654 = vrot.lane.b32.xlu0 %v1632, 31
    %v1655 = vpop.permute.xlu0 %1654
    %1656 = vrot.lane.b32.xlu0 %v1633, 31
    %v1657 = vpop.permute.xlu0 %1656
    %v1658 = vrot.slane %v1643, 4
    %v1659 = vrot.slane %v1647, 4
    %v1660 = vrot.slane %v1651, 4
    %v1661 = vrot.slane %v1655, 4
    %v1662 = vsel %vm232, %v1658, %v1643
    %v1663 = vsel %vm232, %v1658, %v1645
    %v1664 = vsel %vm232, %v1659, %v1647
    %v1665 = vsel %vm232, %v1659, %v1649
    %v1666 = vsel %vm232, %v1660, %v1651
    %v1667 = vsel %vm232, %v1660, %v1653
    %v1668 = vsel %vm232, %v1661, %v1655
    %v1669 = vsel %vm232, %v1661, %v1657
    %1678 = vst.msk [vmem:[#allocation4 + $0x58] sm:$0xff] %vm162, %v1662
    %1679 = vst.msk [vmem:[#allocation4 + $0x60] sm:$0xf] %vm164, %v1663
    %1680 = vst.msk [vmem:[#allocation4 + $0x6c] sm:$0xff] %vm162, %v1664
    %1681 = vst.msk [vmem:[#allocation4 + $0x74] sm:$0xf] %vm164, %v1665
    %1682 = vst.msk [vmem:[#allocation4 + $0x80] sm:$0xff] %vm162, %v1666
    %1683 = vst.msk [vmem:[#allocation4 + $0x88] sm:$0xf] %vm164, %v1667
    %1684 = vst.msk [vmem:[#allocation4 + $0x94] sm:$0xff] %vm162, %v1668
    %1685 = vst.msk [vmem:[#allocation4 + $0x9c] sm:$0xf] %vm164, %v1669
    %v1686 = vld [vmem:[#allocation2] sm:$0xff]
    %v1687 = vld [vmem:[#allocation2 + $0x8] sm:$0xf]
    %v1688 = vld [vmem:[#allocation2 + $0xc] sm:$0xff]
    %v1689 = vld [vmem:[#allocation2 + $0x14] sm:$0xf]
    %v1690 = vld [vmem:[#allocation2 + $0x18] sm:$0xff]
    %v1691 = vld [vmem:[#allocation2 + $0x20] sm:$0xf]
    %v1692 = vld [vmem:[#allocation2 + $0x24] sm:$0xff]
    %v1693 = vld [vmem:[#allocation2 + $0x2c] sm:$0xf]
    %1702 = vrot.lane.b32.xlu0 %v1686, 126
    %v1703 = vpop.permute.xlu0 %1702
    %1704 = vrot.lane.b32.xlu0 %v1687, 126
    %v1705 = vpop.permute.xlu0 %1704
    %1706 = vrot.lane.b32.xlu0 %v1688, 126
    %v1707 = vpop.permute.xlu0 %1706
    %1708 = vrot.lane.b32.xlu0 %v1689, 126
    %v1709 = vpop.permute.xlu0 %1708
    %1710 = vrot.lane.b32.xlu0 %v1690, 126
    %v1711 = vpop.permute.xlu0 %1710
    %1712 = vrot.lane.b32.xlu0 %v1691, 126
    %v1713 = vpop.permute.xlu0 %1712
    %1714 = vrot.lane.b32.xlu0 %v1692, 126
    %v1715 = vpop.permute.xlu0 %1714
    %1716 = vrot.lane.b32.xlu0 %v1693, 126
    %v1717 = vpop.permute.xlu0 %1716
    %v1718 = vrot.slane %v1703, 4
    %v1719 = vrot.slane %v1705, 4
    %v1720 = vrot.slane %v1707, 4
    %v1721 = vrot.slane %v1709, 4
    %v1722 = vrot.slane %v1711, 4
    %v1723 = vrot.slane %v1713, 4
    %v1724 = vrot.slane %v1715, 4
    %v1725 = vrot.slane %v1717, 4
    %v1726 = vsel %vm194, %v1718, %v1719
    %v1727 = vsel %vm272, %v1703, %v1726
    %v1728 = vsel %vm194, %v1720, %v1721
    %v1729 = vsel %vm272, %v1707, %v1728
    %v1730 = vsel %vm194, %v1722, %v1723
    %v1731 = vsel %vm272, %v1711, %v1730
    %v1732 = vsel %vm194, %v1724, %v1725
    %v1733 = vsel %vm272, %v1715, %v1732
    %1742 = vst [vmem:[#allocation4 + $0xa0] sm:$0xff] %v1727
    %1743 = vst.msk [vmem:[#allocation4 + $0xa8] sm:$0xf] %vm122, %v1705
    %1744 = vst [vmem:[#allocation4 + $0xb4] sm:$0xff] %v1729
    %1745 = vst.msk [vmem:[#allocation4 + $0xbc] sm:$0xf] %vm122, %v1709
    %1746 = vst [vmem:[#allocation4 + $0xc8] sm:$0xff] %v1731
    %1747 = vst.msk [vmem:[#allocation4 + $0xd0] sm:$0xf] %vm122, %v1713
    %1748 = vst [vmem:[#allocation4 + $0xdc] sm:$0xff] %v1733
    %1749 = vst.msk [vmem:[#allocation4 + $0xe4] sm:$0xf] %vm122, %v1717
    %v1750 = vld [vmem:[%s83] sm:$0xff]
    %v1751 = vld [vmem:[%s83 + $0x8] sm:$0xf]
    %v1752 = vld [vmem:[%s83 + $0xc] sm:$0xff]
    %v1753 = vld [vmem:[%s83 + $0x14] sm:$0xf]
    %v1754 = vld [vmem:[%s83 + $0x18] sm:$0xff]
    %v1755 = vld [vmem:[%s83 + $0x20] sm:$0xf]
    %v1756 = vld [vmem:[%s83 + $0x24] sm:$0xff]
    %v1757 = vld [vmem:[%s83 + $0x2c] sm:$0xf]
    %1766 = vrot.lane.b32.xlu0 %v1750, 30
    %v1767 = vpop.permute.xlu0 %1766
    %1768 = vrot.lane.b32.xlu0 %v1751, 30
    %v1769 = vpop.permute.xlu0 %1768
    %1770 = vrot.lane.b32.xlu0 %v1752, 30
    %v1771 = vpop.permute.xlu0 %1770
    %1772 = vrot.lane.b32.xlu0 %v1753, 30
    %v1773 = vpop.permute.xlu0 %1772
    %1774 = vrot.lane.b32.xlu0 %v1754, 30
    %v1775 = vpop.permute.xlu0 %1774
    %1776 = vrot.lane.b32.xlu0 %v1755, 30
    %v1777 = vpop.permute.xlu0 %1776
    %1778 = vrot.lane.b32.xlu0 %v1756, 30
    %v1779 = vpop.permute.xlu0 %1778
    %1780 = vrot.lane.b32.xlu0 %v1757, 30
    %v1781 = vpop.permute.xlu0 %1780
    %v1782 = vrot.slane %v1767, 4
    %v1783 = vrot.slane %v1771, 4
    %v1784 = vrot.slane %v1775, 4
    %v1785 = vrot.slane %v1779, 4
    %v1786 = vsel %vm308, %v1782, %v1767
    %v1787 = vsel %vm308, %v1782, %v1769
    %v1788 = vsel %vm308, %v1783, %v1771
    %v1789 = vsel %vm308, %v1783, %v1773
    %v1790 = vsel %vm308, %v1784, %v1775
    %v1791 = vsel %vm308, %v1784, %v1777
    %v1792 = vsel %vm308, %v1785, %v1779
    %v1793 = vsel %vm308, %v1785, %v1781
    %1802 = vst.msk [vmem:[#allocation4 + $0xa8] sm:$0xff] %vm162, %v1786
    %1803 = vst.msk [vmem:[#allocation4 + $0xb0] sm:$0xf] %vm164, %v1787
    %1804 = vst.msk [vmem:[#allocation4 + $0xbc] sm:$0xff] %vm162, %v1788
    %1805 = vst.msk [vmem:[#allocation4 + $0xc4] sm:$0xf] %vm164, %v1789
    %1806 = vst.msk [vmem:[#allocation4 + $0xd0] sm:$0xff] %vm162, %v1790
    %1807 = vst.msk [vmem:[#allocation4 + $0xd8] sm:$0xf] %vm164, %v1791
    %1808 = vst.msk [vmem:[#allocation4 + $0xe4] sm:$0xff] %vm162, %v1792
    %1809 = vst.msk [vmem:[#allocation4 + $0xec] sm:$0xf] %vm164, %v1793
    %v1810 = vld [vmem:[#allocation2] sm:$0xff]
    %v1811 = vld [vmem:[#allocation2 + $0x8] sm:$0xf]
    %v1812 = vld [vmem:[#allocation2 + $0xc] sm:$0xff]
    %v1813 = vld [vmem:[#allocation2 + $0x14] sm:$0xf]
    %v1814 = vld [vmem:[#allocation2 + $0x18] sm:$0xff]
    %v1815 = vld [vmem:[#allocation2 + $0x20] sm:$0xf]
    %v1816 = vld [vmem:[#allocation2 + $0x24] sm:$0xff]
    %v1817 = vld [vmem:[#allocation2 + $0x2c] sm:$0xf]
    %1826 = vrot.lane.b32.xlu0 %v1810, 110
    %v1827 = vpop.permute.xlu0 %1826
    %1828 = vrot.lane.b32.xlu0 %v1811, 110
    %v1829 = vpop.permute.xlu0 %1828
    %1830 = vrot.lane.b32.xlu0 %v1812, 110
    %v1831 = vpop.permute.xlu0 %1830
    %1832 = vrot.lane.b32.xlu0 %v1813, 110
    %v1833 = vpop.permute.xlu0 %1832
    %1834 = vrot.lane.b32.xlu0 %v1814, 110
    %v1835 = vpop.permute.xlu0 %1834
    %1836 = vrot.lane.b32.xlu0 %v1815, 110
    %v1837 = vpop.permute.xlu0 %1836
    %1838 = vrot.lane.b32.xlu0 %v1816, 110
    %v1839 = vpop.permute.xlu0 %1838
    %1840 = vrot.lane.b32.xlu0 %v1817, 110
    %v1841 = vpop.permute.xlu0 %1840
    %v1842 = vrot.slane %v1827, 4
    %v1843 = vrot.slane %v1829, 4
    %v1844 = vrot.slane %v1831, 4
    %v1845 = vrot.slane %v1833, 4
    %v1846 = vrot.slane %v1835, 4
    %v1847 = vrot.slane %v1837, 4
    %v1848 = vrot.slane %v1839, 4
    %v1849 = vrot.slane %v1841, 4
    %v1850 = vsel %vm194, %v1842, %v1843
    %v1851 = vsel %vm348, %v1827, %v1850
    %v1852 = vsel %vm194, %v1844, %v1845
    %v1853 = vsel %vm348, %v1831, %v1852
    %v1854 = vsel %vm194, %v1846, %v1847
    %v1855 = vsel %vm348, %v1835, %v1854
    %v1856 = vsel %vm194, %v1848, %v1849
    %v1857 = vsel %vm348, %v1839, %v1856
    %1866 = vst [vmem:[#allocation4 + $0xf0] sm:$0xff] %v1851
    %1867 = vst.msk [vmem:[#allocation4 + $0xf8] sm:$0xf] %vm122, %v1829
    %1868 = vst [vmem:[#allocation4 + $0x104] sm:$0xff] %v1853
    %1869 = vst.msk [vmem:[#allocation4 + $0x10c] sm:$0xf] %vm122, %v1833
    %1870 = vst [vmem:[#allocation4 + $0x118] sm:$0xff] %v1855
    %1871 = vst.msk [vmem:[#allocation4 + $0x120] sm:$0xf] %vm122, %v1837
    %1872 = vst [vmem:[#allocation4 + $0x12c] sm:$0xff] %v1857
    %1873 = vst.msk [vmem:[#allocation4 + $0x134] sm:$0xf] %vm122, %v1841
    %v1874 = vld [vmem:[%s83] sm:$0xff]
    %v1875 = vld [vmem:[%s83 + $0x8] sm:$0xf]
    %v1876 = vld [vmem:[%s83 + $0xc] sm:$0xff]
    %v1877 = vld [vmem:[%s83 + $0x14] sm:$0xf]
    %v1878 = vld [vmem:[%s83 + $0x18] sm:$0xff]
    %v1879 = vld [vmem:[%s83 + $0x20] sm:$0xf]
    %v1880 = vld [vmem:[%s83 + $0x24] sm:$0xff]
    %v1881 = vld [vmem:[%s83 + $0x2c] sm:$0xf]
    %1890 = vrot.lane.b32.xlu0 %v1874, 14
    %v1891 = vpop.permute.xlu0 %1890
    %1892 = vrot.lane.b32.xlu0 %v1875, 14
    %v1893 = vpop.permute.xlu0 %1892
    %1894 = vrot.lane.b32.xlu0 %v1876, 14
    %v1895 = vpop.permute.xlu0 %1894
    %1896 = vrot.lane.b32.xlu0 %v1877, 14
    %v1897 = vpop.permute.xlu0 %1896
    %1898 = vrot.lane.b32.xlu0 %v1878, 14
    %v1899 = vpop.permute.xlu0 %1898
    %1900 = vrot.lane.b32.xlu0 %v1879, 14
    %v1901 = vpop.permute.xlu0 %1900
    %1902 = vrot.lane.b32.xlu0 %v1880, 14
    %v1903 = vpop.permute.xlu0 %1902
    %1904 = vrot.lane.b32.xlu0 %v1881, 14
    %v1905 = vpop.permute.xlu0 %1904
    %v1906 = vrot.slane %v1891, 4
    %v1907 = vrot.slane %v1895, 4
    %v1908 = vrot.slane %v1899, 4
    %v1909 = vrot.slane %v1903, 4
    %v1910 = vsel %vm384, %v1906, %v1891
    %v1911 = vsel %vm384, %v1906, %v1893
    %v1912 = vsel %vm384, %v1907, %v1895
    %v1913 = vsel %vm384, %v1907, %v1897
    %v1914 = vsel %vm384, %v1908, %v1899
    %v1915 = vsel %vm384, %v1908, %v1901
    %v1916 = vsel %vm384, %v1909, %v1903
    %v1917 = vsel %vm384, %v1909, %v1905
    %1926 = vst.msk [vmem:[#allocation4 + $0xf8] sm:$0xff] %vm162, %v1910
    %1927 = vst.msk [vmem:[#allocation4 + $0x100] sm:$0xf] %vm164, %v1911
    %1928 = vst.msk [vmem:[#allocation4 + $0x10c] sm:$0xff] %vm162, %v1912
    %1929 = vst.msk [vmem:[#allocation4 + $0x114] sm:$0xf] %vm164, %v1913
    %1930 = vst.msk [vmem:[#allocation4 + $0x120] sm:$0xff] %vm162, %v1914
    %1931 = vst.msk [vmem:[#allocation4 + $0x128] sm:$0xf] %vm164, %v1915
    %1932 = vst.msk [vmem:[#allocation4 + $0x134] sm:$0xff] %vm162, %v1916
    %1933 = vst.msk [vmem:[#allocation4 + $0x13c] sm:$0xf] %vm164, %v1917
    %v1934 = vld [vmem:[#allocation2] sm:$0xff]
    %v1935 = vld [vmem:[#allocation2 + $0x8] sm:$0xf]
    %v1936 = vld [vmem:[#allocation2 + $0xc] sm:$0xff]
    %v1937 = vld [vmem:[#allocation2 + $0x14] sm:$0xf]
    %v1938 = vld [vmem:[#allocation2 + $0x18] sm:$0xff]
    %v1939 = vld [vmem:[#allocation2 + $0x20] sm:$0xf]
    %v1940 = vld [vmem:[#allocation2 + $0x24] sm:$0xff]
    %v1941 = vld [vmem:[#allocation2 + $0x2c] sm:$0xf]
    %1950 = vrot.lane.b32.xlu0 %v1934, 109
    %v1951 = vpop.permute.xlu0 %1950
    %1952 = vrot.lane.b32.xlu0 %v1935, 109
    %v1953 = vpop.permute.xlu0 %1952
    %1954 = vrot.lane.b32.xlu0 %v1936, 109
    %v1955 = vpop.permute.xlu0 %1954
    %1956 = vrot.lane.b32.xlu0 %v1937, 109
    %v1957 = vpop.permute.xlu0 %1956
    %1958 = vrot.lane.b32.xlu0 %v1938, 109
    %v1959 = vpop.permute.xlu0 %1958
    %1960 = vrot.lane.b32.xlu0 %v1939, 109
    %v1961 = vpop.permute.xlu0 %1960
    %1962 = vrot.lane.b32.xlu0 %v1940, 109
    %v1963 = vpop.permute.xlu0 %1962
    %1964 = vrot.lane.b32.xlu0 %v1941, 109
    %v1965 = vpop.permute.xlu0 %1964
    %v1966 = vrot.slane %v1951, 4
    %v1967 = vrot.slane %v1953, 4
    %v1968 = vrot.slane %v1955, 4
    %v1969 = vrot.slane %v1957, 4
    %v1970 = vrot.slane %v1959, 4
    %v1971 = vrot.slane %v1961, 4
    %v1972 = vrot.slane %v1963, 4
    %v1973 = vrot.slane %v1965, 4
    %v1974 = vsel %vm194, %v1966, %v1967
    %v1975 = vsel %vm424, %v1951, %v1974
    %v1976 = vsel %vm194, %v1968, %v1969
    %v1977 = vsel %vm424, %v1955, %v1976
    %v1978 = vsel %vm194, %v1970, %v1971
    %v1979 = vsel %vm424, %v1959, %v1978
    %v1980 = vsel %vm194, %v1972, %v1973
    %v1981 = vsel %vm424, %v1963, %v1980
    %1990 = vst [vmem:[#allocation4 + $0x140] sm:$0xff] %v1975
    %1991 = vst.msk [vmem:[#allocation4 + $0x148] sm:$0xf] %vm122, %v1953
    %1992 = vst [vmem:[#allocation4 + $0x154] sm:$0xff] %v1977
    %1993 = vst.msk [vmem:[#allocation4 + $0x15c] sm:$0xf] %vm122, %v1957
    %1994 = vst [vmem:[#allocation4 + $0x168] sm:$0xff] %v1979
    %1995 = vst.msk [vmem:[#allocation4 + $0x170] sm:$0xf] %vm122, %v1961
    %1996 = vst [vmem:[#allocation4 + $0x17c] sm:$0xff] %v1981
    %1997 = vst.msk [vmem:[#allocation4 + $0x184] sm:$0xf] %vm122, %v1965
    %v1998 = vld [vmem:[%s83] sm:$0xff]
    %v1999 = vld [vmem:[%s83 + $0x8] sm:$0xf]
    %v2000 = vld [vmem:[%s83 + $0xc] sm:$0xff]
    %v2001 = vld [vmem:[%s83 + $0x14] sm:$0xf]
    %v2002 = vld [vmem:[%s83 + $0x18] sm:$0xff]
    %v2003 = vld [vmem:[%s83 + $0x20] sm:$0xf]
    %v2004 = vld [vmem:[%s83 + $0x24] sm:$0xff]
    %v2005 = vld [vmem:[%s83 + $0x2c] sm:$0xf]
    %2014 = vrot.lane.b32.xlu0 %v1998, 13
    %v2015 = vpop.permute.xlu0 %2014
    %2016 = vrot.lane.b32.xlu0 %v1999, 13
    %v2017 = vpop.permute.xlu0 %2016
    %2018 = vrot.lane.b32.xlu0 %v2000, 13
    %v2019 = vpop.permute.xlu0 %2018
    %2020 = vrot.lane.b32.xlu0 %v2001, 13
    %v2021 = vpop.permute.xlu0 %2020
    %2022 = vrot.lane.b32.xlu0 %v2002, 13
    %v2023 = vpop.permute.xlu0 %2022
    %2024 = vrot.lane.b32.xlu0 %v2003, 13
    %v2025 = vpop.permute.xlu0 %2024
    %2026 = vrot.lane.b32.xlu0 %v2004, 13
    %v2027 = vpop.permute.xlu0 %2026
    %2028 = vrot.lane.b32.xlu0 %v2005, 13
    %v2029 = vpop.permute.xlu0 %2028
    %v2030 = vrot.slane %v2015, 4
    %v2031 = vrot.slane %v2019, 4
    %v2032 = vrot.slane %v2023, 4
    %v2033 = vrot.slane %v2027, 4
    %v2034 = vsel %vm460, %v2030, %v2015
    %v2035 = vsel %vm460, %v2030, %v2017
    %v2036 = vsel %vm460, %v2031, %v2019
    %v2037 = vsel %vm460, %v2031, %v2021
    %v2038 = vsel %vm460, %v2032, %v2023
    %v2039 = vsel %vm460, %v2032, %v2025
    %v2040 = vsel %vm460, %v2033, %v2027
    %v2041 = vsel %vm460, %v2033, %v2029
    %2050 = vst.msk [vmem:[#allocation4 + $0x148] sm:$0xff] %vm162, %v2034
    %2051 = vst.msk [vmem:[#allocation4 + $0x150] sm:$0xf] %vm164, %v2035
    %2052 = vst.msk [vmem:[#allocation4 + $0x15c] sm:$0xff] %vm162, %v2036
    %2053 = vst.msk [vmem:[#allocation4 + $0x164] sm:$0xf] %vm164, %v2037
    %2054 = vst.msk [vmem:[#allocation4 + $0x170] sm:$0xff] %vm162, %v2038
    %2055 = vst.msk [vmem:[#allocation4 + $0x178] sm:$0xf] %vm164, %v2039
    %2056 = vst.msk [vmem:[#allocation4 + $0x184] sm:$0xff] %vm162, %v2040
    %2057 = vst.msk [vmem:[#allocation4 + $0x18c] sm:$0xf] %vm164, %v2041
    %v2058 = vld [vmem:[#allocation2] sm:$0xff]
    %v2059 = vld [vmem:[#allocation2 + $0x8] sm:$0xf]
    %v2060 = vld [vmem:[#allocation2 + $0xc] sm:$0xff]
    %v2061 = vld [vmem:[#allocation2 + $0x14] sm:$0xf]
    %v2062 = vld [vmem:[#allocation2 + $0x18] sm:$0xff]
    %v2063 = vld [vmem:[#allocation2 + $0x20] sm:$0xf]
    %v2064 = vld [vmem:[#allocation2 + $0x24] sm:$0xff]
    %v2065 = vld [vmem:[#allocation2 + $0x2c] sm:$0xf]
    %2074 = vrot.lane.b32.xlu0 %v2058, 108
    %v2075 = vpop.permute.xlu0 %2074
    %2076 = vrot.lane.b32.xlu0 %v2059, 108
    %v2077 = vpop.permute.xlu0 %2076
    %2078 = vrot.lane.b32.xlu0 %v2060, 108
    %v2079 = vpop.permute.xlu0 %2078
    %2080 = vrot.lane.b32.xlu0 %v2061, 108
    %v2081 = vpop.permute.xlu0 %2080
    %2082 = vrot.lane.b32.xlu0 %v2062, 108
    %v2083 = vpop.permute.xlu0 %2082
    %2084 = vrot.lane.b32.xlu0 %v2063, 108
    %v2085 = vpop.permute.xlu0 %2084
    %2086 = vrot.lane.b32.xlu0 %v2064, 108
    %v2087 = vpop.permute.xlu0 %2086
    %2088 = vrot.lane.b32.xlu0 %v2065, 108
    %v2089 = vpop.permute.xlu0 %2088
    %v2090 = vrot.slane %v2075, 4
    %v2091 = vrot.slane %v2077, 4
    %v2092 = vrot.slane %v2079, 4
    %v2093 = vrot.slane %v2081, 4
    %v2094 = vrot.slane %v2083, 4
    %v2095 = vrot.slane %v2085, 4
    %v2096 = vrot.slane %v2087, 4
    %v2097 = vrot.slane %v2089, 4
    %v2098 = vsel %vm194, %v2090, %v2091
    %v2099 = vsel %vm500, %v2075, %v2098
    %v2100 = vsel %vm194, %v2092, %v2093
    %v2101 = vsel %vm500, %v2079, %v2100
    %v2102 = vsel %vm194, %v2094, %v2095
    %v2103 = vsel %vm500, %v2083, %v2102
    %v2104 = vsel %vm194, %v2096, %v2097
    %v2105 = vsel %vm500, %v2087, %v2104
    %2114 = vst [vmem:[#allocation4 + $0x190] sm:$0xff] %v2099
    %2115 = vst.msk [vmem:[#allocation4 + $0x198] sm:$0xf] %vm122, %v2077
    %2116 = vst [vmem:[#allocation4 + $0x1a4] sm:$0xff] %v2101
    %2117 = vst.msk [vmem:[#allocation4 + $0x1ac] sm:$0xf] %vm122, %v2081
    %2118 = vst [vmem:[#allocation4 + $0x1b8] sm:$0xff] %v2103
    %2119 = vst.msk [vmem:[#allocation4 + $0x1c0] sm:$0xf] %vm122, %v2085
    %2120 = vst [vmem:[#allocation4 + $0x1cc] sm:$0xff] %v2105
    %2121 = vst.msk [vmem:[#allocation4 + $0x1d4] sm:$0xf] %vm122, %v2089
    %v2122 = vld [vmem:[%s83] sm:$0xff]
    %v2123 = vld [vmem:[%s83 + $0x8] sm:$0xf]
    %v2124 = vld [vmem:[%s83 + $0xc] sm:$0xff]
    %v2125 = vld [vmem:[%s83 + $0x14] sm:$0xf]
    %v2126 = vld [vmem:[%s83 + $0x18] sm:$0xff]
    %v2127 = vld [vmem:[%s83 + $0x20] sm:$0xf]
    %v2128 = vld [vmem:[%s83 + $0x24] sm:$0xff]
    %v2129 = vld [vmem:[%s83 + $0x2c] sm:$0xf]
    %2138 = vrot.lane.b32.xlu0 %v2122, 12
    %v2139 = vpop.permute.xlu0 %2138
    %2140 = vrot.lane.b32.xlu0 %v2123, 12
    %v2141 = vpop.permute.xlu0 %2140
    %2142 = vrot.lane.b32.xlu0 %v2124, 12
    %v2143 = vpop.permute.xlu0 %2142
    %2144 = vrot.lane.b32.xlu0 %v2125, 12
    %v2145 = vpop.permute.xlu0 %2144
    %2146 = vrot.lane.b32.xlu0 %v2126, 12
    %v2147 = vpop.permute.xlu0 %2146
    %2148 = vrot.lane.b32.xlu0 %v2127, 12
    %v2149 = vpop.permute.xlu0 %2148
    %2150 = vrot.lane.b32.xlu0 %v2128, 12
    %v2151 = vpop.permute.xlu0 %2150
    %2152 = vrot.lane.b32.xlu0 %v2129, 12
    %v2153 = vpop.permute.xlu0 %2152
    %v2154 = vrot.slane %v2139, 4
    %v2155 = vrot.slane %v2143, 4
    %v2156 = vrot.slane %v2147, 4
    %v2157 = vrot.slane %v2151, 4
    %v2158 = vsel %vm536, %v2154, %v2139
    %v2159 = vsel %vm536, %v2154, %v2141
    %v2160 = vsel %vm536, %v2155, %v2143
    %v2161 = vsel %vm536, %v2155, %v2145
    %v2162 = vsel %vm536, %v2156, %v2147
    %v2163 = vsel %vm536, %v2156, %v2149
    %v2164 = vsel %vm536, %v2157, %v2151
    %v2165 = vsel %vm536, %v2157, %v2153
    %2174 = vst.msk [vmem:[#allocation4 + $0x198] sm:$0xff] %vm162, %v2158
    %2175 = vst.msk [vmem:[#allocation4 + $0x1a0] sm:$0xf] %vm164, %v2159
    %2176 = vst.msk [vmem:[#allocation4 + $0x1ac] sm:$0xff] %vm162, %v2160
    %2177 = vst.msk [vmem:[#allocation4 + $0x1b4] sm:$0xf] %vm164, %v2161
    %2178 = vst.msk [vmem:[#allocation4 + $0x1c0] sm:$0xff] %vm162, %v2162
    %2179 = vst.msk [vmem:[#allocation4 + $0x1c8] sm:$0xf] %vm164, %v2163
    %2180 = vst.msk [vmem:[#allocation4 + $0x1d4] sm:$0xff] %vm162, %v2164
    %2181 = vst.msk [vmem:[#allocation4 + $0x1dc] sm:$0xf] %vm164, %v2165
    %v2182 = vld [vmem:[#allocation2] sm:$0xff]
    %v2183 = vld [vmem:[#allocation2 + $0x8] sm:$0xf]
    %v2184 = vld [vmem:[#allocation2 + $0xc] sm:$0xff]
    %v2185 = vld [vmem:[#allocation2 + $0x14] sm:$0xf]
    %v2186 = vld [vmem:[#allocation2 + $0x18] sm:$0xff]
    %v2187 = vld [vmem:[#allocation2 + $0x20] sm:$0xf]
    %v2188 = vld [vmem:[#allocation2 + $0x24] sm:$0xff]
    %v2189 = vld [vmem:[#allocation2 + $0x2c] sm:$0xf]
    %2198 = vrot.lane.b32.xlu0 %v2182, 92
    %v2199 = vpop.permute.xlu0 %2198
    %2200 = vrot.lane.b32.xlu0 %v2183, 92
    %v2201 = vpop.permute.xlu0 %2200
    %2202 = vrot.lane.b32.xlu0 %v2184, 92
    %v2203 = vpop.permute.xlu0 %2202
    %2204 = vrot.lane.b32.xlu0 %v2185, 92
    %v2205 = vpop.permute.xlu0 %2204
    %2206 = vrot.lane.b32.xlu0 %v2186, 92
    %v2207 = vpop.permute.xlu0 %2206
    %2208 = vrot.lane.b32.xlu0 %v2187, 92
    %v2209 = vpop.permute.xlu0 %2208
    %2210 = vrot.lane.b32.xlu0 %v2188, 92
    %v2211 = vpop.permute.xlu0 %2210
    %2212 = vrot.lane.b32.xlu0 %v2189, 92
    %v2213 = vpop.permute.xlu0 %2212
    %v2214 = vrot.slane %v2199, 4
    %v2215 = vrot.slane %v2201, 4
    %v2216 = vrot.slane %v2203, 4
    %v2217 = vrot.slane %v2205, 4
    %v2218 = vrot.slane %v2207, 4
    %v2219 = vrot.slane %v2209, 4
    %v2220 = vrot.slane %v2211, 4
    %v2221 = vrot.slane %v2213, 4
    %v2222 = vsel %vm194, %v2214, %v2215
    %v2223 = vsel %vm576, %v2199, %v2222
    %v2224 = vsel %vm194, %v2216, %v2217
    %v2225 = vsel %vm576, %v2203, %v2224
    %v2226 = vsel %vm194, %v2218, %v2219
    %v2227 = vsel %vm576, %v2207, %v2226
    %v2228 = vsel %vm194, %v2220, %v2221
    %v2229 = vsel %vm576, %v2211, %v2228
    %2238 = vst [vmem:[#allocation4 + $0x1e0] sm:$0xff] %v2223
    %2239 = vst.msk [vmem:[#allocation4 + $0x1e8] sm:$0xf] %vm122, %v2201
    %2240 = vst [vmem:[#allocation4 + $0x1f4] sm:$0xff] %v2225
    %2241 = vst.msk [vmem:[#allocation4 + $0x1fc] sm:$0xf] %vm122, %v2205
    %2242 = vst [vmem:[#allocation4 + $0x208] sm:$0xff] %v2227
    %2243 = vst.msk [vmem:[#allocation4 + $0x210] sm:$0xf] %vm122, %v2209
    %2244 = vst [vmem:[#allocation4 + $0x21c] sm:$0xff] %v2229
    %2245 = vst.msk [vmem:[#allocation4 + $0x224] sm:$0xf] %vm122, %v2213
    %v2246 = vld [vmem:[%s83] sm:$0xff]
    %v2247 = vld [vmem:[%s83 + $0x8] sm:$0xf]
    %v2248 = vld [vmem:[%s83 + $0xc] sm:$0xff]
    %v2249 = vld [vmem:[%s83 + $0x14] sm:$0xf]
    %v2250 = vld [vmem:[%s83 + $0x18] sm:$0xff]
    %v2251 = vld [vmem:[%s83 + $0x20] sm:$0xf]
    %v2252 = vld [vmem:[%s83 + $0x24] sm:$0xff]
    %v2253 = vld [vmem:[%s83 + $0x2c] sm:$0xf]
    %2262 = vrot.lane.b32.xlu0 %v2246, 124
    %v2263 = vpop.permute.xlu0 %2262
    %2264 = vrot.lane.b32.xlu0 %v2247, 124
    %v2265 = vpop.permute.xlu0 %2264
    %2266 = vrot.lane.b32.xlu0 %v2248, 124
    %v2267 = vpop.permute.xlu0 %2266
    %2268 = vrot.lane.b32.xlu0 %v2249, 124
    %v2269 = vpop.permute.xlu0 %2268
    %2270 = vrot.lane.b32.xlu0 %v2250, 124
    %v2271 = vpop.permute.xlu0 %2270
    %2272 = vrot.lane.b32.xlu0 %v2251, 124
    %v2273 = vpop.permute.xlu0 %2272
    %2274 = vrot.lane.b32.xlu0 %v2252, 124
    %v2275 = vpop.permute.xlu0 %2274
    %2276 = vrot.lane.b32.xlu0 %v2253, 124
    %v2277 = vpop.permute.xlu0 %2276
    %v2278 = vrot.slane %v2263, 4
    %v2279 = vrot.slane %v2265, 4
    %v2280 = vrot.slane %v2267, 4
    %v2281 = vrot.slane %v2269, 4
    %v2282 = vrot.slane %v2271, 4
    %v2283 = vrot.slane %v2273, 4
    %v2284 = vrot.slane %v2275, 4
    %v2285 = vrot.slane %v2277, 4
    %v2286 = vsel %vm194, %v2278, %v2279
    %v2287 = vsel %vm615, %v2263, %v2286
    %v2288 = vsel %vm194, %v2280, %v2281
    %v2289 = vsel %vm615, %v2267, %v2288
    %v2290 = vsel %vm194, %v2282, %v2283
    %v2291 = vsel %vm615, %v2271, %v2290
    %v2292 = vsel %vm194, %v2284, %v2285
    %v2293 = vsel %vm615, %v2275, %v2292
    %2302 = vst.msk [vmem:[#allocation4 + $0x1e8] sm:$0xff] %vm162, %v2287
    %2303 = vst.msk [vmem:[#allocation4 + $0x1f0] sm:$0xf] %vm164, %v2265
    %2304 = vst.msk [vmem:[#allocation4 + $0x1fc] sm:$0xff] %vm162, %v2289
    %2305 = vst.msk [vmem:[#allocation4 + $0x204] sm:$0xf] %vm164, %v2269
    %2306 = vst.msk [vmem:[#allocation4 + $0x210] sm:$0xff] %vm162, %v2291
    %2307 = vst.msk [vmem:[#allocation4 + $0x218] sm:$0xf] %vm164, %v2273
    %2308 = vst.msk [vmem:[#allocation4 + $0x224] sm:$0xff] %vm162, %v2293
    %2309 = vst.msk [vmem:[#allocation4 + $0x22c] sm:$0xf] %vm164, %v2277
    %v2310 = vld [vmem:[#allocation2] sm:$0xff]
    %v2311 = vld [vmem:[#allocation2 + $0x8] sm:$0xf]
    %v2312 = vld [vmem:[#allocation2 + $0xc] sm:$0xff]
    %v2313 = vld [vmem:[#allocation2 + $0x14] sm:$0xf]
    %v2314 = vld [vmem:[#allocation2 + $0x18] sm:$0xff]
    %v2315 = vld [vmem:[#allocation2 + $0x20] sm:$0xf]
    %v2316 = vld [vmem:[#allocation2 + $0x24] sm:$0xff]
    %v2317 = vld [vmem:[#allocation2 + $0x2c] sm:$0xf]
    %2326 = vrot.lane.b32.xlu0 %v2310, 91
    %v2327 = vpop.permute.xlu0 %2326
    %2328 = vrot.lane.b32.xlu0 %v2311, 91
    %v2329 = vpop.permute.xlu0 %2328
    %2330 = vrot.lane.b32.xlu0 %v2312, 91
    %v2331 = vpop.permute.xlu0 %2330
    %2332 = vrot.lane.b32.xlu0 %v2313, 91
    %v2333 = vpop.permute.xlu0 %2332
    %2334 = vrot.lane.b32.xlu0 %v2314, 91
    %v2335 = vpop.permute.xlu0 %2334
    %2336 = vrot.lane.b32.xlu0 %v2315, 91
    %v2337 = vpop.permute.xlu0 %2336
    %2338 = vrot.lane.b32.xlu0 %v2316, 91
    %v2339 = vpop.permute.xlu0 %2338
    %2340 = vrot.lane.b32.xlu0 %v2317, 91
    %v2341 = vpop.permute.xlu0 %2340
    %v2342 = vrot.slane %v2327, 4
    %v2343 = vrot.slane %v2329, 4
    %v2344 = vrot.slane %v2331, 4
    %v2345 = vrot.slane %v2333, 4
    %v2346 = vrot.slane %v2335, 4
    %v2347 = vrot.slane %v2337, 4
    %v2348 = vrot.slane %v2339, 4
    %v2349 = vrot.slane %v2341, 4
    %v2350 = vsel %vm194, %v2342, %v2343
    %v2351 = vsel %vm654, %v2327, %v2350
    %v2352 = vsel %vm194, %v2344, %v2345
    %v2353 = vsel %vm654, %v2331, %v2352
    %v2354 = vsel %vm194, %v2346, %v2347
    %v2355 = vsel %vm654, %v2335, %v2354
    %v2356 = vsel %vm194, %v2348, %v2349
    %v2357 = vsel %vm654, %v2339, %v2356
    %2366 = vst [vmem:[#allocation4 + $0x230] sm:$0xff] %v2351
    %2367 = vst.msk [vmem:[#allocation4 + $0x238] sm:$0xf] %vm122, %v2329
    %2368 = vst [vmem:[#allocation4 + $0x244] sm:$0xff] %v2353
    %2369 = vst.msk [vmem:[#allocation4 + $0x24c] sm:$0xf] %vm122, %v2333
    %2370 = vst [vmem:[#allocation4 + $0x258] sm:$0xff] %v2355
    %2371 = vst.msk [vmem:[#allocation4 + $0x260] sm:$0xf] %vm122, %v2337
    %2372 = vst [vmem:[#allocation4 + $0x26c] sm:$0xff] %v2357
    %2373 = vst.msk [vmem:[#allocation4 + $0x274] sm:$0xf] %vm122, %v2341
    %v2374 = vld [vmem:[%s83] sm:$0xff]
    %v2375 = vld [vmem:[%s83 + $0x8] sm:$0xf]
    %v2376 = vld [vmem:[%s83 + $0xc] sm:$0xff]
    %v2377 = vld [vmem:[%s83 + $0x14] sm:$0xf]
    %v2378 = vld [vmem:[%s83 + $0x18] sm:$0xff]
    %v2379 = vld [vmem:[%s83 + $0x20] sm:$0xf]
    %v2380 = vld [vmem:[%s83 + $0x24] sm:$0xff]
    %v2381 = vld [vmem:[%s83 + $0x2c] sm:$0xf]
    %2390 = vrot.lane.b32.xlu0 %v2374, 123
    %v2391 = vpop.permute.xlu0 %2390
    %2392 = vrot.lane.b32.xlu0 %v2375, 123
    %v2393 = vpop.permute.xlu0 %2392
    %2394 = vrot.lane.b32.xlu0 %v2376, 123
    %v2395 = vpop.permute.xlu0 %2394
    %2396 = vrot.lane.b32.xlu0 %v2377, 123
    %v2397 = vpop.permute.xlu0 %2396
    %2398 = vrot.lane.b32.xlu0 %v2378, 123
    %v2399 = vpop.permute.xlu0 %2398
    %2400 = vrot.lane.b32.xlu0 %v2379, 123
    %v2401 = vpop.permute.xlu0 %2400
    %2402 = vrot.lane.b32.xlu0 %v2380, 123
    %v2403 = vpop.permute.xlu0 %2402
    %2404 = vrot.lane.b32.xlu0 %v2381, 123
    %v2405 = vpop.permute.xlu0 %2404
    %v2406 = vrot.slane %v2391, 4
    %v2407 = vrot.slane %v2393, 4
    %v2408 = vrot.slane %v2395, 4
    %v2409 = vrot.slane %v2397, 4
    %v2410 = vrot.slane %v2399, 4
    %v2411 = vrot.slane %v2401, 4
    %v2412 = vrot.slane %v2403, 4
    %v2413 = vrot.slane %v2405, 4
    %v2414 = vsel %vm194, %v2406, %v2407
    %v2415 = vsel %vm693, %v2391, %v2414
    %v2416 = vsel %vm194, %v2408, %v2409
    %v2417 = vsel %vm693, %v2395, %v2416
    %v2418 = vsel %vm194, %v2410, %v2411
    %v2419 = vsel %vm693, %v2399, %v2418
    %v2420 = vsel %vm194, %v2412, %v2413
    %v2421 = vsel %vm693, %v2403, %v2420
    %2430 = vst.msk [vmem:[#allocation4 + $0x238] sm:$0xff] %vm162, %v2415
    %2431 = vst.msk [vmem:[#allocation4 + $0x240] sm:$0xf] %vm164, %v2393
    %2432 = vst.msk [vmem:[#allocation4 + $0x24c] sm:$0xff] %vm162, %v2417
    %2433 = vst.msk [vmem:[#allocation4 + $0x254] sm:$0xf] %vm164, %v2397
    %2434 = vst.msk [vmem:[#allocation4 + $0x260] sm:$0xff] %vm162, %v2419
    %2435 = vst.msk [vmem:[#allocation4 + $0x268] sm:$0xf] %vm164, %v2401
    %2436 = vst.msk [vmem:[#allocation4 + $0x274] sm:$0xff] %vm162, %v2421
    %2437 = vst.msk [vmem:[#allocation4 + $0x27c] sm:$0xf] %vm164, %v2405
    %v2438 = vld [vmem:[#allocation2] sm:$0xff]
    %v2439 = vld [vmem:[#allocation2 + $0x8] sm:$0xf]
    %v2440 = vld [vmem:[#allocation2 + $0xc] sm:$0xff]
    %v2441 = vld [vmem:[#allocation2 + $0x14] sm:$0xf]
    %v2442 = vld [vmem:[#allocation2 + $0x18] sm:$0xff]
    %v2443 = vld [vmem:[#allocation2 + $0x20] sm:$0xf]
    %v2444 = vld [vmem:[#allocation2 + $0x24] sm:$0xff]
    %v2445 = vld [vmem:[#allocation2 + $0x2c] sm:$0xf]
    %2454 = vrot.lane.b32.xlu0 %v2438, 90
    %v2455 = vpop.permute.xlu0 %2454
    %2456 = vrot.lane.b32.xlu0 %v2439, 90
    %v2457 = vpop.permute.xlu0 %2456
    %2458 = vrot.lane.b32.xlu0 %v2440, 90
    %v2459 = vpop.permute.xlu0 %2458
    %2460 = vrot.lane.b32.xlu0 %v2441, 90
    %v2461 = vpop.permute.xlu0 %2460
    %2462 = vrot.lane.b32.xlu0 %v2442, 90
    %v2463 = vpop.permute.xlu0 %2462
    %2464 = vrot.lane.b32.xlu0 %v2443, 90
    %v2465 = vpop.permute.xlu0 %2464
    %2466 = vrot.lane.b32.xlu0 %v2444, 90
    %v2467 = vpop.permute.xlu0 %2466
    %2468 = vrot.lane.b32.xlu0 %v2445, 90
    %v2469 = vpop.permute.xlu0 %2468
    %v2470 = vrot.slane %v2455, 4
    %v2471 = vrot.slane %v2457, 4
    %v2472 = vrot.slane %v2459, 4
    %v2473 = vrot.slane %v2461, 4
    %v2474 = vrot.slane %v2463, 4
    %v2475 = vrot.slane %v2465, 4
    %v2476 = vrot.slane %v2467, 4
    %v2477 = vrot.slane %v2469, 4
    %v2478 = vsel %vm194, %v2470, %v2471
    %v2479 = vsel %vm732, %v2455, %v2478
    %v2480 = vsel %vm194, %v2472, %v2473
    %v2481 = vsel %vm732, %v2459, %v2480
    %v2482 = vsel %vm194, %v2474, %v2475
    %v2483 = vsel %vm732, %v2463, %v2482
    %v2484 = vsel %vm194, %v2476, %v2477
    %v2485 = vsel %vm732, %v2467, %v2484
    %2494 = vst [vmem:[#allocation4 + $0x280] sm:$0xff] %v2479
    %2495 = vst.msk [vmem:[#allocation4 + $0x288] sm:$0xf] %vm122, %v2457
    %2496 = vst [vmem:[#allocation4 + $0x294] sm:$0xff] %v2481
    %2497 = vst.msk [vmem:[#allocation4 + $0x29c] sm:$0xf] %vm122, %v2461
    %2498 = vst [vmem:[#allocation4 + $0x2a8] sm:$0xff] %v2483
    %2499 = vst.msk [vmem:[#allocation4 + $0x2b0] sm:$0xf] %vm122, %v2465
    %2500 = vst [vmem:[#allocation4 + $0x2bc] sm:$0xff] %v2485
    %2501 = vst.msk [vmem:[#allocation4 + $0x2c4] sm:$0xf] %vm122, %v2469
    %v2502 = vld [vmem:[%s83] sm:$0xff]
    %v2503 = vld [vmem:[%s83 + $0x8] sm:$0xf]
    %v2504 = vld [vmem:[%s83 + $0xc] sm:$0xff]
    %v2505 = vld [vmem:[%s83 + $0x14] sm:$0xf]
    %v2506 = vld [vmem:[%s83 + $0x18] sm:$0xff]
    %v2507 = vld [vmem:[%s83 + $0x20] sm:$0xf]
    %v2508 = vld [vmem:[%s83 + $0x24] sm:$0xff]
    %v2509 = vld [vmem:[%s83 + $0x2c] sm:$0xf]
    %2518 = vrot.lane.b32.xlu0 %v2502, 122
    %v2519 = vpop.permute.xlu0 %2518
    %2520 = vrot.lane.b32.xlu0 %v2503, 122
    %v2521 = vpop.permute.xlu0 %2520
    %2522 = vrot.lane.b32.xlu0 %v2504, 122
    %v2523 = vpop.permute.xlu0 %2522
    %2524 = vrot.lane.b32.xlu0 %v2505, 122
    %v2525 = vpop.permute.xlu0 %2524
    %2526 = vrot.lane.b32.xlu0 %v2506, 122
    %v2527 = vpop.permute.xlu0 %2526
    %2528 = vrot.lane.b32.xlu0 %v2507, 122
    %v2529 = vpop.permute.xlu0 %2528
    %2530 = vrot.lane.b32.xlu0 %v2508, 122
    %v2531 = vpop.permute.xlu0 %2530
    %2532 = vrot.lane.b32.xlu0 %v2509, 122
    %v2533 = vpop.permute.xlu0 %2532
    %v2534 = vrot.slane %v2519, 4
    %v2535 = vrot.slane %v2521, 4
    %v2536 = vrot.slane %v2523, 4
    %v2537 = vrot.slane %v2525, 4
    %v2538 = vrot.slane %v2527, 4
    %v2539 = vrot.slane %v2529, 4
    %v2540 = vrot.slane %v2531, 4
    %v2541 = vrot.slane %v2533, 4
    %v2542 = vsel %vm194, %v2534, %v2535
    %v2543 = vsel %vm771, %v2519, %v2542
    %v2544 = vsel %vm194, %v2536, %v2537
    %v2545 = vsel %vm771, %v2523, %v2544
    %v2546 = vsel %vm194, %v2538, %v2539
    %v2547 = vsel %vm771, %v2527, %v2546
    %v2548 = vsel %vm194, %v2540, %v2541
    %v2549 = vsel %vm771, %v2531, %v2548
    %2558 = vst.msk [vmem:[#allocation4 + $0x288] sm:$0xff] %vm162, %v2543
    %2559 = vst.msk [vmem:[#allocation4 + $0x290] sm:$0xf] %vm164, %v2521
    %2560 = vst.msk [vmem:[#allocation4 + $0x29c] sm:$0xff] %vm162, %v2545
    %2561 = vst.msk [vmem:[#allocation4 + $0x2a4] sm:$0xf] %vm164, %v2525
    %2562 = vst.msk [vmem:[#allocation4 + $0x2b0] sm:$0xff] %vm162, %v2547
    %2563 = vst.msk [vmem:[#allocation4 + $0x2b8] sm:$0xf] %vm164, %v2529
    %2564 = vst.msk [vmem:[#allocation4 + $0x2c4] sm:$0xff] %vm162, %v2549
    %2565 = vst.msk [vmem:[#allocation4 + $0x2cc] sm:$0xf] %vm164, %v2533
    %v2566 = vld [vmem:[#allocation4] sm:$0xff]
    %v2567 = vld [vmem:[#allocation4 + $0x8] sm:$0xff]
    %v2568 = vld [vmem:[#allocation4 + $0x10] sm:$0xf]
    %v2569 = vld [vmem:[#allocation4 + $0x14] sm:$0xff]
    %v2570 = vld [vmem:[#allocation4 + $0x1c] sm:$0xff]
    %v2571 = vld [vmem:[#allocation4 + $0x24] sm:$0xf]
    %v2572 = vld [vmem:[#allocation4 + $0x28] sm:$0xff]
    %v2573 = vld [vmem:[#allocation4 + $0x30] sm:$0xff]
    %v2574 = vld [vmem:[#allocation4 + $0x38] sm:$0xf]
    %v2575 = vld [vmem:[#allocation4 + $0x3c] sm:$0xff]
    %v2576 = vld [vmem:[#allocation4 + $0x44] sm:$0xff]
    %v2577 = vld [vmem:[#allocation4 + $0x4c] sm:$0xf]
    %v2578 = vld [vmem:[#allocation4 + $0x50] sm:$0xff]
    %v2579 = vld [vmem:[#allocation4 + $0x58] sm:$0xff]
    %v2580 = vld [vmem:[#allocation4 + $0x60] sm:$0xf]
    %v2581 = vld [vmem:[#allocation4 + $0x64] sm:$0xff]
    %v2582 = vld [vmem:[#allocation4 + $0x6c] sm:$0xff]
    %v2583 = vld [vmem:[#allocation4 + $0x74] sm:$0xf]
    %v2584 = vld [vmem:[#allocation4 + $0x78] sm:$0xff]
    %v2585 = vld [vmem:[#allocation4 + $0x80] sm:$0xff]
    %v2586 = vld [vmem:[#allocation4 + $0x88] sm:$0xf]
    %v2587 = vld [vmem:[#allocation4 + $0x8c] sm:$0xff]
    %v2588 = vld [vmem:[#allocation4 + $0x94] sm:$0xff]
    %v2589 = vld [vmem:[#allocation4 + $0x9c] sm:$0xf]
    %v2590 = vld [vmem:[#allocation4 + $0xa0] sm:$0xff]
    %v2591 = vld [vmem:[#allocation4 + $0xa8] sm:$0xff]
    %v2592 = vld [vmem:[#allocation4 + $0xb0] sm:$0xf]
    %v2593 = vld [vmem:[#allocation4 + $0xb4] sm:$0xff]
    %v2594 = vld [vmem:[#allocation4 + $0xbc] sm:$0xff]
    %v2595 = vld [vmem:[#allocation4 + $0xc4] sm:$0xf]
    %v2596 = vld [vmem:[#allocation4 + $0xc8] sm:$0xff]
    %v2597 = vld [vmem:[#allocation4 + $0xd0] sm:$0xff]
    %v2598 = vld [vmem:[#allocation4 + $0xd8] sm:$0xf]
    %v2599 = vld [vmem:[#allocation4 + $0xdc] sm:$0xff]
    %v2600 = vld [vmem:[#allocation4 + $0xe4] sm:$0xff]
    %v2601 = vld [vmem:[#allocation4 + $0xec] sm:$0xf]
    %v2602 = vld [vmem:[#allocation4 + $0xf0] sm:$0xff]
    %v2603 = vld [vmem:[#allocation4 + $0xf8] sm:$0xff]
    %v2604 = vld [vmem:[#allocation4 + $0x100] sm:$0xf]
    %v2605 = vld [vmem:[#allocation4 + $0x104] sm:$0xff]
    %v2606 = vld [vmem:[#allocation4 + $0x10c] sm:$0xff]
    %v2607 = vld [vmem:[#allocation4 + $0x114] sm:$0xf]
    %v2608 = vld [vmem:[#allocation4 + $0x118] sm:$0xff]
    %v2609 = vld [vmem:[#allocation4 + $0x120] sm:$0xff]
    %v2610 = vld [vmem:[#allocation4 + $0x128] sm:$0xf]
    %v2611 = vld [vmem:[#allocation4 + $0x12c] sm:$0xff]
    %v2612 = vld [vmem:[#allocation4 + $0x134] sm:$0xff]
    %v2613 = vld [vmem:[#allocation4 + $0x13c] sm:$0xf]
    %v2614 = vld [vmem:[#allocation4 + $0x140] sm:$0xff]
    %v2615 = vld [vmem:[#allocation4 + $0x148] sm:$0xff]
    %v2616 = vld [vmem:[#allocation4 + $0x150] sm:$0xf]
    %v2617 = vld [vmem:[#allocation4 + $0x154] sm:$0xff]
    %v2618 = vld [vmem:[#allocation4 + $0x15c] sm:$0xff]
    %v2619 = vld [vmem:[#allocation4 + $0x164] sm:$0xf]
    %v2620 = vld [vmem:[#allocation4 + $0x168] sm:$0xff]
    %v2621 = vld [vmem:[#allocation4 + $0x170] sm:$0xff]
    %v2622 = vld [vmem:[#allocation4 + $0x178] sm:$0xf]
    %v2623 = vld [vmem:[#allocation4 + $0x17c] sm:$0xff]
    %v2624 = vld [vmem:[#allocation4 + $0x184] sm:$0xff]
    %v2625 = vld [vmem:[#allocation4 + $0x18c] sm:$0xf]
    %v2626 = vld [vmem:[#allocation4 + $0x190] sm:$0xff]
    %v2627 = vld [vmem:[#allocation4 + $0x198] sm:$0xff]
    %v2628 = vld [vmem:[#allocation4 + $0x1a0] sm:$0xf]
    %v2629 = vld [vmem:[#allocation4 + $0x1a4] sm:$0xff]
    %v2630 = vld [vmem:[#allocation4 + $0x1ac] sm:$0xff]
    %v2631 = vld [vmem:[#allocation4 + $0x1b4] sm:$0xf]
    %v2632 = vld [vmem:[#allocation4 + $0x1b8] sm:$0xff]
    %v2633 = vld [vmem:[#allocation4 + $0x1c0] sm:$0xff]
    %v2634 = vld [vmem:[#allocation4 + $0x1c8] sm:$0xf]
    %v2635 = vld [vmem:[#allocation4 + $0x1cc] sm:$0xff]
    %v2636 = vld [vmem:[#allocation4 + $0x1d4] sm:$0xff]
    %v2637 = vld [vmem:[#allocation4 + $0x1dc] sm:$0xf]
    %v2638 = vld [vmem:[#allocation4 + $0x1e0] sm:$0xff]
    %v2639 = vld [vmem:[#allocation4 + $0x1e8] sm:$0xff]
    %v2640 = vld [vmem:[#allocation4 + $0x1f0] sm:$0xf]
    %v2641 = vld [vmem:[#allocation4 + $0x1f4] sm:$0xff]
    %v2642 = vld [vmem:[#allocation4 + $0x1fc] sm:$0xff]
    %v2643 = vld [vmem:[#allocation4 + $0x204] sm:$0xf]
    %v2644 = vld [vmem:[#allocation4 + $0x208] sm:$0xff]
    %v2645 = vld [vmem:[#allocation4 + $0x210] sm:$0xff]
    %v2646 = vld [vmem:[#allocation4 + $0x218] sm:$0xf]
    %v2647 = vld [vmem:[#allocation4 + $0x21c] sm:$0xff]
    %v2648 = vld [vmem:[#allocation4 + $0x224] sm:$0xff]
    %v2649 = vld [vmem:[#allocation4 + $0x22c] sm:$0xf]
    %v2650 = vld [vmem:[#allocation4 + $0x230] sm:$0xff]
    %v2651 = vld [vmem:[#allocation4 + $0x238] sm:$0xff]
    %v2652 = vld [vmem:[#allocation4 + $0x240] sm:$0xf]
    %v2653 = vld [vmem:[#allocation4 + $0x244] sm:$0xff]
    %v2654 = vld [vmem:[#allocation4 + $0x24c] sm:$0xff]
    %v2655 = vld [vmem:[#allocation4 + $0x254] sm:$0xf]
    %v2656 = vld [vmem:[#allocation4 + $0x258] sm:$0xff]
    %v2657 = vld [vmem:[#allocation4 + $0x260] sm:$0xff]
    %v2658 = vld [vmem:[#allocation4 + $0x268] sm:$0xf]
    %v2659 = vld [vmem:[#allocation4 + $0x26c] sm:$0xff]
    %v2660 = vld [vmem:[#allocation4 + $0x274] sm:$0xff]
    %v2661 = vld [vmem:[#allocation4 + $0x27c] sm:$0xf]
    %v2662 = vld [vmem:[#allocation4 + $0x280] sm:$0xff]
    %v2663 = vld [vmem:[#allocation4 + $0x288] sm:$0xff]
    %v2664 = vld [vmem:[#allocation4 + $0x290] sm:$0xf]
    %v2665 = vld [vmem:[#allocation4 + $0x294] sm:$0xff]
    %v2666 = vld [vmem:[#allocation4 + $0x29c] sm:$0xff]
    %v2667 = vld [vmem:[#allocation4 + $0x2a4] sm:$0xf]
    %v2668 = vld [vmem:[#allocation4 + $0x2a8] sm:$0xff]
    %v2669 = vld [vmem:[#allocation4 + $0x2b0] sm:$0xff]
    %v2670 = vld [vmem:[#allocation4 + $0x2b8] sm:$0xf]
    %v2671 = vld [vmem:[#allocation4 + $0x2bc] sm:$0xff]
    %v2672 = vld [vmem:[#allocation4 + $0x2c4] sm:$0xff]
    %v2673 = vld [vmem:[#allocation4 + $0x2cc] sm:$0xf]
    %v2674 = vld [vmem:[%s3] sm:$0xff]
    %v2675 = vld [vmem:[%s3 + $0x8] sm:$0xf]
    %v2676 = vld [vmem:[%s3 + $0xc] sm:$0xff]
    %v2677 = vld [vmem:[%s3 + $0x14] sm:$0xf]
    %v2678 = vld [vmem:[%s3 + $0x18] sm:$0xff]
    %v2679 = vld [vmem:[%s3 + $0x20] sm:$0xf]
    %v2680 = vld [vmem:[%s3 + $0x24] sm:$0xff]
    %v2681 = vld [vmem:[%s3 + $0x2c] sm:$0xf]
    %v2682 = vld [vmem:[%s4] sm:$0xff]
    %v2683 = vld [vmem:[%s4 + $0x8] sm:$0xff]
    %v2684 = vld [vmem:[%s4 + $0x10] sm:$0xff]
    %v2685 = vld [vmem:[%s4 + $0x18] sm:$0xff]
    %2687 = vset.pattern.permute.xlu0 0
    %2688 = vperm.xlu0 %2687, %v2682
    %v2689 = vpop.permute.xlu0 %2688
    %2692 = vset.pattern.permute.xlu0 0
    %2693 = vperm.xlu0 %2692, %v2683
    %v2694 = vpop.permute.xlu0 %2693
    %2697 = vset.pattern.permute.xlu0 0
    %2698 = vperm.xlu0 %2697, %v2684
    %v2699 = vpop.permute.xlu0 %2698
    %2702 = vset.pattern.permute.xlu0 0
    %2703 = vperm.xlu0 %2702, %v2685
    %v2704 = vpop.permute.xlu0 %2703
    %v2714 = vunpack.c.l.b16 %v2674
    %v2715 = vunpack.c.h.b16 %v2674
    %v2716 = vunpack.c.l.b16 %v2675
    %v2717 = vunpack.c.l.b16 %v2676
    %v2718 = vunpack.c.h.b16 %v2676
    %v2719 = vunpack.c.l.b16 %v2677
    %v2720 = vunpack.c.l.b16 %v2678
    %v2721 = vunpack.c.h.b16 %v2678
    %v2722 = vunpack.c.l.b16 %v2679
    %v2723 = vunpack.c.l.b16 %v2680
    %v2724 = vunpack.c.h.b16 %v2680
    %v2725 = vunpack.c.l.b16 %v2681
    %v2726 = vpack.c.b16 %v2717, %v2714
    %v2727 = vpack.c.b16 %v2718, %v2715
    %v2728 = vpack.c.b16 %v2719, %v2716
    %v2729 = vpack.c.b16 %v2723, %v2720
    %v2730 = vpack.c.b16 %v2724, %v2721
    %v2731 = vpack.c.b16 %v2725, %v2722
    %v2844 = vunpack.c.l.b16 %v2566
    %v2845 = vunpack.c.h.b16 %v2566
    %v2846 = vunpack.c.l.b16 %v2567
    %v2847 = vunpack.c.h.b16 %v2567
    %v2848 = vunpack.c.l.b16 %v2568
    %v2849 = vunpack.c.l.b16 %v2569
    %v2850 = vunpack.c.h.b16 %v2569
    %v2851 = vunpack.c.l.b16 %v2570
    %v2852 = vunpack.c.h.b16 %v2570
    %v2853 = vunpack.c.l.b16 %v2571
    %v2854 = vunpack.c.l.b16 %v2572
    %v2855 = vunpack.c.h.b16 %v2572
    %v2856 = vunpack.c.l.b16 %v2573
    %v2857 = vunpack.c.h.b16 %v2573
    %v2858 = vunpack.c.l.b16 %v2574
    %v2859 = vunpack.c.l.b16 %v2575
    %v2860 = vunpack.c.h.b16 %v2575
    %v2861 = vunpack.c.l.b16 %v2576
    %v2862 = vunpack.c.h.b16 %v2576
    %v2863 = vunpack.c.l.b16 %v2577
    %v2864 = vunpack.c.l.b16 %v2578
    %v2865 = vunpack.c.h.b16 %v2578
    %v2866 = vunpack.c.l.b16 %v2579
    %v2867 = vunpack.c.h.b16 %v2579
    %v2868 = vunpack.c.l.b16 %v2580
    %v2869 = vunpack.c.l.b16 %v2581
    %v2870 = vunpack.c.h.b16 %v2581
    %v2871 = vunpack.c.l.b16 %v2582
    %v2872 = vunpack.c.h.b16 %v2582
    %v2873 = vunpack.c.l.b16 %v2583
    %v2874 = vunpack.c.l.b16 %v2584
    %v2875 = vunpack.c.h.b16 %v2584
    %v2876 = vunpack.c.l.b16 %v2585
    %v2877 = vunpack.c.h.b16 %v2585
    %v2878 = vunpack.c.l.b16 %v2586
    %v2879 = vunpack.c.l.b16 %v2587
    %v2880 = vunpack.c.h.b16 %v2587
    %v2881 = vunpack.c.l.b16 %v2588
    %v2882 = vunpack.c.h.b16 %v2588
    %v2883 = vunpack.c.l.b16 %v2589
    %v2884 = vunpack.c.l.b16 %v2590
    %v2885 = vunpack.c.h.b16 %v2590
    %v2886 = vunpack.c.l.b16 %v2591
    %v2887 = vunpack.c.h.b16 %v2591
    %v2888 = vunpack.c.l.b16 %v2592
    %v2889 = vunpack.c.l.b16 %v2593
    %v2890 = vunpack.c.h.b16 %v2593
    %v2891 = vunpack.c.l.b16 %v2594
    %v2892 = vunpack.c.h.b16 %v2594
    %v2893 = vunpack.c.l.b16 %v2595
    %v2894 = vunpack.c.l.b16 %v2596
    %v2895 = vunpack.c.h.b16 %v2596
    %v2896 = vunpack.c.l.b16 %v2597
    %v2897 = vunpack.c.h.b16 %v2597
    %v2898 = vunpack.c.l.b16 %v2598
    %v2899 = vunpack.c.l.b16 %v2599
    %v2900 = vunpack.c.h.b16 %v2599
    %v2901 = vunpack.c.l.b16 %v2600
    %v2902 = vunpack.c.h.b16 %v2600
    %v2903 = vunpack.c.l.b16 %v2601
    %v2904 = vunpack.c.l.b16 %v2602
    %v2905 = vunpack.c.h.b16 %v2602
    %v2906 = vunpack.c.l.b16 %v2603
    %v2907 = vunpack.c.h.b16 %v2603
    %v2908 = vunpack.c.l.b16 %v2604
    %v2909 = vunpack.c.l.b16 %v2605
    %v2910 = vunpack.c.h.b16 %v2605
    %v2911 = vunpack.c.l.b16 %v2606
    %v2912 = vunpack.c.h.b16 %v2606
    %v2913 = vunpack.c.l.b16 %v2607
    %v2914 = vunpack.c.l.b16 %v2608
    %v2915 = vunpack.c.h.b16 %v2608
    %v2916 = vunpack.c.l.b16 %v2609
    %v2917 = vunpack.c.h.b16 %v2609
    %v2918 = vunpack.c.l.b16 %v2610
    %v2919 = vunpack.c.l.b16 %v2611
    %v2920 = vunpack.c.h.b16 %v2611
    %v2921 = vunpack.c.l.b16 %v2612
    %v2922 = vunpack.c.h.b16 %v2612
    %v2923 = vunpack.c.l.b16 %v2613
    %v2924 = vunpack.c.l.b16 %v2614
    %v2925 = vunpack.c.h.b16 %v2614
    %v2926 = vunpack.c.l.b16 %v2615
    %v2927 = vunpack.c.h.b16 %v2615
    %v2928 = vunpack.c.l.b16 %v2616
    %v2929 = vunpack.c.l.b16 %v2617
    %v2930 = vunpack.c.h.b16 %v2617
    %v2931 = vunpack.c.l.b16 %v2618
    %v2932 = vunpack.c.h.b16 %v2618
    %v2933 = vunpack.c.l.b16 %v2619
    %v2934 = vunpack.c.l.b16 %v2620
    %v2935 = vunpack.c.h.b16 %v2620
    %v2936 = vunpack.c.l.b16 %v2621
    %v2937 = vunpack.c.h.b16 %v2621
    %v2938 = vunpack.c.l.b16 %v2622
    %v2939 = vunpack.c.l.b16 %v2623
    %v2940 = vunpack.c.h.b16 %v2623
    %v2941 = vunpack.c.l.b16 %v2624
    %v2942 = vunpack.c.h.b16 %v2624
    %v2943 = vunpack.c.l.b16 %v2625
    %v2944 = vunpack.c.l.b16 %v2626
    %v2945 = vunpack.c.h.b16 %v2626
    %v2946 = vunpack.c.l.b16 %v2627
    %v2947 = vunpack.c.h.b16 %v2627
    %v2948 = vunpack.c.l.b16 %v2628
    %v2949 = vunpack.c.l.b16 %v2629
    %v2950 = vunpack.c.h.b16 %v2629
    %v2951 = vunpack.c.l.b16 %v2630
    %v2952 = vunpack.c.h.b16 %v2630
    %v2953 = vunpack.c.l.b16 %v2631
    %v2954 = vunpack.c.l.b16 %v2632
    %v2955 = vunpack.c.h.b16 %v2632
    %v2956 = vunpack.c.l.b16 %v2633
    %v2957 = vunpack.c.h.b16 %v2633
    %v2958 = vunpack.c.l.b16 %v2634
    %v2959 = vunpack.c.l.b16 %v2635
    %v2960 = vunpack.c.h.b16 %v2635
    %v2961 = vunpack.c.l.b16 %v2636
    %v2962 = vunpack.c.h.b16 %v2636
    %v2963 = vunpack.c.l.b16 %v2637
    %v2964 = vunpack.c.l.b16 %v2638
    %v2965 = vunpack.c.h.b16 %v2638
    %v2966 = vunpack.c.l.b16 %v2639
    %v2967 = vunpack.c.h.b16 %v2639
    %v2968 = vunpack.c.l.b16 %v2640
    %v2969 = vunpack.c.l.b16 %v2641
    %v2970 = vunpack.c.h.b16 %v2641
    %v2971 = vunpack.c.l.b16 %v2642
    %v2972 = vunpack.c.h.b16 %v2642
    %v2973 = vunpack.c.l.b16 %v2643
    %v2974 = vunpack.c.l.b16 %v2644
    %v2975 = vunpack.c.h.b16 %v2644
    %v2976 = vunpack.c.l.b16 %v2645
    %v2977 = vunpack.c.h.b16 %v2645
    %v2978 = vunpack.c.l.b16 %v2646
    %v2979 = vunpack.c.l.b16 %v2647
    %v2980 = vunpack.c.h.b16 %v2647
    %v2981 = vunpack.c.l.b16 %v2648
    %v2982 = vunpack.c.h.b16 %v2648
    %v2983 = vunpack.c.l.b16 %v2649
    %v2984 = vunpack.c.l.b16 %v2650
    %v2985 = vunpack.c.h.b16 %v2650
    %v2986 = vunpack.c.l.b16 %v2651
    %v2987 = vunpack.c.h.b16 %v2651
    %v2988 = vunpack.c.l.b16 %v2652
    %v2989 = vunpack.c.l.b16 %v2653
    %v2990 = vunpack.c.h.b16 %v2653
    %v2991 = vunpack.c.l.b16 %v2654
    %v2992 = vunpack.c.h.b16 %v2654
    %v2993 = vunpack.c.l.b16 %v2655
    %v2994 = vunpack.c.l.b16 %v2656
    %v2995 = vunpack.c.h.b16 %v2656
    %v2996 = vunpack.c.l.b16 %v2657
    %v2997 = vunpack.c.h.b16 %v2657
    %v2998 = vunpack.c.l.b16 %v2658
    %v2999 = vunpack.c.l.b16 %v2659
    %v3000 = vunpack.c.h.b16 %v2659
    %v3001 = vunpack.c.l.b16 %v2660
    %v3002 = vunpack.c.h.b16 %v2660
    %v3003 = vunpack.c.l.b16 %v2661
    %v3004 = vunpack.c.l.b16 %v2662
    %v3005 = vunpack.c.h.b16 %v2662
    %v3006 = vunpack.c.l.b16 %v2663
    %v3007 = vunpack.c.h.b16 %v2663
    %v3008 = vunpack.c.l.b16 %v2664
    %v3009 = vunpack.c.l.b16 %v2665
    %v3010 = vunpack.c.h.b16 %v2665
    %v3011 = vunpack.c.l.b16 %v2666
    %v3012 = vunpack.c.h.b16 %v2666
    %v3013 = vunpack.c.l.b16 %v2667
    %v3014 = vunpack.c.l.b16 %v2668
    %v3015 = vunpack.c.h.b16 %v2668
    %v3016 = vunpack.c.l.b16 %v2669
    %v3017 = vunpack.c.h.b16 %v2669
    %v3018 = vunpack.c.l.b16 %v2670
    %v3019 = vunpack.c.l.b16 %v2671
    %v3020 = vunpack.c.h.b16 %v2671
    %v3021 = vunpack.c.l.b16 %v2672
    %v3022 = vunpack.c.h.b16 %v2672
    %v3023 = vunpack.c.l.b16 %v2673
    %v3024 = vpack.c.b16 %v2849, %v2844
    %v3025 = vpack.c.b16 %v2850, %v2845
    %v3026 = vpack.c.b16 %v2851, %v2846
    %v3027 = vpack.c.b16 %v2852, %v2847
    %v3028 = vpack.c.b16 %v2853, %v2848
    %v3029 = vpack.c.b16 %v2859, %v2854
    %v3030 = vpack.c.b16 %v2860, %v2855
    %v3031 = vpack.c.b16 %v2861, %v2856
    %v3032 = vpack.c.b16 %v2862, %v2857
    %v3033 = vpack.c.b16 %v2863, %v2858
    %v3034 = vpack.c.b16 %v2869, %v2864
    %v3035 = vpack.c.b16 %v2870, %v2865
    %v3036 = vpack.c.b16 %v2871, %v2866
    %v3037 = vpack.c.b16 %v2872, %v2867
    %v3038 = vpack.c.b16 %v2873, %v2868
    %v3039 = vpack.c.b16 %v2879, %v2874
    %v3040 = vpack.c.b16 %v2880, %v2875
    %v3041 = vpack.c.b16 %v2881, %v2876
    %v3042 = vpack.c.b16 %v2882, %v2877
    %v3043 = vpack.c.b16 %v2883, %v2878
    %v3044 = vpack.c.b16 %v2889, %v2884
    %v3045 = vpack.c.b16 %v2890, %v2885
    %v3046 = vpack.c.b16 %v2891, %v2886
    %v3047 = vpack.c.b16 %v2892, %v2887
    %v3048 = vpack.c.b16 %v2893, %v2888
    %v3049 = vpack.c.b16 %v2899, %v2894
    %v3050 = vpack.c.b16 %v2900, %v2895
    %v3051 = vpack.c.b16 %v2901, %v2896
    %v3052 = vpack.c.b16 %v2902, %v2897
    %v3053 = vpack.c.b16 %v2903, %v2898
    %v3054 = vpack.c.b16 %v2909, %v2904
    %v3055 = vpack.c.b16 %v2910, %v2905
    %v3056 = vpack.c.b16 %v2911, %v2906
    %v3057 = vpack.c.b16 %v2912, %v2907
    %v3058 = vpack.c.b16 %v2913, %v2908
    %v3059 = vpack.c.b16 %v2919, %v2914
    %v3060 = vpack.c.b16 %v2920, %v2915
    %v3061 = vpack.c.b16 %v2921, %v2916
    %v3062 = vpack.c.b16 %v2922, %v2917
    %v3063 = vpack.c.b16 %v2923, %v2918
    %v3064 = vpack.c.b16 %v2929, %v2924
    %v3065 = vpack.c.b16 %v2930, %v2925
    %v3066 = vpack.c.b16 %v2931, %v2926
    %v3067 = vpack.c.b16 %v2932, %v2927
    %v3068 = vpack.c.b16 %v2933, %v2928
    %v3069 = vpack.c.b16 %v2939, %v2934
    %v3070 = vpack.c.b16 %v2940, %v2935
    %v3071 = vpack.c.b16 %v2941, %v2936
    %v3072 = vpack.c.b16 %v2942, %v2937
    %v3073 = vpack.c.b16 %v2943, %v2938
    %v3074 = vpack.c.b16 %v2949, %v2944
    %v3075 = vpack.c.b16 %v2950, %v2945
    %v3076 = vpack.c.b16 %v2951, %v2946
    %v3077 = vpack.c.b16 %v2952, %v2947
    %v3078 = vpack.c.b16 %v2953, %v2948
    %v3079 = vpack.c.b16 %v2959, %v2954
    %v3080 = vpack.c.b16 %v2960, %v2955
    %v3081 = vpack.c.b16 %v2961, %v2956
    %v3082 = vpack.c.b16 %v2962, %v2957
    %v3083 = vpack.c.b16 %v2963, %v2958
    %v3084 = vpack.c.b16 %v2969, %v2964
    %v3085 = vpack.c.b16 %v2970, %v2965
    %v3086 = vpack.c.b16 %v2971, %v2966
    %v3087 = vpack.c.b16 %v2972, %v2967
    %v3088 = vpack.c.b16 %v2973, %v2968
    %v3089 = vpack.c.b16 %v2979, %v2974
    %v3090 = vpack.c.b16 %v2980, %v2975
    %v3091 = vpack.c.b16 %v2981, %v2976
    %v3092 = vpack.c.b16 %v2982, %v2977
    %v3093 = vpack.c.b16 %v2983, %v2978
    %v3094 = vpack.c.b16 %v2989, %v2984
    %v3095 = vpack.c.b16 %v2990, %v2985
    %v3096 = vpack.c.b16 %v2991, %v2986
    %v3097 = vpack.c.b16 %v2992, %v2987
    %v3098 = vpack.c.b16 %v2993, %v2988
    %v3099 = vpack.c.b16 %v2999, %v2994
    %v3100 = vpack.c.b16 %v3000, %v2995
    %v3101 = vpack.c.b16 %v3001, %v2996
    %v3102 = vpack.c.b16 %v3002, %v2997
    %v3103 = vpack.c.b16 %v3003, %v2998
    %v3104 = vpack.c.b16 %v3009, %v3004
    %v3105 = vpack.c.b16 %v3010, %v3005
    %v3106 = vpack.c.b16 %v3011, %v3006
    %v3107 = vpack.c.b16 %v3012, %v3007
    %v3108 = vpack.c.b16 %v3013, %v3008
    %v3109 = vpack.c.b16 %v3019, %v3014
    %v3110 = vpack.c.b16 %v3020, %v3015
    %v3111 = vpack.c.b16 %v3021, %v3016
    %v3112 = vpack.c.b16 %v3022, %v3017
    %v3113 = vpack.c.b16 %v3023, %v3018
    %vm3204 = vcmask 261120
    %v3206 = vsel %vm3204, %v2728, 0
    %v3209 = vsel %vm3204, %v2731, 0
    %3211 = vmatpush.bf16.msra.mxu0 %v3059
    %3212 = vmatpush.bf16.msra.mxu0 %v3054
    %3213 = vmatpush.bf16.msra.mxu0 %v3049
    %3214 = vmatpush.bf16.msra.mxu0 %v3044
    %3215 = vmatpush.bf16.msra.mxu0 %v3039
    %3216 = vmatpush.bf16.msra.mxu0 %v3034
    %3217 = vmatpush.bf16.msra.mxu0 %v3029
    %3218 = vmatpush.bf16.msra.mxu0 %v3024
    %3219 = vmatmul.bf16.gmra.mxu0 %v2726
    %v3220 = vpop.f32.mrf.mxu0
    %v3221 = vadd.f32 %v2689, %v3220
    %v3222 = vpop.f32.mrf.mxu0
    %v3223 = vadd.f32 %v2694, %v3222
    %3224 = vmatmul.bf16.gmra.mxu0 %v2729
    %v3225 = vpop.f32.mrf.mxu0
    %v3226 = vadd.f32 %v2699, %v3225
    %v3227 = vpop.f32.mrf.mxu0
    %v3228 = vadd.f32 %v2704, %v3227
    %3229 = vdwg.mxu0
    %3230 = vmatpush.bf16.msra.mxu0 %v3099
    %3231 = vmatpush.bf16.msra.mxu0 %v3094
    %3232 = vmatpush.bf16.msra.mxu0 %v3089
    %3233 = vmatpush.bf16.msra.mxu0 %v3084
    %3234 = vmatpush.bf16.msra.mxu0 %v3079
    %3235 = vmatpush.bf16.msra.mxu0 %v3074
    %3236 = vmatpush.bf16.msra.mxu0 %v3069
    %3237 = vmatpush.bf16.msra.mxu0 %v3064
    %3238 = vmatmul.bf16.gmra.mxu0 %v2727
    %v3239 = vpop.f32.mrf.mxu0
    %v3240 = vadd.f32 %v3221, %v3239
    %v3241 = vpop.f32.mrf.mxu0
    %v3242 = vadd.f32 %v3223, %v3241
    %3243 = vmatmul.bf16.gmra.mxu0 %v2730
    %v3244 = vpop.f32.mrf.mxu0
    %v3245 = vadd.f32 %v3226, %v3244
    %v3246 = vpop.f32.mrf.mxu0
    %v3247 = vadd.f32 %v3228, %v3246
    %3248 = vdwg.mxu0
    %3249 = vmatpush.bf16.msra.mxu0 0
    %3250 = vmatpush.bf16.msra.mxu0 0
    %3251 = vmatpush.bf16.msra.mxu0 0
    %3252 = vmatpush.bf16.msra.mxu0 0
    %3253 = vmatpush.bf16.msra.mxu0 0
    %3254 = vmatpush.bf16.msra.mxu0 0
    %3255 = vmatpush.bf16.msra.mxu0 %v3109
    %3256 = vmatpush.bf16.msra.mxu0 %v3104
    %3257 = vmatmul.bf16.gmra.mxu0 %v3206
    %v3258 = vpop.f32.mrf.mxu0
    %v3259 = vadd.f32 %v3240, %v3258
    %v3260 = vpop.f32.mrf.mxu0
    %v3261 = vadd.f32 %v3242, %v3260
    %3262 = vmatmul.bf16.gmra.mxu0 %v3209
    %v3263 = vpop.f32.mrf.mxu0
    %v3264 = vadd.f32 %v3245, %v3263
    %v3265 = vpop.f32.mrf.mxu0
    %v3266 = vadd.f32 %v3247, %v3265
    %3267 = vdwg.mxu0
    %3268 = vmatpush.bf16.msra.mxu0 %v3060
    %3269 = vmatpush.bf16.msra.mxu0 %v3055
    %3270 = vmatpush.bf16.msra.mxu0 %v3050
    %3271 = vmatpush.bf16.msra.mxu0 %v3045
    %3272 = vmatpush.bf16.msra.mxu0 %v3040
    %3273 = vmatpush.bf16.msra.mxu0 %v3035
    %3274 = vmatpush.bf16.msra.mxu0 %v3030
    %3275 = vmatpush.bf16.msra.mxu0 %v3025
    %3276 = vmatmul.bf16.gmra.mxu0 %v2726
    %v3277 = vpop.f32.mrf.mxu0
    %v3278 = vadd.f32 %v2689, %v3277
    %v3279 = vpop.f32.mrf.mxu0
    %v3280 = vadd.f32 %v2694, %v3279
    %3281 = vmatmul.bf16.gmra.mxu0 %v2729
    %v3282 = vpop.f32.mrf.mxu0
    %v3283 = vadd.f32 %v2699, %v3282
    %v3284 = vpop.f32.mrf.mxu0
    %v3285 = vadd.f32 %v2704, %v3284
    %3286 = vdwg.mxu0
    %3287 = vmatpush.bf16.msra.mxu0 %v3100
    %3288 = vmatpush.bf16.msra.mxu0 %v3095
    %3289 = vmatpush.bf16.msra.mxu0 %v3090
    %3290 = vmatpush.bf16.msra.mxu0 %v3085
    %3291 = vmatpush.bf16.msra.mxu0 %v3080
    %3292 = vmatpush.bf16.msra.mxu0 %v3075
    %3293 = vmatpush.bf16.msra.mxu0 %v3070
    %3294 = vmatpush.bf16.msra.mxu0 %v3065
    %3295 = vmatmul.bf16.gmra.mxu0 %v2727
    %v3296 = vpop.f32.mrf.mxu0
    %v3297 = vadd.f32 %v3278, %v3296
    %v3298 = vpop.f32.mrf.mxu0
    %v3299 = vadd.f32 %v3280, %v3298
    %3300 = vmatmul.bf16.gmra.mxu0 %v2730
    %v3301 = vpop.f32.mrf.mxu0
    %v3302 = vadd.f32 %v3283, %v3301
    %v3303 = vpop.f32.mrf.mxu0
    %v3304 = vadd.f32 %v3285, %v3303
    %3305 = vdwg.mxu0
    %3306 = vmatpush.bf16.msra.mxu0 0
    %3307 = vmatpush.bf16.msra.mxu0 0
    %3308 = vmatpush.bf16.msra.mxu0 0
    %3309 = vmatpush.bf16.msra.mxu0 0
    %3310 = vmatpush.bf16.msra.mxu0 0
    %3311 = vmatpush.bf16.msra.mxu0 0
    %3312 = vmatpush.bf16.msra.mxu0 %v3110
    %3313 = vmatpush.bf16.msra.mxu0 %v3105
    %3314 = vmatmul.bf16.gmra.mxu0 %v3206
    %v3315 = vpop.f32.mrf.mxu0
    %v3316 = vadd.f32 %v3297, %v3315
    %v3317 = vpop.f32.mrf.mxu0
    %v3318 = vadd.f32 %v3299, %v3317
    %3319 = vmatmul.bf16.gmra.mxu0 %v3209
    %v3320 = vpop.f32.mrf.mxu0
    %v3321 = vadd.f32 %v3302, %v3320
    %v3322 = vpop.f32.mrf.mxu0
    %v3323 = vadd.f32 %v3304, %v3322
    %3324 = vdwg.mxu0
    %3325 = vmatpush.bf16.msra.mxu0 %v3061
    %3326 = vmatpush.bf16.msra.mxu0 %v3056
    %3327 = vmatpush.bf16.msra.mxu0 %v3051
    %3328 = vmatpush.bf16.msra.mxu0 %v3046
    %3329 = vmatpush.bf16.msra.mxu0 %v3041
    %3330 = vmatpush.bf16.msra.mxu0 %v3036
    %3331 = vmatpush.bf16.msra.mxu0 %v3031
    %3332 = vmatpush.bf16.msra.mxu0 %v3026
    %3333 = vmatmul.bf16.gmra.mxu0 %v2726
    %v3334 = vpop.f32.mrf.mxu0
    %v3335 = vadd.f32 %v2689, %v3334
    %v3336 = vpop.f32.mrf.mxu0
    %v3337 = vadd.f32 %v2694, %v3336
    %3338 = vmatmul.bf16.gmra.mxu0 %v2729
    %v3339 = vpop.f32.mrf.mxu0
    %v3340 = vadd.f32 %v2699, %v3339
    %v3341 = vpop.f32.mrf.mxu0
    %v3342 = vadd.f32 %v2704, %v3341
    %3343 = vdwg.mxu0
    %3344 = vmatpush.bf16.msra.mxu0 %v3101
    %3345 = vmatpush.bf16.msra.mxu0 %v3096
    %3346 = vmatpush.bf16.msra.mxu0 %v3091
    %3347 = vmatpush.bf16.msra.mxu0 %v3086
    %3348 = vmatpush.bf16.msra.mxu0 %v3081
    %3349 = vmatpush.bf16.msra.mxu0 %v3076
    %3350 = vmatpush.bf16.msra.mxu0 %v3071
    %3351 = vmatpush.bf16.msra.mxu0 %v3066
    %3352 = vmatmul.bf16.gmra.mxu0 %v2727
    %v3353 = vpop.f32.mrf.mxu0
    %v3354 = vadd.f32 %v3335, %v3353
    %v3355 = vpop.f32.mrf.mxu0
    %v3356 = vadd.f32 %v3337, %v3355
    %3357 = vmatmul.bf16.gmra.mxu0 %v2730
    %v3358 = vpop.f32.mrf.mxu0
    %v3359 = vadd.f32 %v3340, %v3358
    %v3360 = vpop.f32.mrf.mxu0
    %v3361 = vadd.f32 %v3342, %v3360
    %3362 = vdwg.mxu0
    %3363 = vmatpush.bf16.msra.mxu0 0
    %3364 = vmatpush.bf16.msra.mxu0 0
    %3365 = vmatpush.bf16.msra.mxu0 0
    %3366 = vmatpush.bf16.msra.mxu0 0
    %3367 = vmatpush.bf16.msra.mxu0 0
    %3368 = vmatpush.bf16.msra.mxu0 0
    %3369 = vmatpush.bf16.msra.mxu0 %v3111
    %3370 = vmatpush.bf16.msra.mxu0 %v3106
    %3371 = vmatmul.bf16.gmra.mxu0 %v3206
    %v3372 = vpop.f32.mrf.mxu0
    %v3373 = vadd.f32 %v3354, %v3372
    %v3374 = vpop.f32.mrf.mxu0
    %v3375 = vadd.f32 %v3356, %v3374
    %3376 = vmatmul.bf16.gmra.mxu0 %v3209
    %v3377 = vpop.f32.mrf.mxu0
    %v3378 = vadd.f32 %v3359, %v3377
    %v3379 = vpop.f32.mrf.mxu0
    %v3380 = vadd.f32 %v3361, %v3379
    %3381 = vdwg.mxu0
    %3382 = vmatpush.bf16.msra.mxu0 %v3062
    %3383 = vmatpush.bf16.msra.mxu0 %v3057
    %3384 = vmatpush.bf16.msra.mxu0 %v3052
    %3385 = vmatpush.bf16.msra.mxu0 %v3047
    %3386 = vmatpush.bf16.msra.mxu0 %v3042
    %3387 = vmatpush.bf16.msra.mxu0 %v3037
    %3388 = vmatpush.bf16.msra.mxu0 %v3032
    %3389 = vmatpush.bf16.msra.mxu0 %v3027
    %3390 = vmatmul.bf16.gmra.mxu0 %v2726
    %v3391 = vpop.f32.mrf.mxu0
    %v3392 = vadd.f32 %v2689, %v3391
    %v3393 = vpop.f32.mrf.mxu0
    %v3394 = vadd.f32 %v2694, %v3393
    %3395 = vmatmul.bf16.gmra.mxu0 %v2729
    %v3396 = vpop.f32.mrf.mxu0
    %v3397 = vadd.f32 %v2699, %v3396
    %v3398 = vpop.f32.mrf.mxu0
    %v3399 = vadd.f32 %v2704, %v3398
    %3400 = vdwg.mxu0
    %3401 = vmatpush.bf16.msra.mxu0 %v3102
    %3402 = vmatpush.bf16.msra.mxu0 %v3097
    %3403 = vmatpush.bf16.msra.mxu0 %v3092
    %3404 = vmatpush.bf16.msra.mxu0 %v3087
    %3405 = vmatpush.bf16.msra.mxu0 %v3082
    %3406 = vmatpush.bf16.msra.mxu0 %v3077
    %3407 = vmatpush.bf16.msra.mxu0 %v3072
    %3408 = vmatpush.bf16.msra.mxu0 %v3067
    %3409 = vmatmul.bf16.gmra.mxu0 %v2727
    %v3410 = vpop.f32.mrf.mxu0
    %v3411 = vadd.f32 %v3392, %v3410
    %v3412 = vpop.f32.mrf.mxu0
    %v3413 = vadd.f32 %v3394, %v3412
    %3414 = vmatmul.bf16.gmra.mxu0 %v2730
    %v3415 = vpop.f32.mrf.mxu0
    %v3416 = vadd.f32 %v3397, %v3415
    %v3417 = vpop.f32.mrf.mxu0
    %v3418 = vadd.f32 %v3399, %v3417
    %3419 = vdwg.mxu0
    %3420 = vmatpush.bf16.msra.mxu0 0
    %3421 = vmatpush.bf16.msra.mxu0 0
    %3422 = vmatpush.bf16.msra.mxu0 0
    %3423 = vmatpush.bf16.msra.mxu0 0
    %3424 = vmatpush.bf16.msra.mxu0 0
    %3425 = vmatpush.bf16.msra.mxu0 0
    %3426 = vmatpush.bf16.msra.mxu0 %v3112
    %3427 = vmatpush.bf16.msra.mxu0 %v3107
    %3428 = vmatmul.bf16.gmra.mxu0 %v3206
    %v3429 = vpop.f32.mrf.mxu0
    %v3430 = vadd.f32 %v3411, %v3429
    %v3431 = vpop.f32.mrf.mxu0
    %v3432 = vadd.f32 %v3413, %v3431
    %3433 = vmatmul.bf16.gmra.mxu0 %v3209
    %v3434 = vpop.f32.mrf.mxu0
    %v3435 = vadd.f32 %v3416, %v3434
    %v3436 = vpop.f32.mrf.mxu0
    %v3437 = vadd.f32 %v3418, %v3436
    %3438 = vdwg.mxu0
    %3439 = vmatpush.bf16.msra.mxu0 %v3063
    %3440 = vmatpush.bf16.msra.mxu0 %v3058
    %3441 = vmatpush.bf16.msra.mxu0 %v3053
    %3442 = vmatpush.bf16.msra.mxu0 %v3048
    %3443 = vmatpush.bf16.msra.mxu0 %v3043
    %3444 = vmatpush.bf16.msra.mxu0 %v3038
    %3445 = vmatpush.bf16.msra.mxu0 %v3033
    %3446 = vmatpush.bf16.msra.mxu0 %v3028
    %3447 = vmatmul.bf16.gmra.mxu0 %v2726
    %v3448 = vpop.f32.mrf.mxu0
    %v3449 = vadd.f32 %v2689, %v3448
    %v3450 = vpop.f32.mrf.mxu0
    %v3451 = vadd.f32 %v2694, %v3450
    %3452 = vmatmul.bf16.gmra.mxu0 %v2729
    %v3453 = vpop.f32.mrf.mxu0
    %v3454 = vadd.f32 %v2699, %v3453
    %v3455 = vpop.f32.mrf.mxu0
    %v3456 = vadd.f32 %v2704, %v3455
    %3457 = vdwg.mxu0
    %3458 = vmatpush.bf16.msra.mxu0 %v3103
    %3459 = vmatpush.bf16.msra.mxu0 %v3098
    %3460 = vmatpush.bf16.msra.mxu0 %v3093
    %3461 = vmatpush.bf16.msra.mxu0 %v3088
    %3462 = vmatpush.bf16.msra.mxu0 %v3083
    %3463 = vmatpush.bf16.msra.mxu0 %v3078
    %3464 = vmatpush.bf16.msra.mxu0 %v3073
    %3465 = vmatpush.bf16.msra.mxu0 %v3068
    %3466 = vmatmul.bf16.gmra.mxu0 %v2727
    %v3467 = vpop.f32.mrf.mxu0
    %v3468 = vadd.f32 %v3449, %v3467
    %v3469 = vpop.f32.mrf.mxu0
    %v3470 = vadd.f32 %v3451, %v3469
    %3471 = vmatmul.bf16.gmra.mxu0 %v2730
    %v3472 = vpop.f32.mrf.mxu0
    %v3473 = vadd.f32 %v3454, %v3472
    %v3474 = vpop.f32.mrf.mxu0
    %v3475 = vadd.f32 %v3456, %v3474
    %3476 = vdwg.mxu0
    %3477 = vmatpush.bf16.msra.mxu0 0
    %3478 = vmatpush.bf16.msra.mxu0 0
    %3479 = vmatpush.bf16.msra.mxu0 0
    %3480 = vmatpush.bf16.msra.mxu0 0
    %3481 = vmatpush.bf16.msra.mxu0 0
    %3482 = vmatpush.bf16.msra.mxu0 0
    %3483 = vmatpush.bf16.msra.mxu0 %v3113
    %3484 = vmatpush.bf16.msra.mxu0 %v3108
    %3485 = vmatmul.bf16.gmra.mxu0 %v3206
    %v3486 = vpop.f32.mrf.mxu0
    %v3487 = vadd.f32 %v3468, %v3486
    %v3488 = vpop.f32.mrf.mxu0
    %v3489 = vadd.f32 %v3470, %v3488
    %3490 = vmatmul.bf16.gmra.mxu0 %v3209
    %v3491 = vpop.f32.mrf.mxu0
    %v3492 = vadd.f32 %v3473, %v3491
    %v3493 = vpop.f32.mrf.mxu0
    %v3494 = vadd.f32 %v3475, %v3493
    %3495 = vdwg.mxu0
    %v3496 = vmax.f32 %v3259, 0.0
    %v3497 = vmax.f32 %v3316, 0.0
    %v3498 = vmax.f32 %v3373, 0.0
    %v3499 = vmax.f32 %v3430, 0.0
    %v3500 = vmax.f32 %v3487, 0.0
    %v3501 = vmax.f32 %v3261, 0.0
    %v3502 = vmax.f32 %v3318, 0.0
    %v3503 = vmax.f32 %v3375, 0.0
    %v3504 = vmax.f32 %v3432, 0.0
    %v3505 = vmax.f32 %v3489, 0.0
    %v3506 = vmax.f32 %v3264, 0.0
    %v3507 = vmax.f32 %v3321, 0.0
    %v3508 = vmax.f32 %v3378, 0.0
    %v3509 = vmax.f32 %v3435, 0.0
    %v3510 = vmax.f32 %v3492, 0.0
    %v3511 = vmax.f32 %v3266, 0.0
    %v3512 = vmax.f32 %v3323, 0.0
    %v3513 = vmax.f32 %v3380, 0.0
    %v3514 = vmax.f32 %v3437, 0.0
    %v3515 = vmax.f32 %v3494, 0.0
    %v3516 = vmul.f32 %v3496, %v1335
    %v3517 = vmul.f32 %v3497, %v1336
    %v3518 = vmul.f32 %v3498, %v1337
    %v3519 = vmul.f32 %v3499, %v1338
    %v3520 = vmul.f32 %v3500, %v1339
    %v3521 = vmul.f32 %v3501, %v1335
    %v3522 = vmul.f32 %v3502, %v1336
    %v3523 = vmul.f32 %v3503, %v1337
    %v3524 = vmul.f32 %v3504, %v1338
    %v3525 = vmul.f32 %v3505, %v1339
    %v3526 = vmul.f32 %v3506, %v1335
    %v3527 = vmul.f32 %v3507, %v1336
    %v3528 = vmul.f32 %v3508, %v1337
    %v3529 = vmul.f32 %v3509, %v1338
    %v3530 = vmul.f32 %v3510, %v1339
    %v3531 = vmul.f32 %v3511, %v1335
    %v3532 = vmul.f32 %v3512, %v1336
    %v3533 = vmul.f32 %v3513, %v1337
    %v3534 = vmul.f32 %v3514, %v1338
    %v3535 = vmul.f32 %v3515, %v1339
    %v3536 = vpack.c.bf16 %v3517, %v3516
    %v3537 = vpack.c.bf16 %v3519, %v3518
    %v3538 = vpack.c.bf16 %v3520, %v3520
    %v3539 = vpack.c.bf16 %v3522, %v3521
    %v3540 = vpack.c.bf16 %v3524, %v3523
    %v3541 = vpack.c.bf16 %v3525, %v3525
    %v3542 = vpack.c.bf16 %v3527, %v3526
    %v3543 = vpack.c.bf16 %v3529, %v3528
    %v3544 = vpack.c.bf16 %v3530, %v3530
    %v3545 = vpack.c.bf16 %v3532, %v3531
    %v3546 = vpack.c.bf16 %v3534, %v3533
    %v3547 = vpack.c.bf16 %v3535, %v3535
    %3556 = vrot.lane.b32.xlu0 %v3536, 19
    %v3557 = vpop.permute.xlu0 %3556
    %3558 = vrot.lane.b32.xlu0 %v3537, 19
    %v3559 = vpop.permute.xlu0 %3558
    %3560 = vrot.lane.b32.xlu0 %v3539, 19
    %v3561 = vpop.permute.xlu0 %3560
    %3562 = vrot.lane.b32.xlu0 %v3540, 19
    %v3563 = vpop.permute.xlu0 %3562
    %3564 = vrot.lane.b32.xlu0 %v3542, 19
    %v3565 = vpop.permute.xlu0 %3564
    %3566 = vrot.lane.b32.xlu0 %v3543, 19
    %v3567 = vpop.permute.xlu0 %3566
    %3568 = vrot.lane.b32.xlu0 %v3545, 19
    %v3569 = vpop.permute.xlu0 %3568
    %3570 = vrot.lane.b32.xlu0 %v3546, 19
    %v3571 = vpop.permute.xlu0 %3570
    %v3572 = vrot.slane %v3557, 4
    %v3573 = vrot.slane %v3561, 4
    %v3574 = vrot.slane %v3565, 4
    %v3575 = vrot.slane %v3569, 4
    %v3576 = vsel %vm1405, %v3572, %v3557
    %v3577 = vsel %vm1405, %v3572, %v3559
    %v3578 = vsel %vm1405, %v3573, %v3561
    %v3579 = vsel %vm1405, %v3573, %v3563
    %v3580 = vsel %vm1405, %v3574, %v3565
    %v3581 = vsel %vm1405, %v3574, %v3567
    %v3582 = vsel %vm1405, %v3575, %v3569
    %v3583 = vsel %vm1405, %v3575, %v3571
    %3592 = vst.msk [vmem:[#allocation3] sm:$0xff] %vm1423, %v3576
    %3593 = vst.msk [vmem:[#allocation3 + $0x8] sm:$0xf] %vm1425, %v3577
    %3594 = vst.msk [vmem:[#allocation3 + $0xc] sm:$0xff] %vm1423, %v3578
    %3595 = vst.msk [vmem:[#allocation3 + $0x14] sm:$0xf] %vm1425, %v3579
    %3596 = vst.msk [vmem:[#allocation3 + $0x18] sm:$0xff] %vm1423, %v3580
    %3597 = vst.msk [vmem:[#allocation3 + $0x20] sm:$0xf] %vm1425, %v3581
    %3598 = vst.msk [vmem:[#allocation3 + $0x24] sm:$0xff] %vm1423, %v3582
    %3599 = vst.msk [vmem:[#allocation3 + $0x2c] sm:$0xf] %vm1425, %v3583
    %3604 = vrot.lane.b32.xlu0 %v3537, 115
    %v3605 = vpop.permute.xlu0 %3604
    %3606 = vrot.lane.b32.xlu0 %v3538, 115
    %v3607 = vpop.permute.xlu0 %3606
    %3608 = vrot.lane.b32.xlu0 %v3540, 115
    %v3609 = vpop.permute.xlu0 %3608
    %3610 = vrot.lane.b32.xlu0 %v3541, 115
    %v3611 = vpop.permute.xlu0 %3610
    %3612 = vrot.lane.b32.xlu0 %v3543, 115
    %v3613 = vpop.permute.xlu0 %3612
    %3614 = vrot.lane.b32.xlu0 %v3544, 115
    %v3615 = vpop.permute.xlu0 %3614
    %3616 = vrot.lane.b32.xlu0 %v3546, 115
    %v3617 = vpop.permute.xlu0 %3616
    %3618 = vrot.lane.b32.xlu0 %v3547, 115
    %v3619 = vpop.permute.xlu0 %3618
    %v3620 = vrot.slane %v3605, 4
    %v3621 = vrot.slane %v3607, 4
    %v3622 = vrot.slane %v3609, 4
    %v3623 = vrot.slane %v3611, 4
    %v3624 = vrot.slane %v3613, 4
    %v3625 = vrot.slane %v3615, 4
    %v3626 = vrot.slane %v3617, 4
    %v3627 = vrot.slane %v3619, 4
    %v3628 = vsel %vm194, %v3620, %v3621
    %v3629 = vsel %vm1462, %v3605, %v3628
    %v3630 = vsel %vm194, %v3622, %v3623
    %v3631 = vsel %vm1462, %v3609, %v3630
    %v3632 = vsel %vm194, %v3624, %v3625
    %v3633 = vsel %vm1462, %v3613, %v3632
    %v3634 = vsel %vm194, %v3626, %v3627
    %v3635 = vsel %vm1462, %v3617, %v3634
    %3644 = vst.msk [vmem:[%s100] sm:$0xff] %vm1423, %v3629
    %3645 = vst.msk [vmem:[%s100 + $0x8] sm:$0xf] %vm1425, %v3607
    %3646 = vst.msk [vmem:[%s100 + $0xc] sm:$0xff] %vm1423, %v3631
    %3647 = vst.msk [vmem:[%s100 + $0x14] sm:$0xf] %vm1425, %v3611
    %3648 = vst.msk [vmem:[%s100 + $0x18] sm:$0xff] %vm1423, %v3633
    %3649 = vst.msk [vmem:[%s100 + $0x20] sm:$0xf] %vm1425, %v3615
    %3650 = vst.msk [vmem:[%s100 + $0x24] sm:$0xff] %vm1423, %v3635
    %3651 = vst.msk [vmem:[%s100 + $0x2c] sm:$0xf] %vm1425, %v3619
    %v3652 = vld [vmem:[#allocation3] sm:$0xff]
    %v3653 = vld [vmem:[#allocation3 + $0x8] sm:$0xf]
    %v3654 = vld [vmem:[#allocation3 + $0xc] sm:$0xff]
    %v3655 = vld [vmem:[#allocation3 + $0x14] sm:$0xf]
    %v3656 = vld [vmem:[#allocation3 + $0x18] sm:$0xff]
    %v3657 = vld [vmem:[#allocation3 + $0x20] sm:$0xf]
    %v3658 = vld [vmem:[#allocation3 + $0x24] sm:$0xff]
    %v3659 = vld [vmem:[#allocation3 + $0x2c] sm:$0xf]
    %3660 = vst [vmem:[#allocation4] sm:$0xff] %v3652
    %3661 = vst.msk [vmem:[#allocation4 + $0x8] sm:$0xf] %vm122, %v3653
    %3662 = vst [vmem:[#allocation4 + $0x14] sm:$0xff] %v3654
    %3663 = vst.msk [vmem:[#allocation4 + $0x1c] sm:$0xf] %vm122, %v3655
    %3664 = vst [vmem:[#allocation4 + $0x28] sm:$0xff] %v3656
    %3665 = vst.msk [vmem:[#allocation4 + $0x30] sm:$0xf] %vm122, %v3657
    %3666 = vst [vmem:[#allocation4 + $0x3c] sm:$0xff] %v3658
    %3667 = vst.msk [vmem:[#allocation4 + $0x44] sm:$0xf] %vm122, %v3659
    %v3668 = vld [vmem:[%s100] sm:$0xff]
    %v3669 = vld [vmem:[%s100 + $0x8] sm:$0xf]
    %v3670 = vld [vmem:[%s100 + $0xc] sm:$0xff]
    %v3671 = vld [vmem:[%s100 + $0x14] sm:$0xf]
    %v3672 = vld [vmem:[%s100 + $0x18] sm:$0xff]
    %v3673 = vld [vmem:[%s100 + $0x20] sm:$0xf]
    %v3674 = vld [vmem:[%s100 + $0x24] sm:$0xff]
    %v3675 = vld [vmem:[%s100 + $0x2c] sm:$0xf]
    %3684 = vrot.lane.b32.xlu0 %v3668, 32
    %v3685 = vpop.permute.xlu0 %3684
    %3686 = vrot.lane.b32.xlu0 %v3669, 32
    %v3687 = vpop.permute.xlu0 %3686
    %3688 = vrot.lane.b32.xlu0 %v3670, 32
    %v3689 = vpop.permute.xlu0 %3688
    %3690 = vrot.lane.b32.xlu0 %v3671, 32
    %v3691 = vpop.permute.xlu0 %3690
    %3692 = vrot.lane.b32.xlu0 %v3672, 32
    %v3693 = vpop.permute.xlu0 %3692
    %3694 = vrot.lane.b32.xlu0 %v3673, 32
    %v3695 = vpop.permute.xlu0 %3694
    %3696 = vrot.lane.b32.xlu0 %v3674, 32
    %v3697 = vpop.permute.xlu0 %3696
    %3698 = vrot.lane.b32.xlu0 %v3675, 32
    %v3699 = vpop.permute.xlu0 %3698
    %v3700 = vrot.slane %v3685, 4
    %v3701 = vrot.slane %v3689, 4
    %v3702 = vrot.slane %v3693, 4
    %v3703 = vrot.slane %v3697, 4
    %v3704 = vsel %vm151, %v3700, %v3685
    %v3705 = vsel %vm151, %v3700, %v3687
    %v3706 = vsel %vm151, %v3701, %v3689
    %v3707 = vsel %vm151, %v3701, %v3691
    %v3708 = vsel %vm151, %v3702, %v3693
    %v3709 = vsel %vm151, %v3702, %v3695
    %v3710 = vsel %vm151, %v3703, %v3697
    %v3711 = vsel %vm151, %v3703, %v3699
    %3720 = vst.msk [vmem:[#allocation4 + $0x8] sm:$0xff] %vm162, %v3704
    %3721 = vst.msk [vmem:[#allocation4 + $0x10] sm:$0xf] %vm164, %v3705
    %3722 = vst.msk [vmem:[#allocation4 + $0x1c] sm:$0xff] %vm162, %v3706
    %3723 = vst.msk [vmem:[#allocation4 + $0x24] sm:$0xf] %vm164, %v3707
    %3724 = vst.msk [vmem:[#allocation4 + $0x30] sm:$0xff] %vm162, %v3708
    %3725 = vst.msk [vmem:[#allocation4 + $0x38] sm:$0xf] %vm164, %v3709
    %3726 = vst.msk [vmem:[#allocation4 + $0x44] sm:$0xff] %vm162, %v3710
    %3727 = vst.msk [vmem:[#allocation4 + $0x4c] sm:$0xf] %vm164, %v3711
    %v3728 = vld [vmem:[#allocation3] sm:$0xff]
    %v3729 = vld [vmem:[#allocation3 + $0x8] sm:$0xf]
    %v3730 = vld [vmem:[#allocation3 + $0xc] sm:$0xff]
    %v3731 = vld [vmem:[#allocation3 + $0x14] sm:$0xf]
    %v3732 = vld [vmem:[#allocation3 + $0x18] sm:$0xff]
    %v3733 = vld [vmem:[#allocation3 + $0x20] sm:$0xf]
    %v3734 = vld [vmem:[#allocation3 + $0x24] sm:$0xff]
    %v3735 = vld [vmem:[#allocation3 + $0x2c] sm:$0xf]
    %3744 = vrot.lane.b32.xlu0 %v3728, 127
    %v3745 = vpop.permute.xlu0 %3744
    %3746 = vrot.lane.b32.xlu0 %v3729, 127
    %v3747 = vpop.permute.xlu0 %3746
    %3748 = vrot.lane.b32.xlu0 %v3730, 127
    %v3749 = vpop.permute.xlu0 %3748
    %3750 = vrot.lane.b32.xlu0 %v3731, 127
    %v3751 = vpop.permute.xlu0 %3750
    %3752 = vrot.lane.b32.xlu0 %v3732, 127
    %v3753 = vpop.permute.xlu0 %3752
    %3754 = vrot.lane.b32.xlu0 %v3733, 127
    %v3755 = vpop.permute.xlu0 %3754
    %3756 = vrot.lane.b32.xlu0 %v3734, 127
    %v3757 = vpop.permute.xlu0 %3756
    %3758 = vrot.lane.b32.xlu0 %v3735, 127
    %v3759 = vpop.permute.xlu0 %3758
    %v3760 = vrot.slane %v3745, 4
    %v3761 = vrot.slane %v3747, 4
    %v3762 = vrot.slane %v3749, 4
    %v3763 = vrot.slane %v3751, 4
    %v3764 = vrot.slane %v3753, 4
    %v3765 = vrot.slane %v3755, 4
    %v3766 = vrot.slane %v3757, 4
    %v3767 = vrot.slane %v3759, 4
    %v3768 = vsel %vm194, %v3760, %v3761
    %v3769 = vsel %vm196, %v3745, %v3768
    %v3770 = vsel %vm194, %v3762, %v3763
    %v3771 = vsel %vm196, %v3749, %v3770
    %v3772 = vsel %vm194, %v3764, %v3765
    %v3773 = vsel %vm196, %v3753, %v3772
    %v3774 = vsel %vm194, %v3766, %v3767
    %v3775 = vsel %vm196, %v3757, %v3774
    %3784 = vst [vmem:[#allocation4 + $0x50] sm:$0xff] %v3769
    %3785 = vst.msk [vmem:[#allocation4 + $0x58] sm:$0xf] %vm122, %v3747
    %3786 = vst [vmem:[#allocation4 + $0x64] sm:$0xff] %v3771
    %3787 = vst.msk [vmem:[#allocation4 + $0x6c] sm:$0xf] %vm122, %v3751
    %3788 = vst [vmem:[#allocation4 + $0x78] sm:$0xff] %v3773
    %3789 = vst.msk [vmem:[#allocation4 + $0x80] sm:$0xf] %vm122, %v3755
    %3790 = vst [vmem:[#allocation4 + $0x8c] sm:$0xff] %v3775
    %3791 = vst.msk [vmem:[#allocation4 + $0x94] sm:$0xf] %vm122, %v3759
    %v3792 = vld [vmem:[%s100] sm:$0xff]
    %v3793 = vld [vmem:[%s100 + $0x8] sm:$0xf]
    %v3794 = vld [vmem:[%s100 + $0xc] sm:$0xff]
    %v3795 = vld [vmem:[%s100 + $0x14] sm:$0xf]
    %v3796 = vld [vmem:[%s100 + $0x18] sm:$0xff]
    %v3797 = vld [vmem:[%s100 + $0x20] sm:$0xf]
    %v3798 = vld [vmem:[%s100 + $0x24] sm:$0xff]
    %v3799 = vld [vmem:[%s100 + $0x2c] sm:$0xf]
    %3808 = vrot.lane.b32.xlu0 %v3792, 31
    %v3809 = vpop.permute.xlu0 %3808
    %3810 = vrot.lane.b32.xlu0 %v3793, 31
    %v3811 = vpop.permute.xlu0 %3810
    %3812 = vrot.lane.b32.xlu0 %v3794, 31
    %v3813 = vpop.permute.xlu0 %3812
    %3814 = vrot.lane.b32.xlu0 %v3795, 31
    %v3815 = vpop.permute.xlu0 %3814
    %3816 = vrot.lane.b32.xlu0 %v3796, 31
    %v3817 = vpop.permute.xlu0 %3816
    %3818 = vrot.lane.b32.xlu0 %v3797, 31
    %v3819 = vpop.permute.xlu0 %3818
    %3820 = vrot.lane.b32.xlu0 %v3798, 31
    %v3821 = vpop.permute.xlu0 %3820
    %3822 = vrot.lane.b32.xlu0 %v3799, 31
    %v3823 = vpop.permute.xlu0 %3822
    %v3824 = vrot.slane %v3809, 4
    %v3825 = vrot.slane %v3813, 4
    %v3826 = vrot.slane %v3817, 4
    %v3827 = vrot.slane %v3821, 4
    %v3828 = vsel %vm232, %v3824, %v3809
    %v3829 = vsel %vm232, %v3824, %v3811
    %v3830 = vsel %vm232, %v3825, %v3813
    %v3831 = vsel %vm232, %v3825, %v3815
    %v3832 = vsel %vm232, %v3826, %v3817
    %v3833 = vsel %vm232, %v3826, %v3819
    %v3834 = vsel %vm232, %v3827, %v3821
    %v3835 = vsel %vm232, %v3827, %v3823
    %3844 = vst.msk [vmem:[#allocation4 + $0x58] sm:$0xff] %vm162, %v3828
    %3845 = vst.msk [vmem:[#allocation4 + $0x60] sm:$0xf] %vm164, %v3829
    %3846 = vst.msk [vmem:[#allocation4 + $0x6c] sm:$0xff] %vm162, %v3830
    %3847 = vst.msk [vmem:[#allocation4 + $0x74] sm:$0xf] %vm164, %v3831
    %3848 = vst.msk [vmem:[#allocation4 + $0x80] sm:$0xff] %vm162, %v3832
    %3849 = vst.msk [vmem:[#allocation4 + $0x88] sm:$0xf] %vm164, %v3833
    %3850 = vst.msk [vmem:[#allocation4 + $0x94] sm:$0xff] %vm162, %v3834
    %3851 = vst.msk [vmem:[#allocation4 + $0x9c] sm:$0xf] %vm164, %v3835
    %v3852 = vld [vmem:[#allocation3] sm:$0xff]
    %v3853 = vld [vmem:[#allocation3 + $0x8] sm:$0xf]
    %v3854 = vld [vmem:[#allocation3 + $0xc] sm:$0xff]
    %v3855 = vld [vmem:[#allocation3 + $0x14] sm:$0xf]
    %v3856 = vld [vmem:[#allocation3 + $0x18] sm:$0xff]
    %v3857 = vld [vmem:[#allocation3 + $0x20] sm:$0xf]
    %v3858 = vld [vmem:[#allocation3 + $0x24] sm:$0xff]
    %v3859 = vld [vmem:[#allocation3 + $0x2c] sm:$0xf]
    %3868 = vrot.lane.b32.xlu0 %v3852, 126
    %v3869 = vpop.permute.xlu0 %3868
    %3870 = vrot.lane.b32.xlu0 %v3853, 126
    %v3871 = vpop.permute.xlu0 %3870
    %3872 = vrot.lane.b32.xlu0 %v3854, 126
    %v3873 = vpop.permute.xlu0 %3872
    %3874 = vrot.lane.b32.xlu0 %v3855, 126
    %v3875 = vpop.permute.xlu0 %3874
    %3876 = vrot.lane.b32.xlu0 %v3856, 126
    %v3877 = vpop.permute.xlu0 %3876
    %3878 = vrot.lane.b32.xlu0 %v3857, 126
    %v3879 = vpop.permute.xlu0 %3878
    %3880 = vrot.lane.b32.xlu0 %v3858, 126
    %v3881 = vpop.permute.xlu0 %3880
    %3882 = vrot.lane.b32.xlu0 %v3859, 126
    %v3883 = vpop.permute.xlu0 %3882
    %v3884 = vrot.slane %v3869, 4
    %v3885 = vrot.slane %v3871, 4
    %v3886 = vrot.slane %v3873, 4
    %v3887 = vrot.slane %v3875, 4
    %v3888 = vrot.slane %v3877, 4
    %v3889 = vrot.slane %v3879, 4
    %v3890 = vrot.slane %v3881, 4
    %v3891 = vrot.slane %v3883, 4
    %v3892 = vsel %vm194, %v3884, %v3885
    %v3893 = vsel %vm272, %v3869, %v3892
    %v3894 = vsel %vm194, %v3886, %v3887
    %v3895 = vsel %vm272, %v3873, %v3894
    %v3896 = vsel %vm194, %v3888, %v3889
    %v3897 = vsel %vm272, %v3877, %v3896
    %v3898 = vsel %vm194, %v3890, %v3891
    %v3899 = vsel %vm272, %v3881, %v3898
    %3908 = vst [vmem:[#allocation4 + $0xa0] sm:$0xff] %v3893
    %3909 = vst.msk [vmem:[#allocation4 + $0xa8] sm:$0xf] %vm122, %v3871
    %3910 = vst [vmem:[#allocation4 + $0xb4] sm:$0xff] %v3895
    %3911 = vst.msk [vmem:[#allocation4 + $0xbc] sm:$0xf] %vm122, %v3875
    %3912 = vst [vmem:[#allocation4 + $0xc8] sm:$0xff] %v3897
    %3913 = vst.msk [vmem:[#allocation4 + $0xd0] sm:$0xf] %vm122, %v3879
    %3914 = vst [vmem:[#allocation4 + $0xdc] sm:$0xff] %v3899
    %3915 = vst.msk [vmem:[#allocation4 + $0xe4] sm:$0xf] %vm122, %v3883
    %v3916 = vld [vmem:[%s100] sm:$0xff]
    %v3917 = vld [vmem:[%s100 + $0x8] sm:$0xf]
    %v3918 = vld [vmem:[%s100 + $0xc] sm:$0xff]
    %v3919 = vld [vmem:[%s100 + $0x14] sm:$0xf]
    %v3920 = vld [vmem:[%s100 + $0x18] sm:$0xff]
    %v3921 = vld [vmem:[%s100 + $0x20] sm:$0xf]
    %v3922 = vld [vmem:[%s100 + $0x24] sm:$0xff]
    %v3923 = vld [vmem:[%s100 + $0x2c] sm:$0xf]
    %3932 = vrot.lane.b32.xlu0 %v3916, 30
    %v3933 = vpop.permute.xlu0 %3932
    %3934 = vrot.lane.b32.xlu0 %v3917, 30
    %v3935 = vpop.permute.xlu0 %3934
    %3936 = vrot.lane.b32.xlu0 %v3918, 30
    %v3937 = vpop.permute.xlu0 %3936
    %3938 = vrot.lane.b32.xlu0 %v3919, 30
    %v3939 = vpop.permute.xlu0 %3938
    %3940 = vrot.lane.b32.xlu0 %v3920, 30
    %v3941 = vpop.permute.xlu0 %3940
    %3942 = vrot.lane.b32.xlu0 %v3921, 30
    %v3943 = vpop.permute.xlu0 %3942
    %3944 = vrot.lane.b32.xlu0 %v3922, 30
    %v3945 = vpop.permute.xlu0 %3944
    %3946 = vrot.lane.b32.xlu0 %v3923, 30
    %v3947 = vpop.permute.xlu0 %3946
    %v3948 = vrot.slane %v3933, 4
    %v3949 = vrot.slane %v3937, 4
    %v3950 = vrot.slane %v3941, 4
    %v3951 = vrot.slane %v3945, 4
    %v3952 = vsel %vm308, %v3948, %v3933
    %v3953 = vsel %vm308, %v3948, %v3935
    %v3954 = vsel %vm308, %v3949, %v3937
    %v3955 = vsel %vm308, %v3949, %v3939
    %v3956 = vsel %vm308, %v3950, %v3941
    %v3957 = vsel %vm308, %v3950, %v3943
    %v3958 = vsel %vm308, %v3951, %v3945
    %v3959 = vsel %vm308, %v3951, %v3947
    %3968 = vst.msk [vmem:[#allocation4 + $0xa8] sm:$0xff] %vm162, %v3952
    %3969 = vst.msk [vmem:[#allocation4 + $0xb0] sm:$0xf] %vm164, %v3953
    %3970 = vst.msk [vmem:[#allocation4 + $0xbc] sm:$0xff] %vm162, %v3954
    %3971 = vst.msk [vmem:[#allocation4 + $0xc4] sm:$0xf] %vm164, %v3955
    %3972 = vst.msk [vmem:[#allocation4 + $0xd0] sm:$0xff] %vm162, %v3956
    %3973 = vst.msk [vmem:[#allocation4 + $0xd8] sm:$0xf] %vm164, %v3957
    %3974 = vst.msk [vmem:[#allocation4 + $0xe4] sm:$0xff] %vm162, %v3958
    %3975 = vst.msk [vmem:[#allocation4 + $0xec] sm:$0xf] %vm164, %v3959
    %v3976 = vld [vmem:[#allocation3] sm:$0xff]
    %v3977 = vld [vmem:[#allocation3 + $0x8] sm:$0xf]
    %v3978 = vld [vmem:[#allocation3 + $0xc] sm:$0xff]
    %v3979 = vld [vmem:[#allocation3 + $0x14] sm:$0xf]
    %v3980 = vld [vmem:[#allocation3 + $0x18] sm:$0xff]
    %v3981 = vld [vmem:[#allocation3 + $0x20] sm:$0xf]
    %v3982 = vld [vmem:[#allocation3 + $0x24] sm:$0xff]
    %v3983 = vld [vmem:[#allocation3 + $0x2c] sm:$0xf]
    %3992 = vrot.lane.b32.xlu0 %v3976, 110
    %v3993 = vpop.permute.xlu0 %3992
    %3994 = vrot.lane.b32.xlu0 %v3977, 110
    %v3995 = vpop.permute.xlu0 %3994
    %3996 = vrot.lane.b32.xlu0 %v3978, 110
    %v3997 = vpop.permute.xlu0 %3996
    %3998 = vrot.lane.b32.xlu0 %v3979, 110
    %v3999 = vpop.permute.xlu0 %3998
    %4000 = vrot.lane.b32.xlu0 %v3980, 110
    %v4001 = vpop.permute.xlu0 %4000
    %4002 = vrot.lane.b32.xlu0 %v3981, 110
    %v4003 = vpop.permute.xlu0 %4002
    %4004 = vrot.lane.b32.xlu0 %v3982, 110
    %v4005 = vpop.permute.xlu0 %4004
    %4006 = vrot.lane.b32.xlu0 %v3983, 110
    %v4007 = vpop.permute.xlu0 %4006
    %v4008 = vrot.slane %v3993, 4
    %v4009 = vrot.slane %v3995, 4
    %v4010 = vrot.slane %v3997, 4
    %v4011 = vrot.slane %v3999, 4
    %v4012 = vrot.slane %v4001, 4
    %v4013 = vrot.slane %v4003, 4
    %v4014 = vrot.slane %v4005, 4
    %v4015 = vrot.slane %v4007, 4
    %v4016 = vsel %vm194, %v4008, %v4009
    %v4017 = vsel %vm348, %v3993, %v4016
    %v4018 = vsel %vm194, %v4010, %v4011
    %v4019 = vsel %vm348, %v3997, %v4018
    %v4020 = vsel %vm194, %v4012, %v4013
    %v4021 = vsel %vm348, %v4001, %v4020
    %v4022 = vsel %vm194, %v4014, %v4015
    %v4023 = vsel %vm348, %v4005, %v4022
    %4032 = vst [vmem:[#allocation4 + $0xf0] sm:$0xff] %v4017
    %4033 = vst.msk [vmem:[#allocation4 + $0xf8] sm:$0xf] %vm122, %v3995
    %4034 = vst [vmem:[#allocation4 + $0x104] sm:$0xff] %v4019
    %4035 = vst.msk [vmem:[#allocation4 + $0x10c] sm:$0xf] %vm122, %v3999
    %4036 = vst [vmem:[#allocation4 + $0x118] sm:$0xff] %v4021
    %4037 = vst.msk [vmem:[#allocation4 + $0x120] sm:$0xf] %vm122, %v4003
    %4038 = vst [vmem:[#allocation4 + $0x12c] sm:$0xff] %v4023
    %4039 = vst.msk [vmem:[#allocation4 + $0x134] sm:$0xf] %vm122, %v4007
    %v4040 = vld [vmem:[%s100] sm:$0xff]
    %v4041 = vld [vmem:[%s100 + $0x8] sm:$0xf]
    %v4042 = vld [vmem:[%s100 + $0xc] sm:$0xff]
    %v4043 = vld [vmem:[%s100 + $0x14] sm:$0xf]
    %v4044 = vld [vmem:[%s100 + $0x18] sm:$0xff]
    %v4045 = vld [vmem:[%s100 + $0x20] sm:$0xf]
    %v4046 = vld [vmem:[%s100 + $0x24] sm:$0xff]
    %v4047 = vld [vmem:[%s100 + $0x2c] sm:$0xf]
    %4056 = vrot.lane.b32.xlu0 %v4040, 14
    %v4057 = vpop.permute.xlu0 %4056
    %4058 = vrot.lane.b32.xlu0 %v4041, 14
    %v4059 = vpop.permute.xlu0 %4058
    %4060 = vrot.lane.b32.xlu0 %v4042, 14
    %v4061 = vpop.permute.xlu0 %4060
    %4062 = vrot.lane.b32.xlu0 %v4043, 14
    %v4063 = vpop.permute.xlu0 %4062
    %4064 = vrot.lane.b32.xlu0 %v4044, 14
    %v4065 = vpop.permute.xlu0 %4064
    %4066 = vrot.lane.b32.xlu0 %v4045, 14
    %v4067 = vpop.permute.xlu0 %4066
    %4068 = vrot.lane.b32.xlu0 %v4046, 14
    %v4069 = vpop.permute.xlu0 %4068
    %4070 = vrot.lane.b32.xlu0 %v4047, 14
    %v4071 = vpop.permute.xlu0 %4070
    %v4072 = vrot.slane %v4057, 4
    %v4073 = vrot.slane %v4061, 4
    %v4074 = vrot.slane %v4065, 4
    %v4075 = vrot.slane %v4069, 4
    %v4076 = vsel %vm384, %v4072, %v4057
    %v4077 = vsel %vm384, %v4072, %v4059
    %v4078 = vsel %vm384, %v4073, %v4061
    %v4079 = vsel %vm384, %v4073, %v4063
    %v4080 = vsel %vm384, %v4074, %v4065
    %v4081 = vsel %vm384, %v4074, %v4067
    %v4082 = vsel %vm384, %v4075, %v4069
    %v4083 = vsel %vm384, %v4075, %v4071
    %4092 = vst.msk [vmem:[#allocation4 + $0xf8] sm:$0xff] %vm162, %v4076
    %4093 = vst.msk [vmem:[#allocation4 + $0x100] sm:$0xf] %vm164, %v4077
    %4094 = vst.msk [vmem:[#allocation4 + $0x10c] sm:$0xff] %vm162, %v4078
    %4095 = vst.msk [vmem:[#allocation4 + $0x114] sm:$0xf] %vm164, %v4079
    %4096 = vst.msk [vmem:[#allocation4 + $0x120] sm:$0xff] %vm162, %v4080
    %4097 = vst.msk [vmem:[#allocation4 + $0x128] sm:$0xf] %vm164, %v4081
    %4098 = vst.msk [vmem:[#allocation4 + $0x134] sm:$0xff] %vm162, %v4082
    %4099 = vst.msk [vmem:[#allocation4 + $0x13c] sm:$0xf] %vm164, %v4083
    %v4100 = vld [vmem:[#allocation3] sm:$0xff]
    %v4101 = vld [vmem:[#allocation3 + $0x8] sm:$0xf]
    %v4102 = vld [vmem:[#allocation3 + $0xc] sm:$0xff]
    %v4103 = vld [vmem:[#allocation3 + $0x14] sm:$0xf]
    %v4104 = vld [vmem:[#allocation3 + $0x18] sm:$0xff]
    %v4105 = vld [vmem:[#allocation3 + $0x20] sm:$0xf]
    %v4106 = vld [vmem:[#allocation3 + $0x24] sm:$0xff]
    %v4107 = vld [vmem:[#allocation3 + $0x2c] sm:$0xf]
    %4116 = vrot.lane.b32.xlu0 %v4100, 109
    %v4117 = vpop.permute.xlu0 %4116
    %4118 = vrot.lane.b32.xlu0 %v4101, 109
    %v4119 = vpop.permute.xlu0 %4118
    %4120 = vrot.lane.b32.xlu0 %v4102, 109
    %v4121 = vpop.permute.xlu0 %4120
    %4122 = vrot.lane.b32.xlu0 %v4103, 109
    %v4123 = vpop.permute.xlu0 %4122
    %4124 = vrot.lane.b32.xlu0 %v4104, 109
    %v4125 = vpop.permute.xlu0 %4124
    %4126 = vrot.lane.b32.xlu0 %v4105, 109
    %v4127 = vpop.permute.xlu0 %4126
    %4128 = vrot.lane.b32.xlu0 %v4106, 109
    %v4129 = vpop.permute.xlu0 %4128
    %4130 = vrot.lane.b32.xlu0 %v4107, 109
    %v4131 = vpop.permute.xlu0 %4130
    %v4132 = vrot.slane %v4117, 4
    %v4133 = vrot.slane %v4119, 4
    %v4134 = vrot.slane %v4121, 4
    %v4135 = vrot.slane %v4123, 4
    %v4136 = vrot.slane %v4125, 4
    %v4137 = vrot.slane %v4127, 4
    %v4138 = vrot.slane %v4129, 4
    %v4139 = vrot.slane %v4131, 4
    %v4140 = vsel %vm194, %v4132, %v4133
    %v4141 = vsel %vm424, %v4117, %v4140
    %v4142 = vsel %vm194, %v4134, %v4135
    %v4143 = vsel %vm424, %v4121, %v4142
    %v4144 = vsel %vm194, %v4136, %v4137
    %v4145 = vsel %vm424, %v4125, %v4144
    %v4146 = vsel %vm194, %v4138, %v4139
    %v4147 = vsel %vm424, %v4129, %v4146
    %4156 = vst [vmem:[#allocation4 + $0x140] sm:$0xff] %v4141
    %4157 = vst.msk [vmem:[#allocation4 + $0x148] sm:$0xf] %vm122, %v4119
    %4158 = vst [vmem:[#allocation4 + $0x154] sm:$0xff] %v4143
    %4159 = vst.msk [vmem:[#allocation4 + $0x15c] sm:$0xf] %vm122, %v4123
    %4160 = vst [vmem:[#allocation4 + $0x168] sm:$0xff] %v4145
    %4161 = vst.msk [vmem:[#allocation4 + $0x170] sm:$0xf] %vm122, %v4127
    %4162 = vst [vmem:[#allocation4 + $0x17c] sm:$0xff] %v4147
    %4163 = vst.msk [vmem:[#allocation4 + $0x184] sm:$0xf] %vm122, %v4131
    %v4164 = vld [vmem:[%s100] sm:$0xff]
    %v4165 = vld [vmem:[%s100 + $0x8] sm:$0xf]
    %v4166 = vld [vmem:[%s100 + $0xc] sm:$0xff]
    %v4167 = vld [vmem:[%s100 + $0x14] sm:$0xf]
    %v4168 = vld [vmem:[%s100 + $0x18] sm:$0xff]
    %v4169 = vld [vmem:[%s100 + $0x20] sm:$0xf]
    %v4170 = vld [vmem:[%s100 + $0x24] sm:$0xff]
    %v4171 = vld [vmem:[%s100 + $0x2c] sm:$0xf]
    %4180 = vrot.lane.b32.xlu0 %v4164, 13
    %v4181 = vpop.permute.xlu0 %4180
    %4182 = vrot.lane.b32.xlu0 %v4165, 13
    %v4183 = vpop.permute.xlu0 %4182
    %4184 = vrot.lane.b32.xlu0 %v4166, 13
    %v4185 = vpop.permute.xlu0 %4184
    %4186 = vrot.lane.b32.xlu0 %v4167, 13
    %v4187 = vpop.permute.xlu0 %4186
    %4188 = vrot.lane.b32.xlu0 %v4168, 13
    %v4189 = vpop.permute.xlu0 %4188
    %4190 = vrot.lane.b32.xlu0 %v4169, 13
    %v4191 = vpop.permute.xlu0 %4190
    %4192 = vrot.lane.b32.xlu0 %v4170, 13
    %v4193 = vpop.permute.xlu0 %4192
    %4194 = vrot.lane.b32.xlu0 %v4171, 13
    %v4195 = vpop.permute.xlu0 %4194
    %v4196 = vrot.slane %v4181, 4
    %v4197 = vrot.slane %v4185, 4
    %v4198 = vrot.slane %v4189, 4
    %v4199 = vrot.slane %v4193, 4
    %v4200 = vsel %vm460, %v4196, %v4181
    %v4201 = vsel %vm460, %v4196, %v4183
    %v4202 = vsel %vm460, %v4197, %v4185
    %v4203 = vsel %vm460, %v4197, %v4187
    %v4204 = vsel %vm460, %v4198, %v4189
    %v4205 = vsel %vm460, %v4198, %v4191
    %v4206 = vsel %vm460, %v4199, %v4193
    %v4207 = vsel %vm460, %v4199, %v4195
    %4216 = vst.msk [vmem:[#allocation4 + $0x148] sm:$0xff] %vm162, %v4200
    %4217 = vst.msk [vmem:[#allocation4 + $0x150] sm:$0xf] %vm164, %v4201
    %4218 = vst.msk [vmem:[#allocation4 + $0x15c] sm:$0xff] %vm162, %v4202
    %4219 = vst.msk [vmem:[#allocation4 + $0x164] sm:$0xf] %vm164, %v4203
    %4220 = vst.msk [vmem:[#allocation4 + $0x170] sm:$0xff] %vm162, %v4204
    %4221 = vst.msk [vmem:[#allocation4 + $0x178] sm:$0xf] %vm164, %v4205
    %4222 = vst.msk [vmem:[#allocation4 + $0x184] sm:$0xff] %vm162, %v4206
    %4223 = vst.msk [vmem:[#allocation4 + $0x18c] sm:$0xf] %vm164, %v4207
    %v4224 = vld [vmem:[#allocation3] sm:$0xff]
    %v4225 = vld [vmem:[#allocation3 + $0x8] sm:$0xf]
    %v4226 = vld [vmem:[#allocation3 + $0xc] sm:$0xff]
    %v4227 = vld [vmem:[#allocation3 + $0x14] sm:$0xf]
    %v4228 = vld [vmem:[#allocation3 + $0x18] sm:$0xff]
    %v4229 = vld [vmem:[#allocation3 + $0x20] sm:$0xf]
    %v4230 = vld [vmem:[#allocation3 + $0x24] sm:$0xff]
    %v4231 = vld [vmem:[#allocation3 + $0x2c] sm:$0xf]
    %4240 = vrot.lane.b32.xlu0 %v4224, 108
    %v4241 = vpop.permute.xlu0 %4240
    %4242 = vrot.lane.b32.xlu0 %v4225, 108
    %v4243 = vpop.permute.xlu0 %4242
    %4244 = vrot.lane.b32.xlu0 %v4226, 108
    %v4245 = vpop.permute.xlu0 %4244
    %4246 = vrot.lane.b32.xlu0 %v4227, 108
    %v4247 = vpop.permute.xlu0 %4246
    %4248 = vrot.lane.b32.xlu0 %v4228, 108
    %v4249 = vpop.permute.xlu0 %4248
    %4250 = vrot.lane.b32.xlu0 %v4229, 108
    %v4251 = vpop.permute.xlu0 %4250
    %4252 = vrot.lane.b32.xlu0 %v4230, 108
    %v4253 = vpop.permute.xlu0 %4252
    %4254 = vrot.lane.b32.xlu0 %v4231, 108
    %v4255 = vpop.permute.xlu0 %4254
    %v4256 = vrot.slane %v4241, 4
    %v4257 = vrot.slane %v4243, 4
    %v4258 = vrot.slane %v4245, 4
    %v4259 = vrot.slane %v4247, 4
    %v4260 = vrot.slane %v4249, 4
    %v4261 = vrot.slane %v4251, 4
    %v4262 = vrot.slane %v4253, 4
    %v4263 = vrot.slane %v4255, 4
    %v4264 = vsel %vm194, %v4256, %v4257
    %v4265 = vsel %vm500, %v4241, %v4264
    %v4266 = vsel %vm194, %v4258, %v4259
    %v4267 = vsel %vm500, %v4245, %v4266
    %v4268 = vsel %vm194, %v4260, %v4261
    %v4269 = vsel %vm500, %v4249, %v4268
    %v4270 = vsel %vm194, %v4262, %v4263
    %v4271 = vsel %vm500, %v4253, %v4270
    %4280 = vst [vmem:[#allocation4 + $0x190] sm:$0xff] %v4265
    %4281 = vst.msk [vmem:[#allocation4 + $0x198] sm:$0xf] %vm122, %v4243
    %4282 = vst [vmem:[#allocation4 + $0x1a4] sm:$0xff] %v4267
    %4283 = vst.msk [vmem:[#allocation4 + $0x1ac] sm:$0xf] %vm122, %v4247
    %4284 = vst [vmem:[#allocation4 + $0x1b8] sm:$0xff] %v4269
    %4285 = vst.msk [vmem:[#allocation4 + $0x1c0] sm:$0xf] %vm122, %v4251
    %4286 = vst [vmem:[#allocation4 + $0x1cc] sm:$0xff] %v4271
    %4287 = vst.msk [vmem:[#allocation4 + $0x1d4] sm:$0xf] %vm122, %v4255
    %v4288 = vld [vmem:[%s100] sm:$0xff]
    %v4289 = vld [vmem:[%s100 + $0x8] sm:$0xf]
    %v4290 = vld [vmem:[%s100 + $0xc] sm:$0xff]
    %v4291 = vld [vmem:[%s100 + $0x14] sm:$0xf]
    %v4292 = vld [vmem:[%s100 + $0x18] sm:$0xff]
    %v4293 = vld [vmem:[%s100 + $0x20] sm:$0xf]
    %v4294 = vld [vmem:[%s100 + $0x24] sm:$0xff]
    %v4295 = vld [vmem:[%s100 + $0x2c] sm:$0xf]
    %4304 = vrot.lane.b32.xlu0 %v4288, 12
    %v4305 = vpop.permute.xlu0 %4304
    %4306 = vrot.lane.b32.xlu0 %v4289, 12
    %v4307 = vpop.permute.xlu0 %4306
    %4308 = vrot.lane.b32.xlu0 %v4290, 12
    %v4309 = vpop.permute.xlu0 %4308
    %4310 = vrot.lane.b32.xlu0 %v4291, 12
    %v4311 = vpop.permute.xlu0 %4310
    %4312 = vrot.lane.b32.xlu0 %v4292, 12
    %v4313 = vpop.permute.xlu0 %4312
    %4314 = vrot.lane.b32.xlu0 %v4293, 12
    %v4315 = vpop.permute.xlu0 %4314
    %4316 = vrot.lane.b32.xlu0 %v4294, 12
    %v4317 = vpop.permute.xlu0 %4316
    %4318 = vrot.lane.b32.xlu0 %v4295, 12
    %v4319 = vpop.permute.xlu0 %4318
    %v4320 = vrot.slane %v4305, 4
    %v4321 = vrot.slane %v4309, 4
    %v4322 = vrot.slane %v4313, 4
    %v4323 = vrot.slane %v4317, 4
    %v4324 = vsel %vm536, %v4320, %v4305
    %v4325 = vsel %vm536, %v4320, %v4307
    %v4326 = vsel %vm536, %v4321, %v4309
    %v4327 = vsel %vm536, %v4321, %v4311
    %v4328 = vsel %vm536, %v4322, %v4313
    %v4329 = vsel %vm536, %v4322, %v4315
    %v4330 = vsel %vm536, %v4323, %v4317
    %v4331 = vsel %vm536, %v4323, %v4319
    %4340 = vst.msk [vmem:[#allocation4 + $0x198] sm:$0xff] %vm162, %v4324
    %4341 = vst.msk [vmem:[#allocation4 + $0x1a0] sm:$0xf] %vm164, %v4325
    %4342 = vst.msk [vmem:[#allocation4 + $0x1ac] sm:$0xff] %vm162, %v4326
    %4343 = vst.msk [vmem:[#allocation4 + $0x1b4] sm:$0xf] %vm164, %v4327
    %4344 = vst.msk [vmem:[#allocation4 + $0x1c0] sm:$0xff] %vm162, %v4328
    %4345 = vst.msk [vmem:[#allocation4 + $0x1c8] sm:$0xf] %vm164, %v4329
    %4346 = vst.msk [vmem:[#allocation4 + $0x1d4] sm:$0xff] %vm162, %v4330
    %4347 = vst.msk [vmem:[#allocation4 + $0x1dc] sm:$0xf] %vm164, %v4331
    %v4348 = vld [vmem:[#allocation3] sm:$0xff]
    %v4349 = vld [vmem:[#allocation3 + $0x8] sm:$0xf]
    %v4350 = vld [vmem:[#allocation3 + $0xc] sm:$0xff]
    %v4351 = vld [vmem:[#allocation3 + $0x14] sm:$0xf]
    %v4352 = vld [vmem:[#allocation3 + $0x18] sm:$0xff]
    %v4353 = vld [vmem:[#allocation3 + $0x20] sm:$0xf]
    %v4354 = vld [vmem:[#allocation3 + $0x24] sm:$0xff]
    %v4355 = vld [vmem:[#allocation3 + $0x2c] sm:$0xf]
    %4364 = vrot.lane.b32.xlu0 %v4348, 92
    %v4365 = vpop.permute.xlu0 %4364
    %4366 = vrot.lane.b32.xlu0 %v4349, 92
    %v4367 = vpop.permute.xlu0 %4366
    %4368 = vrot.lane.b32.xlu0 %v4350, 92
    %v4369 = vpop.permute.xlu0 %4368
    %4370 = vrot.lane.b32.xlu0 %v4351, 92
    %v4371 = vpop.permute.xlu0 %4370
    %4372 = vrot.lane.b32.xlu0 %v4352, 92
    %v4373 = vpop.permute.xlu0 %4372
    %4374 = vrot.lane.b32.xlu0 %v4353, 92
    %v4375 = vpop.permute.xlu0 %4374
    %4376 = vrot.lane.b32.xlu0 %v4354, 92
    %v4377 = vpop.permute.xlu0 %4376
    %4378 = vrot.lane.b32.xlu0 %v4355, 92
    %v4379 = vpop.permute.xlu0 %4378
    %v4380 = vrot.slane %v4365, 4
    %v4381 = vrot.slane %v4367, 4
    %v4382 = vrot.slane %v4369, 4
    %v4383 = vrot.slane %v4371, 4
    %v4384 = vrot.slane %v4373, 4
    %v4385 = vrot.slane %v4375, 4
    %v4386 = vrot.slane %v4377, 4
    %v4387 = vrot.slane %v4379, 4
    %v4388 = vsel %vm194, %v4380, %v4381
    %v4389 = vsel %vm576, %v4365, %v4388
    %v4390 = vsel %vm194, %v4382, %v4383
    %v4391 = vsel %vm576, %v4369, %v4390
    %v4392 = vsel %vm194, %v4384, %v4385
    %v4393 = vsel %vm576, %v4373, %v4392
    %v4394 = vsel %vm194, %v4386, %v4387
    %v4395 = vsel %vm576, %v4377, %v4394
    %4404 = vst [vmem:[#allocation4 + $0x1e0] sm:$0xff] %v4389
    %4405 = vst.msk [vmem:[#allocation4 + $0x1e8] sm:$0xf] %vm122, %v4367
    %4406 = vst [vmem:[#allocation4 + $0x1f4] sm:$0xff] %v4391
    %4407 = vst.msk [vmem:[#allocation4 + $0x1fc] sm:$0xf] %vm122, %v4371
    %4408 = vst [vmem:[#allocation4 + $0x208] sm:$0xff] %v4393
    %4409 = vst.msk [vmem:[#allocation4 + $0x210] sm:$0xf] %vm122, %v4375
    %4410 = vst [vmem:[#allocation4 + $0x21c] sm:$0xff] %v4395
    %4411 = vst.msk [vmem:[#allocation4 + $0x224] sm:$0xf] %vm122, %v4379
    %v4412 = vld [vmem:[%s100] sm:$0xff]
    %v4413 = vld [vmem:[%s100 + $0x8] sm:$0xf]
    %v4414 = vld [vmem:[%s100 + $0xc] sm:$0xff]
    %v4415 = vld [vmem:[%s100 + $0x14] sm:$0xf]
    %v4416 = vld [vmem:[%s100 + $0x18] sm:$0xff]
    %v4417 = vld [vmem:[%s100 + $0x20] sm:$0xf]
    %v4418 = vld [vmem:[%s100 + $0x24] sm:$0xff]
    %v4419 = vld [vmem:[%s100 + $0x2c] sm:$0xf]
    %4428 = vrot.lane.b32.xlu0 %v4412, 124
    %v4429 = vpop.permute.xlu0 %4428
    %4430 = vrot.lane.b32.xlu0 %v4413, 124
    %v4431 = vpop.permute.xlu0 %4430
    %4432 = vrot.lane.b32.xlu0 %v4414, 124
    %v4433 = vpop.permute.xlu0 %4432
    %4434 = vrot.lane.b32.xlu0 %v4415, 124
    %v4435 = vpop.permute.xlu0 %4434
    %4436 = vrot.lane.b32.xlu0 %v4416, 124
    %v4437 = vpop.permute.xlu0 %4436
    %4438 = vrot.lane.b32.xlu0 %v4417, 124
    %v4439 = vpop.permute.xlu0 %4438
    %4440 = vrot.lane.b32.xlu0 %v4418, 124
    %v4441 = vpop.permute.xlu0 %4440
    %4442 = vrot.lane.b32.xlu0 %v4419, 124
    %v4443 = vpop.permute.xlu0 %4442
    %v4444 = vrot.slane %v4429, 4
    %v4445 = vrot.slane %v4431, 4
    %v4446 = vrot.slane %v4433, 4
    %v4447 = vrot.slane %v4435, 4
    %v4448 = vrot.slane %v4437, 4
    %v4449 = vrot.slane %v4439, 4
    %v4450 = vrot.slane %v4441, 4
    %v4451 = vrot.slane %v4443, 4
    %v4452 = vsel %vm194, %v4444, %v4445
    %v4453 = vsel %vm615, %v4429, %v4452
    %v4454 = vsel %vm194, %v4446, %v4447
    %v4455 = vsel %vm615, %v4433, %v4454
    %v4456 = vsel %vm194, %v4448, %v4449
    %v4457 = vsel %vm615, %v4437, %v4456
    %v4458 = vsel %vm194, %v4450, %v4451
    %v4459 = vsel %vm615, %v4441, %v4458
    %4468 = vst.msk [vmem:[#allocation4 + $0x1e8] sm:$0xff] %vm162, %v4453
    %4469 = vst.msk [vmem:[#allocation4 + $0x1f0] sm:$0xf] %vm164, %v4431
    %4470 = vst.msk [vmem:[#allocation4 + $0x1fc] sm:$0xff] %vm162, %v4455
    %4471 = vst.msk [vmem:[#allocation4 + $0x204] sm:$0xf] %vm164, %v4435
    %4472 = vst.msk [vmem:[#allocation4 + $0x210] sm:$0xff] %vm162, %v4457
    %4473 = vst.msk [vmem:[#allocation4 + $0x218] sm:$0xf] %vm164, %v4439
    %4474 = vst.msk [vmem:[#allocation4 + $0x224] sm:$0xff] %vm162, %v4459
    %4475 = vst.msk [vmem:[#allocation4 + $0x22c] sm:$0xf] %vm164, %v4443
    %v4476 = vld [vmem:[#allocation3] sm:$0xff]
    %v4477 = vld [vmem:[#allocation3 + $0x8] sm:$0xf]
    %v4478 = vld [vmem:[#allocation3 + $0xc] sm:$0xff]
    %v4479 = vld [vmem:[#allocation3 + $0x14] sm:$0xf]
    %v4480 = vld [vmem:[#allocation3 + $0x18] sm:$0xff]
    %v4481 = vld [vmem:[#allocation3 + $0x20] sm:$0xf]
    %v4482 = vld [vmem:[#allocation3 + $0x24] sm:$0xff]
    %v4483 = vld [vmem:[#allocation3 + $0x2c] sm:$0xf]
    %4492 = vrot.lane.b32.xlu0 %v4476, 91
    %v4493 = vpop.permute.xlu0 %4492
    %4494 = vrot.lane.b32.xlu0 %v4477, 91
    %v4495 = vpop.permute.xlu0 %4494
    %4496 = vrot.lane.b32.xlu0 %v4478, 91
    %v4497 = vpop.permute.xlu0 %4496
    %4498 = vrot.lane.b32.xlu0 %v4479, 91
    %v4499 = vpop.permute.xlu0 %4498
    %4500 = vrot.lane.b32.xlu0 %v4480, 91
    %v4501 = vpop.permute.xlu0 %4500
    %4502 = vrot.lane.b32.xlu0 %v4481, 91
    %v4503 = vpop.permute.xlu0 %4502
    %4504 = vrot.lane.b32.xlu0 %v4482, 91
    %v4505 = vpop.permute.xlu0 %4504
    %4506 = vrot.lane.b32.xlu0 %v4483, 91
    %v4507 = vpop.permute.xlu0 %4506
    %v4508 = vrot.slane %v4493, 4
    %v4509 = vrot.slane %v4495, 4
    %v4510 = vrot.slane %v4497, 4
    %v4511 = vrot.slane %v4499, 4
    %v4512 = vrot.slane %v4501, 4
    %v4513 = vrot.slane %v4503, 4
    %v4514 = vrot.slane %v4505, 4
    %v4515 = vrot.slane %v4507, 4
    %v4516 = vsel %vm194, %v4508, %v4509
    %v4517 = vsel %vm654, %v4493, %v4516
    %v4518 = vsel %vm194, %v4510, %v4511
    %v4519 = vsel %vm654, %v4497, %v4518
    %v4520 = vsel %vm194, %v4512, %v4513
    %v4521 = vsel %vm654, %v4501, %v4520
    %v4522 = vsel %vm194, %v4514, %v4515
    %v4523 = vsel %vm654, %v4505, %v4522
    %4532 = vst [vmem:[#allocation4 + $0x230] sm:$0xff] %v4517
    %4533 = vst.msk [vmem:[#allocation4 + $0x238] sm:$0xf] %vm122, %v4495
    %4534 = vst [vmem:[#allocation4 + $0x244] sm:$0xff] %v4519
    %4535 = vst.msk [vmem:[#allocation4 + $0x24c] sm:$0xf] %vm122, %v4499
    %4536 = vst [vmem:[#allocation4 + $0x258] sm:$0xff] %v4521
    %4537 = vst.msk [vmem:[#allocation4 + $0x260] sm:$0xf] %vm122, %v4503
    %4538 = vst [vmem:[#allocation4 + $0x26c] sm:$0xff] %v4523
    %4539 = vst.msk [vmem:[#allocation4 + $0x274] sm:$0xf] %vm122, %v4507
    %v4540 = vld [vmem:[%s100] sm:$0xff]
    %v4541 = vld [vmem:[%s100 + $0x8] sm:$0xf]
    %v4542 = vld [vmem:[%s100 + $0xc] sm:$0xff]
    %v4543 = vld [vmem:[%s100 + $0x14] sm:$0xf]
    %v4544 = vld [vmem:[%s100 + $0x18] sm:$0xff]
    %v4545 = vld [vmem:[%s100 + $0x20] sm:$0xf]
    %v4546 = vld [vmem:[%s100 + $0x24] sm:$0xff]
    %v4547 = vld [vmem:[%s100 + $0x2c] sm:$0xf]
    %4556 = vrot.lane.b32.xlu0 %v4540, 123
    %v4557 = vpop.permute.xlu0 %4556
    %4558 = vrot.lane.b32.xlu0 %v4541, 123
    %v4559 = vpop.permute.xlu0 %4558
    %4560 = vrot.lane.b32.xlu0 %v4542, 123
    %v4561 = vpop.permute.xlu0 %4560
    %4562 = vrot.lane.b32.xlu0 %v4543, 123
    %v4563 = vpop.permute.xlu0 %4562
    %4564 = vrot.lane.b32.xlu0 %v4544, 123
    %v4565 = vpop.permute.xlu0 %4564
    %4566 = vrot.lane.b32.xlu0 %v4545, 123
    %v4567 = vpop.permute.xlu0 %4566
    %4568 = vrot.lane.b32.xlu0 %v4546, 123
    %v4569 = vpop.permute.xlu0 %4568
    %4570 = vrot.lane.b32.xlu0 %v4547, 123
    %v4571 = vpop.permute.xlu0 %4570
    %v4572 = vrot.slane %v4557, 4
    %v4573 = vrot.slane %v4559, 4
    %v4574 = vrot.slane %v4561, 4
    %v4575 = vrot.slane %v4563, 4
    %v4576 = vrot.slane %v4565, 4
    %v4577 = vrot.slane %v4567, 4
    %v4578 = vrot.slane %v4569, 4
    %v4579 = vrot.slane %v4571, 4
    %v4580 = vsel %vm194, %v4572, %v4573
    %v4581 = vsel %vm693, %v4557, %v4580
    %v4582 = vsel %vm194, %v4574, %v4575
    %v4583 = vsel %vm693, %v4561, %v4582
    %v4584 = vsel %vm194, %v4576, %v4577
    %v4585 = vsel %vm693, %v4565, %v4584
    %v4586 = vsel %vm194, %v4578, %v4579
    %v4587 = vsel %vm693, %v4569, %v4586
    %4596 = vst.msk [vmem:[#allocation4 + $0x238] sm:$0xff] %vm162, %v4581
    %4597 = vst.msk [vmem:[#allocation4 + $0x240] sm:$0xf] %vm164, %v4559
    %4598 = vst.msk [vmem:[#allocation4 + $0x24c] sm:$0xff] %vm162, %v4583
    %4599 = vst.msk [vmem:[#allocation4 + $0x254] sm:$0xf] %vm164, %v4563
    %4600 = vst.msk [vmem:[#allocation4 + $0x260] sm:$0xff] %vm162, %v4585
    %4601 = vst.msk [vmem:[#allocation4 + $0x268] sm:$0xf] %vm164, %v4567
    %4602 = vst.msk [vmem:[#allocation4 + $0x274] sm:$0xff] %vm162, %v4587
    %4603 = vst.msk [vmem:[#allocation4 + $0x27c] sm:$0xf] %vm164, %v4571
    %v4604 = vld [vmem:[#allocation3] sm:$0xff]
    %v4605 = vld [vmem:[#allocation3 + $0x8] sm:$0xf]
    %v4606 = vld [vmem:[#allocation3 + $0xc] sm:$0xff]
    %v4607 = vld [vmem:[#allocation3 + $0x14] sm:$0xf]
    %v4608 = vld [vmem:[#allocation3 + $0x18] sm:$0xff]
    %v4609 = vld [vmem:[#allocation3 + $0x20] sm:$0xf]
    %v4610 = vld [vmem:[#allocation3 + $0x24] sm:$0xff]
    %v4611 = vld [vmem:[#allocation3 + $0x2c] sm:$0xf]
    %4620 = vrot.lane.b32.xlu0 %v4604, 90
    %v4621 = vpop.permute.xlu0 %4620
    %4622 = vrot.lane.b32.xlu0 %v4605, 90
    %v4623 = vpop.permute.xlu0 %4622
    %4624 = vrot.lane.b32.xlu0 %v4606, 90
    %v4625 = vpop.permute.xlu0 %4624
    %4626 = vrot.lane.b32.xlu0 %v4607, 90
    %v4627 = vpop.permute.xlu0 %4626
    %4628 = vrot.lane.b32.xlu0 %v4608, 90
    %v4629 = vpop.permute.xlu0 %4628
    %4630 = vrot.lane.b32.xlu0 %v4609, 90
    %v4631 = vpop.permute.xlu0 %4630
    %4632 = vrot.lane.b32.xlu0 %v4610, 90
    %v4633 = vpop.permute.xlu0 %4632
    %4634 = vrot.lane.b32.xlu0 %v4611, 90
    %v4635 = vpop.permute.xlu0 %4634
    %v4636 = vrot.slane %v4621, 4
    %v4637 = vrot.slane %v4623, 4
    %v4638 = vrot.slane %v4625, 4
    %v4639 = vrot.slane %v4627, 4
    %v4640 = vrot.slane %v4629, 4
    %v4641 = vrot.slane %v4631, 4
    %v4642 = vrot.slane %v4633, 4
    %v4643 = vrot.slane %v4635, 4
    %v4644 = vsel %vm194, %v4636, %v4637
    %v4645 = vsel %vm732, %v4621, %v4644
    %v4646 = vsel %vm194, %v4638, %v4639
    %v4647 = vsel %vm732, %v4625, %v4646
    %v4648 = vsel %vm194, %v4640, %v4641
    %v4649 = vsel %vm732, %v4629, %v4648
    %v4650 = vsel %vm194, %v4642, %v4643
    %v4651 = vsel %vm732, %v4633, %v4650
    %4660 = vst [vmem:[#allocation4 + $0x280] sm:$0xff] %v4645
    %4661 = vst.msk [vmem:[#allocation4 + $0x288] sm:$0xf] %vm122, %v4623
    %4662 = vst [vmem:[#allocation4 + $0x294] sm:$0xff] %v4647
    %4663 = vst.msk [vmem:[#allocation4 + $0x29c] sm:$0xf] %vm122, %v4627
    %4664 = vst [vmem:[#allocation4 + $0x2a8] sm:$0xff] %v4649
    %4665 = vst.msk [vmem:[#allocation4 + $0x2b0] sm:$0xf] %vm122, %v4631
    %4666 = vst [vmem:[#allocation4 + $0x2bc] sm:$0xff] %v4651
    %4667 = vst.msk [vmem:[#allocation4 + $0x2c4] sm:$0xf] %vm122, %v4635
    %v4668 = vld [vmem:[%s100] sm:$0xff]
    %v4669 = vld [vmem:[%s100 + $0x8] sm:$0xf]
    %v4670 = vld [vmem:[%s100 + $0xc] sm:$0xff]
    %v4671 = vld [vmem:[%s100 + $0x14] sm:$0xf]
    %v4672 = vld [vmem:[%s100 + $0x18] sm:$0xff]
    %v4673 = vld [vmem:[%s100 + $0x20] sm:$0xf]
    %v4674 = vld [vmem:[%s100 + $0x24] sm:$0xff]
    %v4675 = vld [vmem:[%s100 + $0x2c] sm:$0xf]
    %4684 = vrot.lane.b32.xlu0 %v4668, 122
    %v4685 = vpop.permute.xlu0 %4684
    %4686 = vrot.lane.b32.xlu0 %v4669, 122
    %v4687 = vpop.permute.xlu0 %4686
    %4688 = vrot.lane.b32.xlu0 %v4670, 122
    %v4689 = vpop.permute.xlu0 %4688
    %4690 = vrot.lane.b32.xlu0 %v4671, 122
    %v4691 = vpop.permute.xlu0 %4690
    %4692 = vrot.lane.b32.xlu0 %v4672, 122
    %v4693 = vpop.permute.xlu0 %4692
    %4694 = vrot.lane.b32.xlu0 %v4673, 122
    %v4695 = vpop.permute.xlu0 %4694
    %4696 = vrot.lane.b32.xlu0 %v4674, 122
    %v4697 = vpop.permute.xlu0 %4696
    %4698 = vrot.lane.b32.xlu0 %v4675, 122
    %v4699 = vpop.permute.xlu0 %4698
    %v4700 = vrot.slane %v4685, 4
    %v4701 = vrot.slane %v4687, 4
    %v4702 = vrot.slane %v4689, 4
    %v4703 = vrot.slane %v4691, 4
    %v4704 = vrot.slane %v4693, 4
    %v4705 = vrot.slane %v4695, 4
    %v4706 = vrot.slane %v4697, 4
    %v4707 = vrot.slane %v4699, 4
    %v4708 = vsel %vm194, %v4700, %v4701
    %v4709 = vsel %vm771, %v4685, %v4708
    %v4710 = vsel %vm194, %v4702, %v4703
    %v4711 = vsel %vm771, %v4689, %v4710
    %v4712 = vsel %vm194, %v4704, %v4705
    %v4713 = vsel %vm771, %v4693, %v4712
    %v4714 = vsel %vm194, %v4706, %v4707
    %v4715 = vsel %vm771, %v4697, %v4714
    %4724 = vst.msk [vmem:[#allocation4 + $0x288] sm:$0xff] %vm162, %v4709
    %4725 = vst.msk [vmem:[#allocation4 + $0x290] sm:$0xf] %vm164, %v4687
    %4726 = vst.msk [vmem:[#allocation4 + $0x29c] sm:$0xff] %vm162, %v4711
    %4727 = vst.msk [vmem:[#allocation4 + $0x2a4] sm:$0xf] %vm164, %v4691
    %4728 = vst.msk [vmem:[#allocation4 + $0x2b0] sm:$0xff] %vm162, %v4713
    %4729 = vst.msk [vmem:[#allocation4 + $0x2b8] sm:$0xf] %vm164, %v4695
    %4730 = vst.msk [vmem:[#allocation4 + $0x2c4] sm:$0xff] %vm162, %v4715
    %4731 = vst.msk [vmem:[#allocation4 + $0x2cc] sm:$0xf] %vm164, %v4699
    %v4732 = vld [vmem:[#allocation4] sm:$0xff]
    %v4733 = vld [vmem:[#allocation4 + $0x8] sm:$0xff]
    %v4734 = vld [vmem:[#allocation4 + $0x10] sm:$0xf]
    %v4735 = vld [vmem:[#allocation4 + $0x14] sm:$0xff]
    %v4736 = vld [vmem:[#allocation4 + $0x1c] sm:$0xff]
    %v4737 = vld [vmem:[#allocation4 + $0x24] sm:$0xf]
    %v4738 = vld [vmem:[#allocation4 + $0x28] sm:$0xff]
    %v4739 = vld [vmem:[#allocation4 + $0x30] sm:$0xff]
    %v4740 = vld [vmem:[#allocation4 + $0x38] sm:$0xf]
    %v4741 = vld [vmem:[#allocation4 + $0x3c] sm:$0xff]
    %v4742 = vld [vmem:[#allocation4 + $0x44] sm:$0xff]
    %v4743 = vld [vmem:[#allocation4 + $0x4c] sm:$0xf]
    %v4744 = vld [vmem:[#allocation4 + $0x50] sm:$0xff]
    %v4745 = vld [vmem:[#allocation4 + $0x58] sm:$0xff]
    %v4746 = vld [vmem:[#allocation4 + $0x60] sm:$0xf]
    %v4747 = vld [vmem:[#allocation4 + $0x64] sm:$0xff]
    %v4748 = vld [vmem:[#allocation4 + $0x6c] sm:$0xff]
    %v4749 = vld [vmem:[#allocation4 + $0x74] sm:$0xf]
    %v4750 = vld [vmem:[#allocation4 + $0x78] sm:$0xff]
    %v4751 = vld [vmem:[#allocation4 + $0x80] sm:$0xff]
    %v4752 = vld [vmem:[#allocation4 + $0x88] sm:$0xf]
    %v4753 = vld [vmem:[#allocation4 + $0x8c] sm:$0xff]
    %v4754 = vld [vmem:[#allocation4 + $0x94] sm:$0xff]
    %v4755 = vld [vmem:[#allocation4 + $0x9c] sm:$0xf]
    %v4756 = vld [vmem:[#allocation4 + $0xa0] sm:$0xff]
    %v4757 = vld [vmem:[#allocation4 + $0xa8] sm:$0xff]
    %v4758 = vld [vmem:[#allocation4 + $0xb0] sm:$0xf]
    %v4759 = vld [vmem:[#allocation4 + $0xb4] sm:$0xff]
    %v4760 = vld [vmem:[#allocation4 + $0xbc] sm:$0xff]
    %v4761 = vld [vmem:[#allocation4 + $0xc4] sm:$0xf]
    %v4762 = vld [vmem:[#allocation4 + $0xc8] sm:$0xff]
    %v4763 = vld [vmem:[#allocation4 + $0xd0] sm:$0xff]
    %v4764 = vld [vmem:[#allocation4 + $0xd8] sm:$0xf]
    %v4765 = vld [vmem:[#allocation4 + $0xdc] sm:$0xff]
    %v4766 = vld [vmem:[#allocation4 + $0xe4] sm:$0xff]
    %v4767 = vld [vmem:[#allocation4 + $0xec] sm:$0xf]
    %v4768 = vld [vmem:[#allocation4 + $0xf0] sm:$0xff]
    %v4769 = vld [vmem:[#allocation4 + $0xf8] sm:$0xff]
    %v4770 = vld [vmem:[#allocation4 + $0x100] sm:$0xf]
    %v4771 = vld [vmem:[#allocation4 + $0x104] sm:$0xff]
    %v4772 = vld [vmem:[#allocation4 + $0x10c] sm:$0xff]
    %v4773 = vld [vmem:[#allocation4 + $0x114] sm:$0xf]
    %v4774 = vld [vmem:[#allocation4 + $0x118] sm:$0xff]
    %v4775 = vld [vmem:[#allocation4 + $0x120] sm:$0xff]
    %v4776 = vld [vmem:[#allocation4 + $0x128] sm:$0xf]
    %v4777 = vld [vmem:[#allocation4 + $0x12c] sm:$0xff]
    %v4778 = vld [vmem:[#allocation4 + $0x134] sm:$0xff]
    %v4779 = vld [vmem:[#allocation4 + $0x13c] sm:$0xf]
    %v4780 = vld [vmem:[#allocation4 + $0x140] sm:$0xff]
    %v4781 = vld [vmem:[#allocation4 + $0x148] sm:$0xff]
    %v4782 = vld [vmem:[#allocation4 + $0x150] sm:$0xf]
    %v4783 = vld [vmem:[#allocation4 + $0x154] sm:$0xff]
    %v4784 = vld [vmem:[#allocation4 + $0x15c] sm:$0xff]
    %v4785 = vld [vmem:[#allocation4 + $0x164] sm:$0xf]
    %v4786 = vld [vmem:[#allocation4 + $0x168] sm:$0xff]
    %v4787 = vld [vmem:[#allocation4 + $0x170] sm:$0xff]
    %v4788 = vld [vmem:[#allocation4 + $0x178] sm:$0xf]
    %v4789 = vld [vmem:[#allocation4 + $0x17c] sm:$0xff]
    %v4790 = vld [vmem:[#allocation4 + $0x184] sm:$0xff]
    %v4791 = vld [vmem:[#allocation4 + $0x18c] sm:$0xf]
    %v4792 = vld [vmem:[#allocation4 + $0x190] sm:$0xff]
    %v4793 = vld [vmem:[#allocation4 + $0x198] sm:$0xff]
    %v4794 = vld [vmem:[#allocation4 + $0x1a0] sm:$0xf]
    %v4795 = vld [vmem:[#allocation4 + $0x1a4] sm:$0xff]
    %v4796 = vld [vmem:[#allocation4 + $0x1ac] sm:$0xff]
    %v4797 = vld [vmem:[#allocation4 + $0x1b4] sm:$0xf]
    %v4798 = vld [vmem:[#allocation4 + $0x1b8] sm:$0xff]
    %v4799 = vld [vmem:[#allocation4 + $0x1c0] sm:$0xff]
    %v4800 = vld [vmem:[#allocation4 + $0x1c8] sm:$0xf]
    %v4801 = vld [vmem:[#allocation4 + $0x1cc] sm:$0xff]
    %v4802 = vld [vmem:[#allocation4 + $0x1d4] sm:$0xff]
    %v4803 = vld [vmem:[#allocation4 + $0x1dc] sm:$0xf]
    %v4804 = vld [vmem:[#allocation4 + $0x1e0] sm:$0xff]
    %v4805 = vld [vmem:[#allocation4 + $0x1e8] sm:$0xff]
    %v4806 = vld [vmem:[#allocation4 + $0x1f0] sm:$0xf]
    %v4807 = vld [vmem:[#allocation4 + $0x1f4] sm:$0xff]
    %v4808 = vld [vmem:[#allocation4 + $0x1fc] sm:$0xff]
    %v4809 = vld [vmem:[#allocation4 + $0x204] sm:$0xf]
    %v4810 = vld [vmem:[#allocation4 + $0x208] sm:$0xff]
    %v4811 = vld [vmem:[#allocation4 + $0x210] sm:$0xff]
    %v4812 = vld [vmem:[#allocation4 + $0x218] sm:$0xf]
    %v4813 = vld [vmem:[#allocation4 + $0x21c] sm:$0xff]
    %v4814 = vld [vmem:[#allocation4 + $0x224] sm:$0xff]
    %v4815 = vld [vmem:[#allocation4 + $0x22c] sm:$0xf]
    %v4816 = vld [vmem:[#allocation4 + $0x230] sm:$0xff]
    %v4817 = vld [vmem:[#allocation4 + $0x238] sm:$0xff]
    %v4818 = vld [vmem:[#allocation4 + $0x240] sm:$0xf]
    %v4819 = vld [vmem:[#allocation4 + $0x244] sm:$0xff]
    %v4820 = vld [vmem:[#allocation4 + $0x24c] sm:$0xff]
    %v4821 = vld [vmem:[#allocation4 + $0x254] sm:$0xf]
    %v4822 = vld [vmem:[#allocation4 + $0x258] sm:$0xff]
    %v4823 = vld [vmem:[#allocation4 + $0x260] sm:$0xff]
    %v4824 = vld [vmem:[#allocation4 + $0x268] sm:$0xf]
    %v4825 = vld [vmem:[#allocation4 + $0x26c] sm:$0xff]
    %v4826 = vld [vmem:[#allocation4 + $0x274] sm:$0xff]
    %v4827 = vld [vmem:[#allocation4 + $0x27c] sm:$0xf]
    %v4828 = vld [vmem:[#allocation4 + $0x280] sm:$0xff]
    %v4829 = vld [vmem:[#allocation4 + $0x288] sm:$0xff]
    %v4830 = vld [vmem:[#allocation4 + $0x290] sm:$0xf]
    %v4831 = vld [vmem:[#allocation4 + $0x294] sm:$0xff]
    %v4832 = vld [vmem:[#allocation4 + $0x29c] sm:$0xff]
    %v4833 = vld [vmem:[#allocation4 + $0x2a4] sm:$0xf]
    %v4834 = vld [vmem:[#allocation4 + $0x2a8] sm:$0xff]
    %v4835 = vld [vmem:[#allocation4 + $0x2b0] sm:$0xff]
    %v4836 = vld [vmem:[#allocation4 + $0x2b8] sm:$0xf]
    %v4837 = vld [vmem:[#allocation4 + $0x2bc] sm:$0xff]
    %v4838 = vld [vmem:[#allocation4 + $0x2c4] sm:$0xff]
    %v4839 = vld [vmem:[#allocation4 + $0x2cc] sm:$0xf]
    %v4840 = vld [vmem:[%s5] sm:$0xff]
    %v4841 = vld [vmem:[%s5 + $0x8] sm:$0xf]
    %v4842 = vld [vmem:[%s5 + $0xc] sm:$0xff]
    %v4843 = vld [vmem:[%s5 + $0x14] sm:$0xf]
    %v4844 = vld [vmem:[%s5 + $0x18] sm:$0xff]
    %v4845 = vld [vmem:[%s5 + $0x20] sm:$0xf]
    %v4846 = vld [vmem:[%s5 + $0x24] sm:$0xff]
    %v4847 = vld [vmem:[%s5 + $0x2c] sm:$0xf]
    %v4848 = vld [vmem:[%s6] sm:$0xff]
    %v4849 = vld [vmem:[%s6 + $0x8] sm:$0xff]
    %v4850 = vld [vmem:[%s6 + $0x10] sm:$0xff]
    %v4851 = vld [vmem:[%s6 + $0x18] sm:$0xff]
    %4853 = vset.pattern.permute.xlu0 0
    %4854 = vperm.xlu0 %4853, %v4848
    %v4855 = vpop.permute.xlu0 %4854
    %4858 = vset.pattern.permute.xlu0 0
    %4859 = vperm.xlu0 %4858, %v4849
    %v4860 = vpop.permute.xlu0 %4859
    %4863 = vset.pattern.permute.xlu0 0
    %4864 = vperm.xlu0 %4863, %v4850
    %v4865 = vpop.permute.xlu0 %4864
    %4868 = vset.pattern.permute.xlu0 0
    %4869 = vperm.xlu0 %4868, %v4851
    %v4870 = vpop.permute.xlu0 %4869
    %v4880 = vunpack.c.l.b16 %v4840
    %v4881 = vunpack.c.h.b16 %v4840
    %v4882 = vunpack.c.l.b16 %v4841
    %v4883 = vunpack.c.l.b16 %v4842
    %v4884 = vunpack.c.h.b16 %v4842
    %v4885 = vunpack.c.l.b16 %v4843
    %v4886 = vunpack.c.l.b16 %v4844
    %v4887 = vunpack.c.h.b16 %v4844
    %v4888 = vunpack.c.l.b16 %v4845
    %v4889 = vunpack.c.l.b16 %v4846
    %v4890 = vunpack.c.h.b16 %v4846
    %v4891 = vunpack.c.l.b16 %v4847
    %v4892 = vpack.c.b16 %v4883, %v4880
    %v4893 = vpack.c.b16 %v4884, %v4881
    %v4894 = vpack.c.b16 %v4885, %v4882
    %v4895 = vpack.c.b16 %v4889, %v4886
    %v4896 = vpack.c.b16 %v4890, %v4887
    %v4897 = vpack.c.b16 %v4891, %v4888
    %v5010 = vunpack.c.l.b16 %v4732
    %v5011 = vunpack.c.h.b16 %v4732
    %v5012 = vunpack.c.l.b16 %v4733
    %v5013 = vunpack.c.h.b16 %v4733
    %v5014 = vunpack.c.l.b16 %v4734
    %v5015 = vunpack.c.l.b16 %v4735
    %v5016 = vunpack.c.h.b16 %v4735
    %v5017 = vunpack.c.l.b16 %v4736
    %v5018 = vunpack.c.h.b16 %v4736
    %v5019 = vunpack.c.l.b16 %v4737
    %v5020 = vunpack.c.l.b16 %v4738
    %v5021 = vunpack.c.h.b16 %v4738
    %v5022 = vunpack.c.l.b16 %v4739
    %v5023 = vunpack.c.h.b16 %v4739
    %v5024 = vunpack.c.l.b16 %v4740
    %v5025 = vunpack.c.l.b16 %v4741
    %v5026 = vunpack.c.h.b16 %v4741
    %v5027 = vunpack.c.l.b16 %v4742
    %v5028 = vunpack.c.h.b16 %v4742
    %v5029 = vunpack.c.l.b16 %v4743
    %v5030 = vunpack.c.l.b16 %v4744
    %v5031 = vunpack.c.h.b16 %v4744
    %v5032 = vunpack.c.l.b16 %v4745
    %v5033 = vunpack.c.h.b16 %v4745
    %v5034 = vunpack.c.l.b16 %v4746
    %v5035 = vunpack.c.l.b16 %v4747
    %v5036 = vunpack.c.h.b16 %v4747
    %v5037 = vunpack.c.l.b16 %v4748
    %v5038 = vunpack.c.h.b16 %v4748
    %v5039 = vunpack.c.l.b16 %v4749
    %v5040 = vunpack.c.l.b16 %v4750
    %v5041 = vunpack.c.h.b16 %v4750
    %v5042 = vunpack.c.l.b16 %v4751
    %v5043 = vunpack.c.h.b16 %v4751
    %v5044 = vunpack.c.l.b16 %v4752
    %v5045 = vunpack.c.l.b16 %v4753
    %v5046 = vunpack.c.h.b16 %v4753
    %v5047 = vunpack.c.l.b16 %v4754
    %v5048 = vunpack.c.h.b16 %v4754
    %v5049 = vunpack.c.l.b16 %v4755
    %v5050 = vunpack.c.l.b16 %v4756
    %v5051 = vunpack.c.h.b16 %v4756
    %v5052 = vunpack.c.l.b16 %v4757
    %v5053 = vunpack.c.h.b16 %v4757
    %v5054 = vunpack.c.l.b16 %v4758
    %v5055 = vunpack.c.l.b16 %v4759
    %v5056 = vunpack.c.h.b16 %v4759
    %v5057 = vunpack.c.l.b16 %v4760
    %v5058 = vunpack.c.h.b16 %v4760
    %v5059 = vunpack.c.l.b16 %v4761
    %v5060 = vunpack.c.l.b16 %v4762
    %v5061 = vunpack.c.h.b16 %v4762
    %v5062 = vunpack.c.l.b16 %v4763
    %v5063 = vunpack.c.h.b16 %v4763
    %v5064 = vunpack.c.l.b16 %v4764
    %v5065 = vunpack.c.l.b16 %v4765
    %v5066 = vunpack.c.h.b16 %v4765
    %v5067 = vunpack.c.l.b16 %v4766
    %v5068 = vunpack.c.h.b16 %v4766
    %v5069 = vunpack.c.l.b16 %v4767
    %v5070 = vunpack.c.l.b16 %v4768
    %v5071 = vunpack.c.h.b16 %v4768
    %v5072 = vunpack.c.l.b16 %v4769
    %v5073 = vunpack.c.h.b16 %v4769
    %v5074 = vunpack.c.l.b16 %v4770
    %v5075 = vunpack.c.l.b16 %v4771
    %v5076 = vunpack.c.h.b16 %v4771
    %v5077 = vunpack.c.l.b16 %v4772
    %v5078 = vunpack.c.h.b16 %v4772
    %v5079 = vunpack.c.l.b16 %v4773
    %v5080 = vunpack.c.l.b16 %v4774
    %v5081 = vunpack.c.h.b16 %v4774
    %v5082 = vunpack.c.l.b16 %v4775
    %v5083 = vunpack.c.h.b16 %v4775
    %v5084 = vunpack.c.l.b16 %v4776
    %v5085 = vunpack.c.l.b16 %v4777
    %v5086 = vunpack.c.h.b16 %v4777
    %v5087 = vunpack.c.l.b16 %v4778
    %v5088 = vunpack.c.h.b16 %v4778
    %v5089 = vunpack.c.l.b16 %v4779
    %v5090 = vunpack.c.l.b16 %v4780
    %v5091 = vunpack.c.h.b16 %v4780
    %v5092 = vunpack.c.l.b16 %v4781
    %v5093 = vunpack.c.h.b16 %v4781
    %v5094 = vunpack.c.l.b16 %v4782
    %v5095 = vunpack.c.l.b16 %v4783
    %v5096 = vunpack.c.h.b16 %v4783
    %v5097 = vunpack.c.l.b16 %v4784
    %v5098 = vunpack.c.h.b16 %v4784
    %v5099 = vunpack.c.l.b16 %v4785
    %v5100 = vunpack.c.l.b16 %v4786
    %v5101 = vunpack.c.h.b16 %v4786
    %v5102 = vunpack.c.l.b16 %v4787
    %v5103 = vunpack.c.h.b16 %v4787
    %v5104 = vunpack.c.l.b16 %v4788
    %v5105 = vunpack.c.l.b16 %v4789
    %v5106 = vunpack.c.h.b16 %v4789
    %v5107 = vunpack.c.l.b16 %v4790
    %v5108 = vunpack.c.h.b16 %v4790
    %v5109 = vunpack.c.l.b16 %v4791
    %v5110 = vunpack.c.l.b16 %v4792
    %v5111 = vunpack.c.h.b16 %v4792
    %v5112 = vunpack.c.l.b16 %v4793
    %v5113 = vunpack.c.h.b16 %v4793
    %v5114 = vunpack.c.l.b16 %v4794
    %v5115 = vunpack.c.l.b16 %v4795
    %v5116 = vunpack.c.h.b16 %v4795
    %v5117 = vunpack.c.l.b16 %v4796
    %v5118 = vunpack.c.h.b16 %v4796
    %v5119 = vunpack.c.l.b16 %v4797
    %v5120 = vunpack.c.l.b16 %v4798
    %v5121 = vunpack.c.h.b16 %v4798
    %v5122 = vunpack.c.l.b16 %v4799
    %v5123 = vunpack.c.h.b16 %v4799
    %v5124 = vunpack.c.l.b16 %v4800
    %v5125 = vunpack.c.l.b16 %v4801
    %v5126 = vunpack.c.h.b16 %v4801
    %v5127 = vunpack.c.l.b16 %v4802
    %v5128 = vunpack.c.h.b16 %v4802
    %v5129 = vunpack.c.l.b16 %v4803
    %v5130 = vunpack.c.l.b16 %v4804
    %v5131 = vunpack.c.h.b16 %v4804
    %v5132 = vunpack.c.l.b16 %v4805
    %v5133 = vunpack.c.h.b16 %v4805
    %v5134 = vunpack.c.l.b16 %v4806
    %v5135 = vunpack.c.l.b16 %v4807
    %v5136 = vunpack.c.h.b16 %v4807
    %v5137 = vunpack.c.l.b16 %v4808
    %v5138 = vunpack.c.h.b16 %v4808
    %v5139 = vunpack.c.l.b16 %v4809
    %v5140 = vunpack.c.l.b16 %v4810
    %v5141 = vunpack.c.h.b16 %v4810
    %v5142 = vunpack.c.l.b16 %v4811
    %v5143 = vunpack.c.h.b16 %v4811
    %v5144 = vunpack.c.l.b16 %v4812
    %v5145 = vunpack.c.l.b16 %v4813
    %v5146 = vunpack.c.h.b16 %v4813
    %v5147 = vunpack.c.l.b16 %v4814
    %v5148 = vunpack.c.h.b16 %v4814
    %v5149 = vunpack.c.l.b16 %v4815
    %v5150 = vunpack.c.l.b16 %v4816
    %v5151 = vunpack.c.h.b16 %v4816
    %v5152 = vunpack.c.l.b16 %v4817
    %v5153 = vunpack.c.h.b16 %v4817
    %v5154 = vunpack.c.l.b16 %v4818
    %v5155 = vunpack.c.l.b16 %v4819
    %v5156 = vunpack.c.h.b16 %v4819
    %v5157 = vunpack.c.l.b16 %v4820
    %v5158 = vunpack.c.h.b16 %v4820
    %v5159 = vunpack.c.l.b16 %v4821
    %v5160 = vunpack.c.l.b16 %v4822
    %v5161 = vunpack.c.h.b16 %v4822
    %v5162 = vunpack.c.l.b16 %v4823
    %v5163 = vunpack.c.h.b16 %v4823
    %v5164 = vunpack.c.l.b16 %v4824
    %v5165 = vunpack.c.l.b16 %v4825
    %v5166 = vunpack.c.h.b16 %v4825
    %v5167 = vunpack.c.l.b16 %v4826
    %v5168 = vunpack.c.h.b16 %v4826
    %v5169 = vunpack.c.l.b16 %v4827
    %v5170 = vunpack.c.l.b16 %v4828
    %v5171 = vunpack.c.h.b16 %v4828
    %v5172 = vunpack.c.l.b16 %v4829
    %v5173 = vunpack.c.h.b16 %v4829
    %v5174 = vunpack.c.l.b16 %v4830
    %v5175 = vunpack.c.l.b16 %v4831
    %v5176 = vunpack.c.h.b16 %v4831
    %v5177 = vunpack.c.l.b16 %v4832
    %v5178 = vunpack.c.h.b16 %v4832
    %v5179 = vunpack.c.l.b16 %v4833
    %v5180 = vunpack.c.l.b16 %v4834
    %v5181 = vunpack.c.h.b16 %v4834
    %v5182 = vunpack.c.l.b16 %v4835
    %v5183 = vunpack.c.h.b16 %v4835
    %v5184 = vunpack.c.l.b16 %v4836
    %v5185 = vunpack.c.l.b16 %v4837
    %v5186 = vunpack.c.h.b16 %v4837
    %v5187 = vunpack.c.l.b16 %v4838
    %v5188 = vunpack.c.h.b16 %v4838
    %v5189 = vunpack.c.l.b16 %v4839
    %v5190 = vpack.c.b16 %v5015, %v5010
    %v5191 = vpack.c.b16 %v5016, %v5011
    %v5192 = vpack.c.b16 %v5017, %v5012
    %v5193 = vpack.c.b16 %v5018, %v5013
    %v5194 = vpack.c.b16 %v5019, %v5014
    %v5195 = vpack.c.b16 %v5025, %v5020
    %v5196 = vpack.c.b16 %v5026, %v5021
    %v5197 = vpack.c.b16 %v5027, %v5022
    %v5198 = vpack.c.b16 %v5028, %v5023
    %v5199 = vpack.c.b16 %v5029, %v5024
    %v5200 = vpack.c.b16 %v5035, %v5030
    %v5201 = vpack.c.b16 %v5036, %v5031
    %v5202 = vpack.c.b16 %v5037, %v5032
    %v5203 = vpack.c.b16 %v5038, %v5033
    %v5204 = vpack.c.b16 %v5039, %v5034
    %v5205 = vpack.c.b16 %v5045, %v5040
    %v5206 = vpack.c.b16 %v5046, %v5041
    %v5207 = vpack.c.b16 %v5047, %v5042
    %v5208 = vpack.c.b16 %v5048, %v5043
    %v5209 = vpack.c.b16 %v5049, %v5044
    %v5210 = vpack.c.b16 %v5055, %v5050
    %v5211 = vpack.c.b16 %v5056, %v5051
    %v5212 = vpack.c.b16 %v5057, %v5052
    %v5213 = vpack.c.b16 %v5058, %v5053
    %v5214 = vpack.c.b16 %v5059, %v5054
    %v5215 = vpack.c.b16 %v5065, %v5060
    %v5216 = vpack.c.b16 %v5066, %v5061
    %v5217 = vpack.c.b16 %v5067, %v5062
    %v5218 = vpack.c.b16 %v5068, %v5063
    %v5219 = vpack.c.b16 %v5069, %v5064
    %v5220 = vpack.c.b16 %v5075, %v5070
    %v5221 = vpack.c.b16 %v5076, %v5071
    %v5222 = vpack.c.b16 %v5077, %v5072
    %v5223 = vpack.c.b16 %v5078, %v5073
    %v5224 = vpack.c.b16 %v5079, %v5074
    %v5225 = vpack.c.b16 %v5085, %v5080
    %v5226 = vpack.c.b16 %v5086, %v5081
    %v5227 = vpack.c.b16 %v5087, %v5082
    %v5228 = vpack.c.b16 %v5088, %v5083
    %v5229 = vpack.c.b16 %v5089, %v5084
    %v5230 = vpack.c.b16 %v5095, %v5090
    %v5231 = vpack.c.b16 %v5096, %v5091
    %v5232 = vpack.c.b16 %v5097, %v5092
    %v5233 = vpack.c.b16 %v5098, %v5093
    %v5234 = vpack.c.b16 %v5099, %v5094
    %v5235 = vpack.c.b16 %v5105, %v5100
    %v5236 = vpack.c.b16 %v5106, %v5101
    %v5237 = vpack.c.b16 %v5107, %v5102
    %v5238 = vpack.c.b16 %v5108, %v5103
    %v5239 = vpack.c.b16 %v5109, %v5104
    %v5240 = vpack.c.b16 %v5115, %v5110
    %v5241 = vpack.c.b16 %v5116, %v5111
    %v5242 = vpack.c.b16 %v5117, %v5112
    %v5243 = vpack.c.b16 %v5118, %v5113
    %v5244 = vpack.c.b16 %v5119, %v5114
    %v5245 = vpack.c.b16 %v5125, %v5120
    %v5246 = vpack.c.b16 %v5126, %v5121
    %v5247 = vpack.c.b16 %v5127, %v5122
    %v5248 = vpack.c.b16 %v5128, %v5123
    %v5249 = vpack.c.b16 %v5129, %v5124
    %v5250 = vpack.c.b16 %v5135, %v5130
    %v5251 = vpack.c.b16 %v5136, %v5131
    %v5252 = vpack.c.b16 %v5137, %v5132
    %v5253 = vpack.c.b16 %v5138, %v5133
    %v5254 = vpack.c.b16 %v5139, %v5134
    %v5255 = vpack.c.b16 %v5145, %v5140
    %v5256 = vpack.c.b16 %v5146, %v5141
    %v5257 = vpack.c.b16 %v5147, %v5142
    %v5258 = vpack.c.b16 %v5148, %v5143
    %v5259 = vpack.c.b16 %v5149, %v5144
    %v5260 = vpack.c.b16 %v5155, %v5150
    %v5261 = vpack.c.b16 %v5156, %v5151
    %v5262 = vpack.c.b16 %v5157, %v5152
    %v5263 = vpack.c.b16 %v5158, %v5153
    %v5264 = vpack.c.b16 %v5159, %v5154
    %v5265 = vpack.c.b16 %v5165, %v5160
    %v5266 = vpack.c.b16 %v5166, %v5161
    %v5267 = vpack.c.b16 %v5167, %v5162
    %v5268 = vpack.c.b16 %v5168, %v5163
    %v5269 = vpack.c.b16 %v5169, %v5164
    %v5270 = vpack.c.b16 %v5175, %v5170
    %v5271 = vpack.c.b16 %v5176, %v5171
    %v5272 = vpack.c.b16 %v5177, %v5172
    %v5273 = vpack.c.b16 %v5178, %v5173
    %v5274 = vpack.c.b16 %v5179, %v5174
    %v5275 = vpack.c.b16 %v5185, %v5180
    %v5276 = vpack.c.b16 %v5186, %v5181
    %v5277 = vpack.c.b16 %v5187, %v5182
    %v5278 = vpack.c.b16 %v5188, %v5183
    %v5279 = vpack.c.b16 %v5189, %v5184
    %v5371 = vsel %vm3204, %v4894, 0
    %v5374 = vsel %vm3204, %v4897, 0
    %5376 = vmatpush.bf16.msra.mxu0 %v5225
    %5377 = vmatpush.bf16.msra.mxu0 %v5220
    %5378 = vmatpush.bf16.msra.mxu0 %v5215
    %5379 = vmatpush.bf16.msra.mxu0 %v5210
    %5380 = vmatpush.bf16.msra.mxu0 %v5205
    %5381 = vmatpush.bf16.msra.mxu0 %v5200
    %5382 = vmatpush.bf16.msra.mxu0 %v5195
    %5383 = vmatpush.bf16.msra.mxu0 %v5190
    %5384 = vmatmul.bf16.gmra.mxu0 %v4892
    %v5385 = vpop.f32.mrf.mxu0
    %v5386 = vadd.f32 %v4855, %v5385
    %v5387 = vpop.f32.mrf.mxu0
    %v5388 = vadd.f32 %v4860, %v5387
    %5389 = vmatmul.bf16.gmra.mxu0 %v4895
    %v5390 = vpop.f32.mrf.mxu0
    %v5391 = vadd.f32 %v4865, %v5390
    %v5392 = vpop.f32.mrf.mxu0
    %v5393 = vadd.f32 %v4870, %v5392
    %5394 = vdwg.mxu0
    %5395 = vmatpush.bf16.msra.mxu0 %v5265
    %5396 = vmatpush.bf16.msra.mxu0 %v5260
    %5397 = vmatpush.bf16.msra.mxu0 %v5255
    %5398 = vmatpush.bf16.msra.mxu0 %v5250
    %5399 = vmatpush.bf16.msra.mxu0 %v5245
    %5400 = vmatpush.bf16.msra.mxu0 %v5240
    %5401 = vmatpush.bf16.msra.mxu0 %v5235
    %5402 = vmatpush.bf16.msra.mxu0 %v5230
    %5403 = vmatmul.bf16.gmra.mxu0 %v4893
    %v5404 = vpop.f32.mrf.mxu0
    %v5405 = vadd.f32 %v5386, %v5404
    %v5406 = vpop.f32.mrf.mxu0
    %v5407 = vadd.f32 %v5388, %v5406
    %5408 = vmatmul.bf16.gmra.mxu0 %v4896
    %v5409 = vpop.f32.mrf.mxu0
    %v5410 = vadd.f32 %v5391, %v5409
    %v5411 = vpop.f32.mrf.mxu0
    %v5412 = vadd.f32 %v5393, %v5411
    %5413 = vdwg.mxu0
    %5414 = vmatpush.bf16.msra.mxu0 0
    %5415 = vmatpush.bf16.msra.mxu0 0
    %5416 = vmatpush.bf16.msra.mxu0 0
    %5417 = vmatpush.bf16.msra.mxu0 0
    %5418 = vmatpush.bf16.msra.mxu0 0
    %5419 = vmatpush.bf16.msra.mxu0 0
    %5420 = vmatpush.bf16.msra.mxu0 %v5275
    %5421 = vmatpush.bf16.msra.mxu0 %v5270
    %5422 = vmatmul.bf16.gmra.mxu0 %v5371
    %v5423 = vpop.f32.mrf.mxu0
    %v5424 = vadd.f32 %v5405, %v5423
    %v5425 = vpop.f32.mrf.mxu0
    %v5426 = vadd.f32 %v5407, %v5425
    %5427 = vmatmul.bf16.gmra.mxu0 %v5374
    %v5428 = vpop.f32.mrf.mxu0
    %v5429 = vadd.f32 %v5410, %v5428
    %v5430 = vpop.f32.mrf.mxu0
    %v5431 = vadd.f32 %v5412, %v5430
    %5432 = vdwg.mxu0
    %5433 = vmatpush.bf16.msra.mxu0 %v5226
    %5434 = vmatpush.bf16.msra.mxu0 %v5221
    %5435 = vmatpush.bf16.msra.mxu0 %v5216
    %5436 = vmatpush.bf16.msra.mxu0 %v5211
    %5437 = vmatpush.bf16.msra.mxu0 %v5206
    %5438 = vmatpush.bf16.msra.mxu0 %v5201
    %5439 = vmatpush.bf16.msra.mxu0 %v5196
    %5440 = vmatpush.bf16.msra.mxu0 %v5191
    %5441 = vmatmul.bf16.gmra.mxu0 %v4892
    %v5442 = vpop.f32.mrf.mxu0
    %v5443 = vadd.f32 %v4855, %v5442
    %v5444 = vpop.f32.mrf.mxu0
    %v5445 = vadd.f32 %v4860, %v5444
    %5446 = vmatmul.bf16.gmra.mxu0 %v4895
    %v5447 = vpop.f32.mrf.mxu0
    %v5448 = vadd.f32 %v4865, %v5447
    %v5449 = vpop.f32.mrf.mxu0
    %v5450 = vadd.f32 %v4870, %v5449
    %5451 = vdwg.mxu0
    %5452 = vmatpush.bf16.msra.mxu0 %v5266
    %5453 = vmatpush.bf16.msra.mxu0 %v5261
    %5454 = vmatpush.bf16.msra.mxu0 %v5256
    %5455 = vmatpush.bf16.msra.mxu0 %v5251
    %5456 = vmatpush.bf16.msra.mxu0 %v5246
    %5457 = vmatpush.bf16.msra.mxu0 %v5241
    %5458 = vmatpush.bf16.msra.mxu0 %v5236
    %5459 = vmatpush.bf16.msra.mxu0 %v5231
    %5460 = vmatmul.bf16.gmra.mxu0 %v4893
    %v5461 = vpop.f32.mrf.mxu0
    %v5462 = vadd.f32 %v5443, %v5461
    %v5463 = vpop.f32.mrf.mxu0
    %v5464 = vadd.f32 %v5445, %v5463
    %5465 = vmatmul.bf16.gmra.mxu0 %v4896
    %v5466 = vpop.f32.mrf.mxu0
    %v5467 = vadd.f32 %v5448, %v5466
    %v5468 = vpop.f32.mrf.mxu0
    %v5469 = vadd.f32 %v5450, %v5468
    %5470 = vdwg.mxu0
    %5471 = vmatpush.bf16.msra.mxu0 0
    %5472 = vmatpush.bf16.msra.mxu0 0
    %5473 = vmatpush.bf16.msra.mxu0 0
    %5474 = vmatpush.bf16.msra.mxu0 0
    %5475 = vmatpush.bf16.msra.mxu0 0
    %5476 = vmatpush.bf16.msra.mxu0 0
    %5477 = vmatpush.bf16.msra.mxu0 %v5276
    %5478 = vmatpush.bf16.msra.mxu0 %v5271
    %5479 = vmatmul.bf16.gmra.mxu0 %v5371
    %v5480 = vpop.f32.mrf.mxu0
    %v5481 = vadd.f32 %v5462, %v5480
    %v5482 = vpop.f32.mrf.mxu0
    %v5483 = vadd.f32 %v5464, %v5482
    %5484 = vmatmul.bf16.gmra.mxu0 %v5374
    %v5485 = vpop.f32.mrf.mxu0
    %v5486 = vadd.f32 %v5467, %v5485
    %v5487 = vpop.f32.mrf.mxu0
    %v5488 = vadd.f32 %v5469, %v5487
    %5489 = vdwg.mxu0
    %5490 = vmatpush.bf16.msra.mxu0 %v5227
    %5491 = vmatpush.bf16.msra.mxu0 %v5222
    %5492 = vmatpush.bf16.msra.mxu0 %v5217
    %5493 = vmatpush.bf16.msra.mxu0 %v5212
    %5494 = vmatpush.bf16.msra.mxu0 %v5207
    %5495 = vmatpush.bf16.msra.mxu0 %v5202
    %5496 = vmatpush.bf16.msra.mxu0 %v5197
    %5497 = vmatpush.bf16.msra.mxu0 %v5192
    %5498 = vmatmul.bf16.gmra.mxu0 %v4892
    %v5499 = vpop.f32.mrf.mxu0
    %v5500 = vadd.f32 %v4855, %v5499
    %v5501 = vpop.f32.mrf.mxu0
    %v5502 = vadd.f32 %v4860, %v5501
    %5503 = vmatmul.bf16.gmra.mxu0 %v4895
    %v5504 = vpop.f32.mrf.mxu0
    %v5505 = vadd.f32 %v4865, %v5504
    %v5506 = vpop.f32.mrf.mxu0
    %v5507 = vadd.f32 %v4870, %v5506
    %5508 = vdwg.mxu0
    %5509 = vmatpush.bf16.msra.mxu0 %v5267
    %5510 = vmatpush.bf16.msra.mxu0 %v5262
    %5511 = vmatpush.bf16.msra.mxu0 %v5257
    %5512 = vmatpush.bf16.msra.mxu0 %v5252
    %5513 = vmatpush.bf16.msra.mxu0 %v5247
    %5514 = vmatpush.bf16.msra.mxu0 %v5242
    %5515 = vmatpush.bf16.msra.mxu0 %v5237
    %5516 = vmatpush.bf16.msra.mxu0 %v5232
    %5517 = vmatmul.bf16.gmra.mxu0 %v4893
    %v5518 = vpop.f32.mrf.mxu0
    %v5519 = vadd.f32 %v5500, %v5518
    %v5520 = vpop.f32.mrf.mxu0
    %v5521 = vadd.f32 %v5502, %v5520
    %5522 = vmatmul.bf16.gmra.mxu0 %v4896
    %v5523 = vpop.f32.mrf.mxu0
    %v5524 = vadd.f32 %v5505, %v5523
    %v5525 = vpop.f32.mrf.mxu0
    %v5526 = vadd.f32 %v5507, %v5525
    %5527 = vdwg.mxu0
    %5528 = vmatpush.bf16.msra.mxu0 0
    %5529 = vmatpush.bf16.msra.mxu0 0
    %5530 = vmatpush.bf16.msra.mxu0 0
    %5531 = vmatpush.bf16.msra.mxu0 0
    %5532 = vmatpush.bf16.msra.mxu0 0
    %5533 = vmatpush.bf16.msra.mxu0 0
    %5534 = vmatpush.bf16.msra.mxu0 %v5277
    %5535 = vmatpush.bf16.msra.mxu0 %v5272
    %5536 = vmatmul.bf16.gmra.mxu0 %v5371
    %v5537 = vpop.f32.mrf.mxu0
    %v5538 = vadd.f32 %v5519, %v5537
    %v5539 = vpop.f32.mrf.mxu0
    %v5540 = vadd.f32 %v5521, %v5539
    %5541 = vmatmul.bf16.gmra.mxu0 %v5374
    %v5542 = vpop.f32.mrf.mxu0
    %v5543 = vadd.f32 %v5524, %v5542
    %v5544 = vpop.f32.mrf.mxu0
    %v5545 = vadd.f32 %v5526, %v5544
    %5546 = vdwg.mxu0
    %5547 = vmatpush.bf16.msra.mxu0 %v5228
    %5548 = vmatpush.bf16.msra.mxu0 %v5223
    %5549 = vmatpush.bf16.msra.mxu0 %v5218
    %5550 = vmatpush.bf16.msra.mxu0 %v5213
    %5551 = vmatpush.bf16.msra.mxu0 %v5208
    %5552 = vmatpush.bf16.msra.mxu0 %v5203
    %5553 = vmatpush.bf16.msra.mxu0 %v5198
    %5554 = vmatpush.bf16.msra.mxu0 %v5193
    %5555 = vmatmul.bf16.gmra.mxu0 %v4892
    %v5556 = vpop.f32.mrf.mxu0
    %v5557 = vadd.f32 %v4855, %v5556
    %v5558 = vpop.f32.mrf.mxu0
    %v5559 = vadd.f32 %v4860, %v5558
    %5560 = vmatmul.bf16.gmra.mxu0 %v4895
    %v5561 = vpop.f32.mrf.mxu0
    %v5562 = vadd.f32 %v4865, %v5561
    %v5563 = vpop.f32.mrf.mxu0
    %v5564 = vadd.f32 %v4870, %v5563
    %5565 = vdwg.mxu0
    %5566 = vmatpush.bf16.msra.mxu0 %v5268
    %5567 = vmatpush.bf16.msra.mxu0 %v5263
    %5568 = vmatpush.bf16.msra.mxu0 %v5258
    %5569 = vmatpush.bf16.msra.mxu0 %v5253
    %5570 = vmatpush.bf16.msra.mxu0 %v5248
    %5571 = vmatpush.bf16.msra.mxu0 %v5243
    %5572 = vmatpush.bf16.msra.mxu0 %v5238
    %5573 = vmatpush.bf16.msra.mxu0 %v5233
    %5574 = vmatmul.bf16.gmra.mxu0 %v4893
    %v5575 = vpop.f32.mrf.mxu0
    %v5576 = vadd.f32 %v5557, %v5575
    %v5577 = vpop.f32.mrf.mxu0
    %v5578 = vadd.f32 %v5559, %v5577
    %5579 = vmatmul.bf16.gmra.mxu0 %v4896
    %v5580 = vpop.f32.mrf.mxu0
    %v5581 = vadd.f32 %v5562, %v5580
    %v5582 = vpop.f32.mrf.mxu0
    %v5583 = vadd.f32 %v5564, %v5582
    %5584 = vdwg.mxu0
    %5585 = vmatpush.bf16.msra.mxu0 0
    %5586 = vmatpush.bf16.msra.mxu0 0
    %5587 = vmatpush.bf16.msra.mxu0 0
    %5588 = vmatpush.bf16.msra.mxu0 0
    %5589 = vmatpush.bf16.msra.mxu0 0
    %5590 = vmatpush.bf16.msra.mxu0 0
    %5591 = vmatpush.bf16.msra.mxu0 %v5278
    %5592 = vmatpush.bf16.msra.mxu0 %v5273
    %5593 = vmatmul.bf16.gmra.mxu0 %v5371
    %v5594 = vpop.f32.mrf.mxu0
    %v5595 = vadd.f32 %v5576, %v5594
    %v5596 = vpop.f32.mrf.mxu0
    %v5597 = vadd.f32 %v5578, %v5596
    %5598 = vmatmul.bf16.gmra.mxu0 %v5374
    %v5599 = vpop.f32.mrf.mxu0
    %v5600 = vadd.f32 %v5581, %v5599
    %v5601 = vpop.f32.mrf.mxu0
    %v5602 = vadd.f32 %v5583, %v5601
    %5603 = vdwg.mxu0
    %5604 = vmatpush.bf16.msra.mxu0 %v5229
    %5605 = vmatpush.bf16.msra.mxu0 %v5224
    %5606 = vmatpush.bf16.msra.mxu0 %v5219
    %5607 = vmatpush.bf16.msra.mxu0 %v5214
    %5608 = vmatpush.bf16.msra.mxu0 %v5209
    %5609 = vmatpush.bf16.msra.mxu0 %v5204
    %5610 = vmatpush.bf16.msra.mxu0 %v5199
    %5611 = vmatpush.bf16.msra.mxu0 %v5194
    %5612 = vmatmul.bf16.gmra.mxu0 %v4892
    %v5613 = vpop.f32.mrf.mxu0
    %v5614 = vadd.f32 %v4855, %v5613
    %v5615 = vpop.f32.mrf.mxu0
    %v5616 = vadd.f32 %v4860, %v5615
    %5617 = vmatmul.bf16.gmra.mxu0 %v4895
    %v5618 = vpop.f32.mrf.mxu0
    %v5619 = vadd.f32 %v4865, %v5618
    %v5620 = vpop.f32.mrf.mxu0
    %v5621 = vadd.f32 %v4870, %v5620
    %5622 = vdwg.mxu0
    %5623 = vmatpush.bf16.msra.mxu0 %v5269
    %5624 = vmatpush.bf16.msra.mxu0 %v5264
    %5625 = vmatpush.bf16.msra.mxu0 %v5259
    %5626 = vmatpush.bf16.msra.mxu0 %v5254
    %5627 = vmatpush.bf16.msra.mxu0 %v5249
    %5628 = vmatpush.bf16.msra.mxu0 %v5244
    %5629 = vmatpush.bf16.msra.mxu0 %v5239
    %5630 = vmatpush.bf16.msra.mxu0 %v5234
    %5631 = vmatmul.bf16.gmra.mxu0 %v4893
    %v5632 = vpop.f32.mrf.mxu0
    %v5633 = vadd.f32 %v5614, %v5632
    %v5634 = vpop.f32.mrf.mxu0
    %v5635 = vadd.f32 %v5616, %v5634
    %5636 = vmatmul.bf16.gmra.mxu0 %v4896
    %v5637 = vpop.f32.mrf.mxu0
    %v5638 = vadd.f32 %v5619, %v5637
    %v5639 = vpop.f32.mrf.mxu0
    %v5640 = vadd.f32 %v5621, %v5639
    %5641 = vdwg.mxu0
    %5642 = vmatpush.bf16.msra.mxu0 0
    %5643 = vmatpush.bf16.msra.mxu0 0
    %5644 = vmatpush.bf16.msra.mxu0 0
    %5645 = vmatpush.bf16.msra.mxu0 0
    %5646 = vmatpush.bf16.msra.mxu0 0
    %5647 = vmatpush.bf16.msra.mxu0 0
    %5648 = vmatpush.bf16.msra.mxu0 %v5279
    %5649 = vmatpush.bf16.msra.mxu0 %v5274
    %5650 = vmatmul.bf16.gmra.mxu0 %v5371
    %v5651 = vpop.f32.mrf.mxu0
    %v5652 = vadd.f32 %v5633, %v5651
    %v5653 = vpop.f32.mrf.mxu0
    %v5654 = vadd.f32 %v5635, %v5653
    %5655 = vmatmul.bf16.gmra.mxu0 %v5374
    %v5656 = vpop.f32.mrf.mxu0
    %v5657 = vadd.f32 %v5638, %v5656
    %v5658 = vpop.f32.mrf.mxu0
    %v5659 = vadd.f32 %v5640, %v5658
    %5660 = vdwg.mxu0
    %v5661 = vmax.f32 %v5424, 0.0
    %v5662 = vmax.f32 %v5481, 0.0
    %v5663 = vmax.f32 %v5538, 0.0
    %v5664 = vmax.f32 %v5595, 0.0
    %v5665 = vmax.f32 %v5652, 0.0
    %v5666 = vmax.f32 %v5426, 0.0
    %v5667 = vmax.f32 %v5483, 0.0
    %v5668 = vmax.f32 %v5540, 0.0
    %v5669 = vmax.f32 %v5597, 0.0
    %v5670 = vmax.f32 %v5654, 0.0
    %v5671 = vmax.f32 %v5429, 0.0
    %v5672 = vmax.f32 %v5486, 0.0
    %v5673 = vmax.f32 %v5543, 0.0
    %v5674 = vmax.f32 %v5600, 0.0
    %v5675 = vmax.f32 %v5657, 0.0
    %v5676 = vmax.f32 %v5431, 0.0
    %v5677 = vmax.f32 %v5488, 0.0
    %v5678 = vmax.f32 %v5545, 0.0
    %v5679 = vmax.f32 %v5602, 0.0
    %v5680 = vmax.f32 %v5659, 0.0
    %v5681 = vld [vmem:[%s7] sm:$0xf]
    %v5682 = vpack.c.bf16 %v5666, %v5661
    %v5683 = vpack.c.bf16 %v5667, %v5662
    %v5684 = vpack.c.bf16 %v5668, %v5663
    %v5685 = vpack.c.bf16 %v5669, %v5664
    %v5686 = vpack.c.bf16 %v5670, %v5665
    %v5687 = vpack.c.bf16 %v5676, %v5671
    %v5688 = vpack.c.bf16 %v5677, %v5672
    %v5689 = vpack.c.bf16 %v5678, %v5673
    %v5690 = vpack.c.bf16 %v5679, %v5674
    %v5691 = vpack.c.bf16 %v5680, %v5675
    %v5692 = vld [vmem:[%s8] sm:$0xff]
    %5694 = vset.pattern.permute.xlu0 0
    %5695 = vperm.xlu0 %5694, %v5692
    %v5696 = vpop.permute.xlu0 %5695
    %v5699 = vsel %vm3204, %v5681, 0
    %5701 = vmatpush.bf16.msra.mxu0 0
    %5702 = vmatpush.bf16.msra.mxu0 0
    %5703 = vmatpush.bf16.msra.mxu0 0
    %5704 = vmatpush.bf16.msra.mxu0 0
    %5705 = vmatpush.bf16.msra.mxu0 0
    %5706 = vmatpush.bf16.msra.mxu0 0
    %5707 = vmatpush.bf16.msra.mxu0 %v5687
    %5708 = vmatpush.bf16.msra.mxu0 %v5682
    %5709 = vmatmul.bf16.gmra.mxu0 %v5699
    %v5710 = vpop.f32.mrf.mxu0
    %v5711 = vadd.f32 %v5696, %v5710
    %v5712 = vpop.f32.mrf.mxu0
    %5713 = vdwg.mxu0
    %5714 = vmatpush.bf16.msra.mxu0 0
    %5715 = vmatpush.bf16.msra.mxu0 0
    %5716 = vmatpush.bf16.msra.mxu0 0
    %5717 = vmatpush.bf16.msra.mxu0 0
    %5718 = vmatpush.bf16.msra.mxu0 0
    %5719 = vmatpush.bf16.msra.mxu0 0
    %5720 = vmatpush.bf16.msra.mxu0 %v5688
    %5721 = vmatpush.bf16.msra.mxu0 %v5683
    %5722 = vmatmul.bf16.gmra.mxu0 %v5699
    %v5723 = vpop.f32.mrf.mxu0
    %v5724 = vadd.f32 %v5696, %v5723
    %v5725 = vpop.f32.mrf.mxu0
    %5726 = vdwg.mxu0
    %5727 = vmatpush.bf16.msra.mxu0 0
    %5728 = vmatpush.bf16.msra.mxu0 0
    %5729 = vmatpush.bf16.msra.mxu0 0
    %5730 = vmatpush.bf16.msra.mxu0 0
    %5731 = vmatpush.bf16.msra.mxu0 0
    %5732 = vmatpush.bf16.msra.mxu0 0
    %5733 = vmatpush.bf16.msra.mxu0 %v5689
    %5734 = vmatpush.bf16.msra.mxu0 %v5684
    %5735 = vmatmul.bf16.gmra.mxu0 %v5699
    %v5736 = vpop.f32.mrf.mxu0
    %v5737 = vadd.f32 %v5696, %v5736
    %v5738 = vpop.f32.mrf.mxu0
    %5739 = vdwg.mxu0
    %5740 = vmatpush.bf16.msra.mxu0 0
    %5741 = vmatpush.bf16.msra.mxu0 0
    %5742 = vmatpush.bf16.msra.mxu0 0
    %5743 = vmatpush.bf16.msra.mxu0 0
    %5744 = vmatpush.bf16.msra.mxu0 0
    %5745 = vmatpush.bf16.msra.mxu0 0
    %5746 = vmatpush.bf16.msra.mxu0 %v5690
    %5747 = vmatpush.bf16.msra.mxu0 %v5685
    %5748 = vmatmul.bf16.gmra.mxu0 %v5699
    %v5749 = vpop.f32.mrf.mxu0
    %v5750 = vadd.f32 %v5696, %v5749
    %v5751 = vpop.f32.mrf.mxu0
    %5752 = vdwg.mxu0
    %5753 = vmatpush.bf16.msra.mxu0 0
    %5754 = vmatpush.bf16.msra.mxu0 0
    %5755 = vmatpush.bf16.msra.mxu0 0
    %5756 = vmatpush.bf16.msra.mxu0 0
    %5757 = vmatpush.bf16.msra.mxu0 0
    %5758 = vmatpush.bf16.msra.mxu0 0
    %5759 = vmatpush.bf16.msra.mxu0 %v5691
    %5760 = vmatpush.bf16.msra.mxu0 %v5686
    %5761 = vmatmul.bf16.gmra.mxu0 %v5699
    %v5762 = vpop.f32.mrf.mxu0
    %v5763 = vadd.f32 %v5696, %v5762
    %v5764 = vpop.f32.mrf.mxu0
    %5765 = vdwg.mxu0
    %v5766 = vld [vmem:[#allocation6] sm:$0xff]
    %v5767 = vld [vmem:[#allocation6 + $0x8] sm:$0xff]
    %v5768 = vld [vmem:[#allocation6 + $0x10] sm:$0xff]
    %v5769 = vstv %s110
    %v5770 = vmul.f32 %v5769, %v5711
    %v5771 = vmul.f32 %v5769, %v5724
    %v5772 = vmul.f32 %v5769, %v5737
    %5776 = vrot.lane.b32.xlu0 %v5770, 19
    %v5777 = vpop.permute.xlu0 %5776
    %5778 = vrot.lane.b32.xlu0 %v5771, 19
    %v5779 = vpop.permute.xlu0 %5778
    %5780 = vrot.lane.b32.xlu0 %v5772, 19
    %v5781 = vpop.permute.xlu0 %5780
    %vm5782 = vcmask 154624
    %v5783 = vsel %vm5782, %v5777, %v5779
    %v5784 = vsel %vm5782, %v5779, %v5781
    %v5788 = vadd.f32 %v5766, %v5777
    %v5789 = vadd.f32 %v5767, %v5783
    %v5790 = vadd.f32 %v5768, %v5784
    %5794 = vrot.lane.b32.xlu0 %v5788, 109
    %v5795 = vpop.permute.xlu0 %5794
    %5796 = vrot.lane.b32.xlu0 %v5789, 109
    %v5797 = vpop.permute.xlu0 %5796
    %5798 = vrot.lane.b32.xlu0 %v5790, 109
    %v5799 = vpop.permute.xlu0 %5798
    %vm5800 = vcmask 891904
    %v5801 = vsel %vm5800, %v5795, %v5797
    %v5802 = vsel %vm5800, %v5797, %v5799
    %5806 = vst [vmem:[#allocation11] sm:$0xff] %v5801
    %5807 = vst [vmem:[#allocation11 + $0x8] sm:$0xff] %v5802
    %5808 = vst.msk [vmem:[#allocation11 + $0x10] sm:$0xff] %vm3204, %v5799
    %v5809 = vld [vmem:[%s126] sm:$0xff]
    %v5810 = vld [vmem:[%s126 + $0x8] sm:$0xff]
    %v5811 = vld [vmem:[%s126 + $0x10] sm:$0xff]
    %v5812 = vmul.f32 %v5769, %v5750
    %v5813 = vmul.f32 %v5769, %v5763
    %5816 = vrot.lane.b32.xlu0 %v5772, 115
    %v5817 = vpop.permute.xlu0 %5816
    %5818 = vrot.lane.b32.xlu0 %v5812, 115
    %v5819 = vpop.permute.xlu0 %5818
    %5820 = vrot.lane.b32.xlu0 %v5813, 115
    %v5821 = vpop.permute.xlu0 %5820
    %vm5822 = vcmask 941056
    %v5823 = vsel %vm5822, %v5817, %v5819
    %v5824 = vsel %vm5822, %v5819, %v5821
    %v5828 = vadd.f32 %v5809, %v5823
    %v5829 = vadd.f32 %v5810, %v5824
    %v5830 = vadd.f32 %v5811, %v5821
    %5834 = vrot.lane.b32.xlu0 %v5828, 109
    %v5835 = vpop.permute.xlu0 %5834
    %5836 = vrot.lane.b32.xlu0 %v5829, 109
    %v5837 = vpop.permute.xlu0 %5836
    %5838 = vrot.lane.b32.xlu0 %v5830, 109
    %v5839 = vpop.permute.xlu0 %5838
    %v5840 = vsel %vm5800, %v5835, %v5837
    %v5841 = vsel %vm5800, %v5837, %v5839
    %s5845 = scalar_lea.vmem [#allocation11], 24
    %5846 = vst [vmem:[%s5845] sm:$0xff] %v5840
    %5847 = vst [vmem:[%s5845 + $0x8] sm:$0xff] %v5841
    %5848 = vst.msk [vmem:[%s5845 + $0x10] sm:$0xff] %vm3204, %v5839
    // Predicated region
    $region54: #{tpu_custom_call.1} parent=1 // pred_check
      _
    $region55: #{tpu_custom_call.1} parent=1 // pred_check_branch
      %5850 = sbr.rel (0) target = $region57
    $region56: #{tpu_custom_call.1} parent=1 // pred_region
      %5852 = vsyncadd [#allocation8], 0
      %s5853 = sshll.u32 [#allocation11], 4
      %s5854 = int_to_ptr.vmem [resolvable:$true] %s5853
      %s5855 = sshll.u32 %s11, 4
      %s5856 = int_to_ptr.hbm [resolvable:$true] %s5855
      %5861 = dma.vmem_to_hbm [thread:$0]  %s5854, 768, %s5856, [#allocation8], 384, 384, 24
    $region57: #{tpu_custom_call.1} parent=1 // pred_fallthru
      _
    // Predicated region
    $region58: #{tpu_custom_call.1} parent=1 // pred_check
      _
    $region59: #{tpu_custom_call.1} parent=1 // pred_check_branch
      %5863 = sbr.rel (0) target = $region61
    $region60: #{tpu_custom_call.1} parent=1 // pred_region
      %5865 = dma.done [#allocation8], 768
    $region61: #{tpu_custom_call.1} parent=1 // pred_fallthru
      _
    %5866 = vsyncpa [#allocation7], 1
    %5867 = vsyncpa [#allocation10], 1
    %5868 = vsyncpa [#allocation8], 1

</llo_original>
